<compile_context>
chip_gen: v5e
topology: v5e:2x2
jax: 0.10.0
libtpu: 0.0.40
codegen_flags: <defaults>
</compile_context>

<pallas_src>
import math

import jax
import jax.numpy as jnp
from jax import lax
from jax.experimental import pallas as pl
from jax.experimental.pallas import tpu as pltpu


def basic_block_kernel(x_ref, w1_ref, s1_ref, b1_ref, w2_ref, s2_ref, b2_ref,
                       out_ref, mid_ref):
    """One batch element per grid step (batch dim squeezed out by the BlockSpec).

    x_ref   : (H+2, W+2, Cp)   bf16  spatially zero-padded, channel-padded input
    w*_ref  : (3, 3*Cp, Cp)    bf16  conv weights, dy taps packed along K, dx-major
    s*/b*   : (1, Cp)          f32   folded BatchNorm scale / bias (0 on padded ch)
    out_ref : (H, W, Cp)       bf16  lane-dense output block
    mid_ref : (H+2, W+32, Cp)  bf16  scratch for the conv1 activation; interior lives
              at rows [1, H+1), cols [16, 16+W) so the big per-step store is aligned
              to the bf16 (16, 128) tile; only the 1-px border conv2 reads is re-zeroed.
    """
    H, W, Cp = out_ref.shape
    HW = H * W

    def conv3x3(load_slab, w_ref):
        # 3x3 conv as 3 lane-dense bf16 MXU matmuls (one per dx) with the 3 dy taps
        # packed along K: LHS = three row-shifted views of one (H+2, W, Cp) slab
        # concatenated along channels -> (HW, 3*Cp); RHS = (3*Cp, Cp). f32 accumulate.
        acc = jnp.zeros((HW, Cp), jnp.float32)
        mid_slab = None
        for dx in range(3):
            flat = load_slab(dx).reshape((H + 2) * W, Cp)
            if dx == 1:
                mid_slab = flat                      # reused for the residual (conv1)
            lhs = jnp.concatenate(
                [flat[0:HW, :], flat[W:W + HW, :], flat[2 * W:2 * W + HW, :]], axis=1)
            acc = acc + jnp.dot(lhs, w_ref[dx], preferred_element_type=jnp.float32)
        return acc, mid_slab

    # ---- conv1 (3x3, pad=1): shifted slabs read straight off the bf16 input ref ----
    acc1, x_mid = conv3x3(lambda dx: x_ref[:, dx:dx + W, :], w1_ref)

    # ---- bn1 + relu ----
    out1 = jnp.maximum(acc1 * s1_ref[...] + b1_ref[...], 0.0)

    # ---- stage conv1 activation for conv2: zero only the border cells conv2 reads
    #      (cheap, done every step so it stays correct if the grid is split across
    #      TensorCores), then one tile-aligned unmasked interior store ----
    zrow = jnp.zeros((1,) + mid_ref.shape[1:], mid_ref.dtype)
    zcol = jnp.zeros((mid_ref.shape[0], 1, Cp), mid_ref.dtype)
    mid_ref[0:1, :, :] = zrow
    mid_ref[H + 1:H + 2, :, :] = zrow
    mid_ref[:, 15:16, :] = zcol
    mid_ref[:, 16 + W:17 + W, :] = zcol
    mid_ref[1:H + 1, 16:16 + W, :] = out1.astype(mid_ref.dtype).reshape(H, W, Cp)

    # ---- conv2 (3x3, pad=1) from the staged activation ----
    acc2, _ = conv3x3(lambda dx: mid_ref[:, 15 + dx:15 + dx + W, :], w2_ref)

    # ---- bn2 + residual (reused from the dx=1 conv1 slab) + relu; bf16 store ----
    # TODO(synk): the skip path adds the bf16-cast input (systematic ~0.4% rel error vs.
    #             the f32 PyTorch skip); thread an f32 residual through if that matters.
    residual = x_mid[W:W + HW, :].astype(jnp.float32)
    out2 = acc2 * s2_ref[...] + b2_ref[...] + residual
    out_ref[...] = jnp.maximum(out2, 0.0).reshape(H, W, Cp).astype(out_ref.dtype)


def basic_block_forward(x_nchw, w1_oihw, g1, be1, rm1, rv1,
                        w2_oihw, g2, be2, rm2, rv2, eps=1e-5,
                        out_dtype=jnp.float32):
    """NCHW in/out; folds eval-mode BN to scale/bias, pads channels to a lane-dense
    multiple of 128, casts MXU operands to bf16, K-packs the dy taps, and calls the
    fused Pallas kernel (which emits bf16; caller-facing dtype is `out_dtype`)."""
    N, C, H, W = x_nchw.shape
    Cp = ((C + 127) // 128) * 128

    # NCHW -> NHWC, bf16, one pad op for both the spatial halo (+1) and channel padding.
    x = jnp.transpose(x_nchw, (0, 2, 3, 1)).astype(jnp.bfloat16)
    xp = jnp.pad(x, ((0, 0), (1, 1), (1, 1), (0, Cp - C)))

    def prep_w(w_oihw):
        # OIHW -> HWIO, channel-pad, bf16, then pack the 3 dy taps along the
        # input-channel (K) axis, dx-major:
        #   result[dx] = [ w[dy=0,dx] ; w[dy=1,dx] ; w[dy=2,dx] ]  -> (3, 3*Cp, Cp)
        w = jnp.transpose(w_oihw, (2, 3, 1, 0)).astype(jnp.bfloat16)      # (dy, dx, I, O)
        w = jnp.pad(w, ((0, 0), (0, 0), (0, Cp - C), (0, Cp - C)))        # (3, 3, Cp, Cp)
        return jnp.transpose(w, (1, 0, 2, 3)).reshape(3, 3 * Cp, Cp)      # (dx, 3*Cp, Cp)

    def fold_bn(g, b, rm, rv):  # eval-mode BN -> per-channel scale/bias (padded ch stay 0)
        s = (g / jnp.sqrt(rv + eps)).astype(jnp.float32)
        bb = (b - rm * s).astype(jnp.float32)
        return (jnp.pad(s, (0, Cp - C)).reshape(1, Cp),
                jnp.pad(bb, (0, Cp - C)).reshape(1, Cp))

    w1 = prep_w(w1_oihw)
    w2 = prep_w(w2_oihw)
    s1, b1 = fold_bn(g1, be1, rm1, rv1)
    s2, b2 = fold_bn(g2, be2, rm2, rv2)

    # Scoped-VMEM limit from the actual block + scratch sizes (not the defaults).
    nbytes = lambda shape, dt: math.prod(shape) * jnp.dtype(dt).itemsize
    block_bytes = (
        2 * nbytes((H + 2, W + 2, Cp), jnp.bfloat16)     # input block, double-buffered
        + 2 * nbytes((3, 3 * Cp, Cp), jnp.bfloat16)       # w1 + w2, single-buffered
        + 4 * nbytes((1, Cp), jnp.float32)                # folded BN scale/bias
        + 2 * nbytes((H, W, Cp), jnp.bfloat16)            # output block, double-buffered
        + nbytes((H + 2, W + 32, Cp), jnp.bfloat16)       # mid_ref scratch
    )
    # ~3x headroom for in-kernel f32 accumulators / K-packed LHS temporaries;
    # clamp to [32 MiB, 64 MiB] so it is valid on every generation (v7x physical = 64 MiB).
    vmem_limit = int(min(64 * 1024 * 1024, max(32 * 1024 * 1024, 3 * block_bytes)))

    const = dict(pipeline_mode=pl.Buffered(1))   # fetched once; no wasted double-buffer
    out_nhwc = pl.pallas_call(
        basic_block_kernel,
        out_shape=jax.ShapeDtypeStruct((N, H, W, Cp), jnp.bfloat16),
        grid_spec=pltpu.PrefetchScalarGridSpec(
            num_scalar_prefetch=0,
            grid=(N,),
            in_specs=[
                pl.BlockSpec((None, H + 2, W + 2, Cp), lambda n: (n, 0, 0, 0)),
                pl.BlockSpec((3, 3 * Cp, Cp), lambda n: (0, 0, 0), **const),
                pl.BlockSpec((1, Cp), lambda n: (0, 0), **const),
                pl.BlockSpec((1, Cp), lambda n: (0, 0), **const),
                pl.BlockSpec((3, 3 * Cp, Cp), lambda n: (0, 0, 0), **const),
                pl.BlockSpec((1, Cp), lambda n: (0, 0), **const),
                pl.BlockSpec((1, Cp), lambda n: (0, 0), **const),
            ],
            out_specs=pl.BlockSpec((None, H, W, Cp), lambda n: (n, 0, 0, 0)),
            scratch_shapes=[pltpu.VMEM((H + 2, W + 32, Cp), jnp.bfloat16)],
        ),
        compiler_params=pltpu.CompilerParams(
            dimension_semantics=("parallel",),
            vmem_limit_bytes=vmem_limit,
        ),
    )(xp, w1, s1, b1, w2, s2, b2)

    # drop channel padding, NHWC -> NCHW, caller dtype
    return jnp.transpose(out_nhwc[..., :C], (0, 3, 1, 2)).astype(out_dtype)


def _reference(x_nchw, w1_oihw, g1, be1, rm1, rv1, w2_oihw, g2, be2, rm2, rv2, eps=1e-5):
    """Pure-JAX f32 reference (NCHW conv via lax.conv_general_dilated)."""
    def conv3x3(x, w):
        return lax.conv_general_dilated(
            x, w, window_strides=(1, 1), padding=((1, 1), (1, 1)),
            dimension_numbers=('NCHW', 'OIHW', 'NCHW'))

    def bn(x, g, b, rm, rv):
        g = g.reshape(1, -1, 1, 1); b = b.reshape(1, -1, 1, 1)
        rm = rm.reshape(1, -1, 1, 1); rv = rv.reshape(1, -1, 1, 1)
        return (x - rm) / jnp.sqrt(rv + eps) * g + b

    out = jnp.maximum(bn(conv3x3(x_nchw, w1_oihw), g1, be1, rm1, rv1), 0.0)
    out = bn(conv3x3(out, w2_oihw), g2, be2, rm2, rv2)
    return jnp.maximum(out + x_nchw, 0.0)


if __name__ == "__main__":
    key = jax.random.PRNGKey(0)
    N, C, H, W = 2, 4, 16, 16    # in_chans == out_chans, stride=1, atrous=1, downsample=None

    keys = jax.random.split(key, 7)
    x = jax.random.normal(keys[0], (N, C, H, W), jnp.float32)

    # conv weights, PyTorch OIHW shapes [C, C, 3, 3]
    w1 = jax.random.normal(keys[1], (C, C, 3, 3), jnp.float32) * 0.1
    w2 = jax.random.normal(keys[2], (C, C, 3, 3), jnp.float32) * 0.1

    # BatchNorm params (deterministic, non-trivial), PyTorch default running stats
    g1 = 1.0 + 0.1 * jax.random.normal(keys[3], (C,), jnp.float32)
    be1 = 0.1 * jax.random.normal(keys[4], (C,), jnp.float32)
    g2 = 1.0 + 0.1 * jax.random.normal(keys[5], (C,), jnp.float32)
    be2 = 0.1 * jax.random.normal(keys[6], (C,), jnp.float32)
    rm1 = jnp.zeros((C,), jnp.float32); rv1 = jnp.ones((C,), jnp.float32)
    rm2 = jnp.zeros((C,), jnp.float32); rv2 = jnp.ones((C,), jnp.float32)

    out = basic_block_forward(x, w1, g1, be1, rm1, rv1, w2, g2, be2, rm2, rv2)
    out = jax.block_until_ready(out)

    ref = _reference(x, w1, g1, be1, rm1, rv1, w2, g2, be2, rm2, rv2)
    assert out.shape == (N, C, H, W)
    # bf16 MXU operands + bf16 output vs f32 reference -> loosened tolerance
    max_err = jnp.max(jnp.abs(out - ref))
    assert jnp.allclose(out, ref, atol=5e-2, rtol=5e-2), \
        f"mismatch vs reference, max abs err={max_err}"

    print("KERNEL_OK")
</pallas_src>

<mosaic_0001>
module attributes {stable_mosaic.version = 11 : i64} {
  func.func @basic_block_kernel(%arg0: i32, %arg1: memref<1x18x18x128xbf16, #tpu.memory_space<vmem>>, %arg2: memref<3x384x128xbf16, #tpu.memory_space<vmem>>, %arg3: memref<1x128xf32, #tpu.memory_space<vmem>>, %arg4: memref<1x128xf32, #tpu.memory_space<vmem>>, %arg5: memref<3x384x128xbf16, #tpu.memory_space<vmem>>, %arg6: memref<1x128xf32, #tpu.memory_space<vmem>>, %arg7: memref<1x128xf32, #tpu.memory_space<vmem>>, %arg8: memref<1x16x16x128xbf16, #tpu.memory_space<vmem>>, %arg9: memref<18x48x128xbf16, #tpu.memory_space<vmem>>) attributes {dimension_semantics = [#tpu.dimension_semantics<parallel>], iteration_bounds = array<i64: 2>, scalar_prefetch = 0 : i64, scratch_operands = 1 : i64, tpu.core_type = #tpu.core_type<tc>, window_params = [{transform_indices = @transform_0, window_bounds = array<i64: 1, 18, 18, 128>}, {pipeline_mode = #tpu.pipeline_mode<synchronous>, transform_indices = @transform_1, window_bounds = array<i64: 3, 384, 128>}, {pipeline_mode = #tpu.pipeline_mode<synchronous>, transform_indices = @transform_2, window_bounds = array<i64: 1, 128>}, {pipeline_mode = #tpu.pipeline_mode<synchronous>, transform_indices = @transform_3, window_bounds = array<i64: 1, 128>}, {pipeline_mode = #tpu.pipeline_mode<synchronous>, transform_indices = @transform_4, window_bounds = array<i64: 3, 384, 128>}, {pipeline_mode = #tpu.pipeline_mode<synchronous>, transform_indices = @transform_5, window_bounds = array<i64: 1, 128>}, {pipeline_mode = #tpu.pipeline_mode<synchronous>, transform_indices = @transform_6, window_bounds = array<i64: 1, 128>}, {transform_indices = @transform_7, window_bounds = array<i64: 1, 16, 16, 128>}]} {
    %cst = arith.constant 0.000000e+00 : f32
    %0 = vector.broadcast %cst : f32 to vector<256x128xf32>
    %c0 = arith.constant 0 : index
    %c0_0 = arith.constant 0 : index
    %c0_1 = arith.constant 0 : index
    %c0_2 = arith.constant 0 : index
    %1 = vector.load %arg1[%c0, %c0_0, %c0_1, %c0_2] : memref<1x18x18x128xbf16, #tpu.memory_space<vmem>>, vector<1x18x16x128xbf16>
    %2 = vector.shape_cast %1 : vector<1x18x16x128xbf16> to vector<18x16x128xbf16>
    %3 = vector.shape_cast %2 : vector<18x16x128xbf16> to vector<288x128xbf16>
    %4 = vector.extract_strided_slice %3 {offsets = [0, 0], sizes = [256, 128], strides = [1, 1]} : vector<288x128xbf16> to vector<256x128xbf16>
    %5 = vector.extract_strided_slice %3 {offsets = [16, 0], sizes = [256, 128], strides = [1, 1]} : vector<288x128xbf16> to vector<256x128xbf16>
    %6 = vector.extract_strided_slice %3 {offsets = [32, 0], sizes = [256, 128], strides = [1, 1]} : vector<288x128xbf16> to vector<256x128xbf16>
    %7 = tpu.concatenate %4, %5, %6 in 1 : vector<256x128xbf16>, vector<256x128xbf16>, vector<256x128xbf16> -> vector<256x384xbf16>
    %c0_3 = arith.constant 0 : index
    %c0_4 = arith.constant 0 : index
    %c0_5 = arith.constant 0 : index
    %8 = vector.load %arg2[%c0_3, %c0_4, %c0_5] : memref<3x384x128xbf16, #tpu.memory_space<vmem>>, vector<1x384x128xbf16>
    %9 = vector.shape_cast %8 : vector<1x384x128xbf16> to vector<384x128xbf16>
    %cst_6 = arith.constant dense<0.000000e+00> : vector<256x128xf32>
    %10 = tpu.matmul %7, %9, %cst_6 {dimension_numbers = #tpu.dot_dimension_numbers<[1], [0], [0], [1], [0, 0, 1, 1], [], []>} : vector<256x384xbf16>, vector<384x128xbf16>, vector<256x128xf32> -> vector<256x128xf32>
    %11 = arith.addf %0, %10 : vector<256x128xf32>
    %c0_7 = arith.constant 0 : index
    %c0_8 = arith.constant 0 : index
    %c1 = arith.constant 1 : index
    %c0_9 = arith.constant 0 : index
    %12 = vector.load %arg1[%c0_7, %c0_8, %c1, %c0_9] : memref<1x18x18x128xbf16, #tpu.memory_space<vmem>>, vector<1x18x16x128xbf16>
    %13 = vector.shape_cast %12 : vector<1x18x16x128xbf16> to vector<18x16x128xbf16>
    %14 = vector.shape_cast %13 : vector<18x16x128xbf16> to vector<288x128xbf16>
    %15 = vector.extract_strided_slice %14 {offsets = [0, 0], sizes = [256, 128], strides = [1, 1]} : vector<288x128xbf16> to vector<256x128xbf16>
    %16 = vector.extract_strided_slice %14 {offsets = [16, 0], sizes = [256, 128], strides = [1, 1]} : vector<288x128xbf16> to vector<256x128xbf16>
    %17 = vector.extract_strided_slice %14 {offsets = [32, 0], sizes = [256, 128], strides = [1, 1]} : vector<288x128xbf16> to vector<256x128xbf16>
    %18 = tpu.concatenate %15, %16, %17 in 1 : vector<256x128xbf16>, vector<256x128xbf16>, vector<256x128xbf16> -> vector<256x384xbf16>
    %c1_10 = arith.constant 1 : index
    %c0_11 = arith.constant 0 : index
    %c0_12 = arith.constant 0 : index
    %19 = vector.load %arg2[%c1_10, %c0_11, %c0_12] : memref<3x384x128xbf16, #tpu.memory_space<vmem>>, vector<1x384x128xbf16>
    %20 = vector.shape_cast %19 : vector<1x384x128xbf16> to vector<384x128xbf16>
    %cst_13 = arith.constant dense<0.000000e+00> : vector<256x128xf32>
    %21 = tpu.matmul %18, %20, %cst_13 {dimension_numbers = #tpu.dot_dimension_numbers<[1], [0], [0], [1], [0, 0, 1, 1], [], []>} : vector<256x384xbf16>, vector<384x128xbf16>, vector<256x128xf32> -> vector<256x128xf32>
    %22 = arith.addf %11, %21 : vector<256x128xf32>
    %c0_14 = arith.constant 0 : index
    %c0_15 = arith.constant 0 : index
    %c2 = arith.constant 2 : index
    %c0_16 = arith.constant 0 : index
    %23 = vector.load %arg1[%c0_14, %c0_15, %c2, %c0_16] : memref<1x18x18x128xbf16, #tpu.memory_space<vmem>>, vector<1x18x16x128xbf16>
    %24 = vector.shape_cast %23 : vector<1x18x16x128xbf16> to vector<18x16x128xbf16>
    %25 = vector.shape_cast %24 : vector<18x16x128xbf16> to vector<288x128xbf16>
    %26 = vector.extract_strided_slice %25 {offsets = [0, 0], sizes = [256, 128], strides = [1, 1]} : vector<288x128xbf16> to vector<256x128xbf16>
    %27 = vector.extract_strided_slice %25 {offsets = [16, 0], sizes = [256, 128], strides = [1, 1]} : vector<288x128xbf16> to vector<256x128xbf16>
    %28 = vector.extract_strided_slice %25 {offsets = [32, 0], sizes = [256, 128], strides = [1, 1]} : vector<288x128xbf16> to vector<256x128xbf16>
    %29 = tpu.concatenate %26, %27, %28 in 1 : vector<256x128xbf16>, vector<256x128xbf16>, vector<256x128xbf16> -> vector<256x384xbf16>
    %c2_17 = arith.constant 2 : index
    %c0_18 = arith.constant 0 : index
    %c0_19 = arith.constant 0 : index
    %30 = vector.load %arg2[%c2_17, %c0_18, %c0_19] : memref<3x384x128xbf16, #tpu.memory_space<vmem>>, vector<1x384x128xbf16>
    %31 = vector.shape_cast %30 : vector<1x384x128xbf16> to vector<384x128xbf16>
    %cst_20 = arith.constant dense<0.000000e+00> : vector<256x128xf32>
    %32 = tpu.matmul %29, %31, %cst_20 {dimension_numbers = #tpu.dot_dimension_numbers<[1], [0], [0], [1], [0, 0, 1, 1], [], []>} : vector<256x384xbf16>, vector<384x128xbf16>, vector<256x128xf32> -> vector<256x128xf32>
    %33 = arith.addf %22, %32 : vector<256x128xf32>
    %c0_21 = arith.constant 0 : index
    %c0_22 = arith.constant 0 : index
    %34 = vector.load %arg3[%c0_21, %c0_22] : memref<1x128xf32, #tpu.memory_space<vmem>>, vector<1x128xf32>
    %35 = vector.broadcast %34 : vector<1x128xf32> to vector<256x128xf32>
    %36 = arith.mulf %33, %35 : vector<256x128xf32>
    %c0_23 = arith.constant 0 : index
    %c0_24 = arith.constant 0 : index
    %37 = vector.load %arg4[%c0_23, %c0_24] : memref<1x128xf32, #tpu.memory_space<vmem>>, vector<1x128xf32>
    %38 = vector.broadcast %37 : vector<1x128xf32> to vector<256x128xf32>
    %39 = arith.addf %36, %38 : vector<256x128xf32>
    %cst_25 = arith.constant 0.000000e+00 : f32
    %40 = vector.broadcast %cst_25 : f32 to vector<256x128xf32>
    %41 = arith.maximumf %39, %40 : vector<256x128xf32>
    %cst_26 = arith.constant 0.000000e+00 : bf16
    %42 = vector.broadcast %cst_26 : bf16 to vector<1x48x128xbf16>
    %cst_27 = arith.constant 0.000000e+00 : bf16
    %43 = vector.broadcast %cst_27 : bf16 to vector<18x1x128xbf16>
    %c0_28 = arith.constant 0 : index
    %c0_29 = arith.constant 0 : index
    %c0_30 = arith.constant 0 : index
    %44 = vector.load %arg9[%c0_28, %c0_29, %c0_30] : memref<18x48x128xbf16, #tpu.memory_space<vmem>>, vector<1x48x128xbf16>
    tpu.vector_store %arg9[%c0_28, %c0_29, %c0_30], %42 {strides = array<i32>} : memref<18x48x128xbf16, #tpu.memory_space<vmem>>, vector<1x48x128xbf16>,
    %c17 = arith.constant 17 : index
    %c0_31 = arith.constant 0 : index
    %c0_32 = arith.constant 0 : index
    %45 = vector.load %arg9[%c17, %c0_31, %c0_32] : memref<18x48x128xbf16, #tpu.memory_space<vmem>>, vector<1x48x128xbf16>
    tpu.vector_store %arg9[%c17, %c0_31, %c0_32], %42 {strides = array<i32>} : memref<18x48x128xbf16, #tpu.memory_space<vmem>>, vector<1x48x128xbf16>,
    %c0_33 = arith.constant 0 : index
    %c15 = arith.constant 15 : index
    %c0_34 = arith.constant 0 : index
    %46 = vector.load %arg9[%c0_33, %c15, %c0_34] : memref<18x48x128xbf16, #tpu.memory_space<vmem>>, vector<18x1x128xbf16>
    tpu.vector_store %arg9[%c0_33, %c15, %c0_34], %43 {strides = array<i32>} : memref<18x48x128xbf16, #tpu.memory_space<vmem>>, vector<18x1x128xbf16>,
    %c0_35 = arith.constant 0 : index
    %c32 = arith.constant 32 : index
    %c0_36 = arith.constant 0 : index
    %47 = vector.load %arg9[%c0_35, %c32, %c0_36] : memref<18x48x128xbf16, #tpu.memory_space<vmem>>, vector<18x1x128xbf16>
    tpu.vector_store %arg9[%c0_35, %c32, %c0_36], %43 {strides = array<i32>} : memref<18x48x128xbf16, #tpu.memory_space<vmem>>, vector<18x1x128xbf16>,
    %48 = arith.truncf %41 : vector<256x128xf32> to vector<256x128xbf16>
    %49 = vector.shape_cast %48 : vector<256x128xbf16> to vector<16x16x128xbf16>
    %c1_37 = arith.constant 1 : index
    %c16 = arith.constant 16 : index
    %c0_38 = arith.constant 0 : index
    %50 = vector.load %arg9[%c1_37, %c16, %c0_38] : memref<18x48x128xbf16, #tpu.memory_space<vmem>>, vector<16x16x128xbf16>
    tpu.vector_store %arg9[%c1_37, %c16, %c0_38], %49 {strides = array<i32>} : memref<18x48x128xbf16, #tpu.memory_space<vmem>>, vector<16x16x128xbf16>,
    %cst_39 = arith.constant 0.000000e+00 : f32
    %51 = vector.broadcast %cst_39 : f32 to vector<256x128xf32>
    %c0_40 = arith.constant 0 : index
    %c15_41 = arith.constant 15 : index
    %c0_42 = arith.constant 0 : index
    %52 = vector.load %arg9[%c0_40, %c15_41, %c0_42] : memref<18x48x128xbf16, #tpu.memory_space<vmem>>, vector<18x16x128xbf16>
    %53 = vector.shape_cast %52 : vector<18x16x128xbf16> to vector<288x128xbf16>
    %54 = vector.extract_strided_slice %53 {offsets = [0, 0], sizes = [256, 128], strides = [1, 1]} : vector<288x128xbf16> to vector<256x128xbf16>
    %55 = vector.extract_strided_slice %53 {offsets = [16, 0], sizes = [256, 128], strides = [1, 1]} : vector<288x128xbf16> to vector<256x128xbf16>
    %56 = vector.extract_strided_slice %53 {offsets = [32, 0], sizes = [256, 128], strides = [1, 1]} : vector<288x128xbf16> to vector<256x128xbf16>
    %57 = tpu.concatenate %54, %55, %56 in 1 : vector<256x128xbf16>, vector<256x128xbf16>, vector<256x128xbf16> -> vector<256x384xbf16>
    %c0_43 = arith.constant 0 : index
    %c0_44 = arith.constant 0 : index
    %c0_45 = arith.constant 0 : index
    %58 = vector.load %arg5[%c0_43, %c0_44, %c0_45] : memref<3x384x128xbf16, #tpu.memory_space<vmem>>, vector<1x384x128xbf16>
    %59 = vector.shape_cast %58 : vector<1x384x128xbf16> to vector<384x128xbf16>
    %cst_46 = arith.constant dense<0.000000e+00> : vector<256x128xf32>
    %60 = tpu.matmul %57, %59, %cst_46 {dimension_numbers = #tpu.dot_dimension_numbers<[1], [0], [0], [1], [0, 0, 1, 1], [], []>} : vector<256x384xbf16>, vector<384x128xbf16>, vector<256x128xf32> -> vector<256x128xf32>
    %61 = arith.addf %51, %60 : vector<256x128xf32>
    %c0_47 = arith.constant 0 : index
    %c16_48 = arith.constant 16 : index
    %c0_49 = arith.constant 0 : index
    %62 = vector.load %arg9[%c0_47, %c16_48, %c0_49] : memref<18x48x128xbf16, #tpu.memory_space<vmem>>, vector<18x16x128xbf16>
    %63 = vector.shape_cast %62 : vector<18x16x128xbf16> to vector<288x128xbf16>
    %64 = vector.extract_strided_slice %63 {offsets = [0, 0], sizes = [256, 128], strides = [1, 1]} : vector<288x128xbf16> to vector<256x128xbf16>
    %65 = vector.extract_strided_slice %63 {offsets = [16, 0], sizes = [256, 128], strides = [1, 1]} : vector<288x128xbf16> to vector<256x128xbf16>
    %66 = vector.extract_strided_slice %63 {offsets = [32, 0], sizes = [256, 128], strides = [1, 1]} : vector<288x128xbf16> to vector<256x128xbf16>
    %67 = tpu.concatenate %64, %65, %66 in 1 : vector<256x128xbf16>, vector<256x128xbf16>, vector<256x128xbf16> -> vector<256x384xbf16>
    %c1_50 = arith.constant 1 : index
    %c0_51 = arith.constant 0 : index
    %c0_52 = arith.constant 0 : index
    %68 = vector.load %arg5[%c1_50, %c0_51, %c0_52] : memref<3x384x128xbf16, #tpu.memory_space<vmem>>, vector<1x384x128xbf16>
    %69 = vector.shape_cast %68 : vector<1x384x128xbf16> to vector<384x128xbf16>
    %cst_53 = arith.constant dense<0.000000e+00> : vector<256x128xf32>
    %70 = tpu.matmul %67, %69, %cst_53 {dimension_numbers = #tpu.dot_dimension_numbers<[1], [0], [0], [1], [0, 0, 1, 1], [], []>} : vector<256x384xbf16>, vector<384x128xbf16>, vector<256x128xf32> -> vector<256x128xf32>
    %71 = arith.addf %61, %70 : vector<256x128xf32>
    %c0_54 = arith.constant 0 : index
    %c17_55 = arith.constant 17 : index
    %c0_56 = arith.constant 0 : index
    %72 = vector.load %arg9[%c0_54, %c17_55, %c0_56] : memref<18x48x128xbf16, #tpu.memory_space<vmem>>, vector<18x16x128xbf16>
    %73 = vector.shape_cast %72 : vector<18x16x128xbf16> to vector<288x128xbf16>
    %74 = vector.extract_strided_slice %73 {offsets = [0, 0], sizes = [256, 128], strides = [1, 1]} : vector<288x128xbf16> to vector<256x128xbf16>
    %75 = vector.extract_strided_slice %73 {offsets = [16, 0], sizes = [256, 128], strides = [1, 1]} : vector<288x128xbf16> to vector<256x128xbf16>
    %76 = vector.extract_strided_slice %73 {offsets = [32, 0], sizes = [256, 128], strides = [1, 1]} : vector<288x128xbf16> to vector<256x128xbf16>
    %77 = tpu.concatenate %74, %75, %76 in 1 : vector<256x128xbf16>, vector<256x128xbf16>, vector<256x128xbf16> -> vector<256x384xbf16>
    %c2_57 = arith.constant 2 : index
    %c0_58 = arith.constant 0 : index
    %c0_59 = arith.constant 0 : index
    %78 = vector.load %arg5[%c2_57, %c0_58, %c0_59] : memref<3x384x128xbf16, #tpu.memory_space<vmem>>, vector<1x384x128xbf16>
    %79 = vector.shape_cast %78 : vector<1x384x128xbf16> to vector<384x128xbf16>
    %cst_60 = arith.constant dense<0.000000e+00> : vector<256x128xf32>
    %80 = tpu.matmul %77, %79, %cst_60 {dimension_numbers = #tpu.dot_dimension_numbers<[1], [0], [0], [1], [0, 0, 1, 1], [], []>} : vector<256x384xbf16>, vector<384x128xbf16>, vector<256x128xf32> -> vector<256x128xf32>
    %81 = arith.addf %71, %80 : vector<256x128xf32>
    %82 = vector.extract_strided_slice %14 {offsets = [16, 0], sizes = [256, 128], strides = [1, 1]} : vector<288x128xbf16> to vector<256x128xbf16>
    %83 = arith.extf %82 : vector<256x128xbf16> to vector<256x128xf32>
    %c0_61 = arith.constant 0 : index
    %c0_62 = arith.constant 0 : index
    %84 = vector.load %arg6[%c0_61, %c0_62] : memref<1x128xf32, #tpu.memory_space<vmem>>, vector<1x128xf32>
    %85 = vector.broadcast %84 : vector<1x128xf32> to vector<256x128xf32>
    %86 = arith.mulf %81, %85 : vector<256x128xf32>
    %c0_63 = arith.constant 0 : index
    %c0_64 = arith.constant 0 : index
    %87 = vector.load %arg7[%c0_63, %c0_64] : memref<1x128xf32, #tpu.memory_space<vmem>>, vector<1x128xf32>
    %88 = vector.broadcast %87 : vector<1x128xf32> to vector<256x128xf32>
    %89 = arith.addf %86, %88 : vector<256x128xf32>
    %90 = arith.addf %89, %83 : vector<256x128xf32>
    %cst_65 = arith.constant 0.000000e+00 : f32
    %91 = vector.broadcast %cst_65 : f32 to vector<256x128xf32>
    %92 = arith.maximumf %90, %91 : vector<256x128xf32>
    %93 = vector.shape_cast %92 : vector<256x128xf32> to vector<16x16x128xf32>
    %94 = arith.truncf %93 : vector<16x16x128xf32> to vector<16x16x128xbf16>
    %c0_66 = arith.constant 0 : index
    %c0_67 = arith.constant 0 : index
    %c0_68 = arith.constant 0 : index
    %c0_69 = arith.constant 0 : index
    %95 = vector.load %arg8[%c0_66, %c0_67, %c0_68, %c0_69] : memref<1x16x16x128xbf16, #tpu.memory_space<vmem>>, vector<1x16x16x128xbf16>
    %96 = vector.shape_cast %95 : vector<1x16x16x128xbf16> to vector<16x16x128xbf16>
    %97 = vector.shape_cast %94 : vector<16x16x128xbf16> to vector<1x16x16x128xbf16>
    tpu.vector_store %arg8[%c0_66, %c0_67, %c0_68, %c0_69], %97 {strides = array<i32>} : memref<1x16x16x128xbf16, #tpu.memory_space<vmem>>, vector<1x16x16x128xbf16>,
    return
  }
  func.func @transform_0(%arg0: i32) -> (i32, i32, i32, i32) {
    %c0_i32 = arith.constant 0 : i32
    %c0_i32_0 = arith.constant 0 : i32
    %c0_i32_1 = arith.constant 0 : i32
    %c0_i32_2 = arith.constant 0 : i32
    return %arg0, %c0_i32, %c0_i32_0, %c0_i32_1 : i32, i32, i32, i32
  }
  func.func @transform_1(%arg0: i32) -> (i32, i32, i32) {
    %c0_i32 = arith.constant 0 : i32
    %c0_i32_0 = arith.constant 0 : i32
    %c0_i32_1 = arith.constant 0 : i32
    %c0_i32_2 = arith.constant 0 : i32
    return %c0_i32, %c0_i32_0, %c0_i32_1 : i32, i32, i32
  }
  func.func @transform_2(%arg0: i32) -> (i32, i32) {
    %c0_i32 = arith.constant 0 : i32
    %c0_i32_0 = arith.constant 0 : i32
    %c0_i32_1 = arith.constant 0 : i32
    return %c0_i32, %c0_i32_0 : i32, i32
  }
  func.func @transform_3(%arg0: i32) -> (i32, i32) {
    %c0_i32 = arith.constant 0 : i32
    %c0_i32_0 = arith.constant 0 : i32
    %c0_i32_1 = arith.constant 0 : i32
    return %c0_i32, %c0_i32_0 : i32, i32
  }
  func.func @transform_4(%arg0: i32) -> (i32, i32, i32) {
    %c0_i32 = arith.constant 0 : i32
    %c0_i32_0 = arith.constant 0 : i32
    %c0_i32_1 = arith.constant 0 : i32
    %c0_i32_2 = arith.constant 0 : i32
    return %c0_i32, %c0_i32_0, %c0_i32_1 : i32, i32, i32
  }
  func.func @transform_5(%arg0: i32) -> (i32, i32) {
    %c0_i32 = arith.constant 0 : i32
    %c0_i32_0 = arith.constant 0 : i32
    %c0_i32_1 = arith.constant 0 : i32
    return %c0_i32, %c0_i32_0 : i32, i32
  }
  func.func @transform_6(%arg0: i32) -> (i32, i32) {
    %c0_i32 = arith.constant 0 : i32
    %c0_i32_0 = arith.constant 0 : i32
    %c0_i32_1 = arith.constant 0 : i32
    return %c0_i32, %c0_i32_0 : i32, i32
  }
  func.func @transform_7(%arg0: i32) -> (i32, i32, i32, i32) {
    %c0_i32 = arith.constant 0 : i32
    %c0_i32_0 = arith.constant 0 : i32
    %c0_i32_1 = arith.constant 0 : i32
    %c0_i32_2 = arith.constant 0 : i32
    return %arg0, %c0_i32, %c0_i32_0, %c0_i32_1 : i32, i32, i32, i32
  }
}

</mosaic_0001>

<llo_original>
// kernel: tpu_custom_call.1
$region0: #{tpu_custom_call.1}
  #allocation0 [shape = 'u32[]', space=smem, size = 0x4, offset = 0x4, fixed_abs, tag = 'smem constant byte address 0x4 - core index']
  #allocation1 [shape = 'u32[72,128]{1,0:T(1,128)}', space=vmem, size = 0x9000, scoped, tag = 'internal scratch']
  #allocation2 [shape = 'bf16[18,48,128]{2,1,0:T(8,128)(2,1)}', space=vmem, size = 0x36000, scoped, tag = 'scratch operand']
  %s0 = inlined_call_operand.vmem [shape: bf16[2,18,18,128], index: 0, kind: input, shape index: {}]
  %s1 = inlined_call_operand.vmem [shape: bf16[3,384,128], index: 1, kind: input, shape index: {}]
  %s2 = inlined_call_operand.vmem [shape: f32[1,128], index: 2, kind: input, shape index: {}]
  %s3 = inlined_call_operand.vmem [shape: f32[1,128], index: 3, kind: input, shape index: {}]
  %s4 = inlined_call_operand.hbm [shape: bf16[3,384,128], index: 4, kind: input, shape index: {}]
  %s5 = inlined_call_operand.vmem [shape: f32[1,128], index: 5, kind: input, shape index: {}]
  %s6 = inlined_call_operand.vmem [shape: f32[1,128], index: 6, kind: input, shape index: {}]
  %s7 = inlined_call_operand.hbm [shape: bf16[2,16,16,128], index: 7, kind: output, shape index: {}]
  %s8 = sld [smem:[#allocation0]]
  $region65: #{tpu_custom_call.1} parent=0
    _
  %s10 = ssub.s32 1, %s8
  %s11 = scalar_select 0, %s10, %s8
  $region1: #{tpu_custom_call.1} parent=0
    #allocation3 [shape = 'u8[294912]{0}', space=vmem, size = 0x48000, scoped, tag = 'input window, operand 4, single buffered']
    #allocation4 [shape = 's32[2]{0}', space=sflag, size = 0x8, scoped, tag = 'scoped memory for tpu_custom_call.1']
    #allocation5 [shape = 's32[2]{0}', space=sflag, size = 0x8, scoped, tag = 'scoped memory for tpu_custom_call.1']
    #allocation6 [shape = 'u8[131072]{0}', space=vmem, size = 0x20000, scoped, tag = 'output window, operand 0']
    %12 = vsyncpa [#allocation4], 0
    %13 = vsyncpa [#allocation5], 0
    %s14 = scalar_lea.sflag [#allocation5], 1
    %15 = vsyncpa %s14, 0
    loop: start=0, step=1, limit=4
    $region2: #{tpu_custom_call.1} parent=1 // loop_pre_header
      _
    $region3: #{tpu_custom_call.1} parent=1 // loop_header
      %s17 = sphi 0, %s21
      %p18 = scmp.ge.s32.totalorder %s17, 4
      %s27 = sphi 0, %s29
      %s30 = sphi 0, %s27
      %s31 = sphi 0, %s30
      %s47 = sphi 0, %s31
      %s51 = sphi 0, %s51
      %s53 = sphi 0, %s51
      %s54 = sphi 0, %s53
      %s68 = sphi 0, %s54
      %s72 = sphi 0, %s72
      %s74 = sphi 0, %s72
      %s75 = sphi 0, %s74
      %s89 = sphi 0, %s75
      %s93 = sphi 0, %s93
      %s95 = sphi 0, %s93
      %s96 = sphi 0, %s95
      %s110 = sphi 0, %s96
      %s114 = sphi 0, %s114
      %s116 = sphi 0, %s114
      %s117 = sphi 0, %s116
      %s131 = sphi 0, %s117
      %s135 = sphi 0, %s135
      %s137 = sphi 0, %s135
      %s138 = sphi 0, %s137
      %s152 = sphi 0, %s138
      %s156 = sphi 0, %s156
      %s158 = sphi 0, %s156
      %s159 = sphi 0, %s158
      %s173 = sphi 0, %s159
      %s179 = sphi 0, %s181
      %s182 = sphi 0, %s179
      %s183 = sphi 0, %s182
      %s199 = sphi 0, %s183
    $region4: #{tpu_custom_call.1} parent=1 // loop_header_branch
      %20 = sbr.rel (%p18) target = $region8
    $region5: #{tpu_custom_call.1} parent=1 // loop_body
      %s22 = ssub.s32 %s17, 1
      %s23 = ssub.s32 %s17, 2
      %s24 = sadd.s32 %s17, 1
      %s25 = ssub.s32 %s17, %s24
      %p26 = scmp.eq.s32.totalorder %s25, 0
      %s28 = sadd.s32 %s27, 1
      %s29 = scalar_select %p26, %s27, %s28
      %p32 = pneg %p26
      %p33 = scmp.eq.s32.totalorder %s17, 1
      %p34 = por %p32, %p33
      %p35 = scmp.ne.s32.totalorder %s27, %s30
      %p36 = scmp.eq.s32.totalorder %s17, 0
      %p37 = por %p35, %p36
      %p38 = scmp.ne.s32.totalorder %s27, %s30
      %p39 = scmp.eq.s32.totalorder %s22, 1
      %p40 = por %p38, %p39
      %p41 = scmp.ne.s32.totalorder %s30, %s31
      %p42 = scmp.eq.s32.totalorder %s22, 0
      %p43 = por %p41, %p42
      %p44 = scmp.ne.s32.totalorder %s30, %s31
      %p45 = scmp.eq.s32.totalorder %s23, 1
      %p46 = por %p44, %p45
      %p48 = scmp.ne.s32.totalorder %s31, %s47
      %p49 = scmp.eq.s32.totalorder %s23, 0
      %p50 = por %p48, %p49
      %s52 = sadd.s32 %s51, 1
      %p55 = scmp.eq.s32.totalorder %s17, 1
      %p56 = scmp.ne.s32.totalorder %s51, %s53
      %p57 = scmp.eq.s32.totalorder %s17, 0
      %p58 = por %p56, %p57
      %p59 = scmp.ne.s32.totalorder %s51, %s53
      %p60 = scmp.eq.s32.totalorder %s22, 1
      %p61 = por %p59, %p60
      %p62 = scmp.ne.s32.totalorder %s53, %s54
      %p63 = scmp.eq.s32.totalorder %s22, 0
      %p64 = por %p62, %p63
      %p65 = scmp.ne.s32.totalorder %s53, %s54
      %p66 = scmp.eq.s32.totalorder %s23, 1
      %p67 = por %p65, %p66
      %p69 = scmp.ne.s32.totalorder %s54, %s68
      %p70 = scmp.eq.s32.totalorder %s23, 0
      %p71 = por %p69, %p70
      %s73 = sadd.s32 %s72, 1
      %p76 = scmp.eq.s32.totalorder %s17, 1
      %p77 = scmp.ne.s32.totalorder %s72, %s74
      %p78 = scmp.eq.s32.totalorder %s17, 0
      %p79 = por %p77, %p78
      %p80 = scmp.ne.s32.totalorder %s72, %s74
      %p81 = scmp.eq.s32.totalorder %s22, 1
      %p82 = por %p80, %p81
      %p83 = scmp.ne.s32.totalorder %s74, %s75
      %p84 = scmp.eq.s32.totalorder %s22, 0
      %p85 = por %p83, %p84
      %p86 = scmp.ne.s32.totalorder %s74, %s75
      %p87 = scmp.eq.s32.totalorder %s23, 1
      %p88 = por %p86, %p87
      %p90 = scmp.ne.s32.totalorder %s75, %s89
      %p91 = scmp.eq.s32.totalorder %s23, 0
      %p92 = por %p90, %p91
      %s94 = sadd.s32 %s93, 1
      %p97 = scmp.eq.s32.totalorder %s17, 1
      %p98 = scmp.ne.s32.totalorder %s93, %s95
      %p99 = scmp.eq.s32.totalorder %s17, 0
      %p100 = por %p98, %p99
      %p101 = scmp.ne.s32.totalorder %s93, %s95
      %p102 = scmp.eq.s32.totalorder %s22, 1
      %p103 = por %p101, %p102
      %p104 = scmp.ne.s32.totalorder %s95, %s96
      %p105 = scmp.eq.s32.totalorder %s22, 0
      %p106 = por %p104, %p105
      %p107 = scmp.ne.s32.totalorder %s95, %s96
      %p108 = scmp.eq.s32.totalorder %s23, 1
      %p109 = por %p107, %p108
      %p111 = scmp.ne.s32.totalorder %s96, %s110
      %p112 = scmp.eq.s32.totalorder %s23, 0
      %p113 = por %p111, %p112
      %s115 = sadd.s32 %s114, 1
      %p118 = scmp.eq.s32.totalorder %s17, 1
      %p119 = scmp.ne.s32.totalorder %s114, %s116
      %p120 = scmp.eq.s32.totalorder %s17, 0
      %p121 = por %p119, %p120
      %p122 = scmp.ne.s32.totalorder %s114, %s116
      %p123 = scmp.eq.s32.totalorder %s22, 1
      %p124 = por %p122, %p123
      %p125 = scmp.ne.s32.totalorder %s116, %s117
      %p126 = scmp.eq.s32.totalorder %s22, 0
      %p127 = por %p125, %p126
      %p128 = scmp.ne.s32.totalorder %s116, %s117
      %p129 = scmp.eq.s32.totalorder %s23, 1
      %p130 = por %p128, %p129
      %p132 = scmp.ne.s32.totalorder %s117, %s131
      %p133 = scmp.eq.s32.totalorder %s23, 0
      %p134 = por %p132, %p133
      %s136 = sadd.s32 %s135, 1
      %p139 = scmp.eq.s32.totalorder %s17, 1
      %p140 = scmp.ne.s32.totalorder %s135, %s137
      %p141 = scmp.eq.s32.totalorder %s17, 0
      %p142 = por %p140, %p141
      %p143 = scmp.ne.s32.totalorder %s135, %s137
      %p144 = scmp.eq.s32.totalorder %s22, 1
      %p145 = por %p143, %p144
      %p146 = scmp.ne.s32.totalorder %s137, %s138
      %p147 = scmp.eq.s32.totalorder %s22, 0
      %p148 = por %p146, %p147
      %p149 = scmp.ne.s32.totalorder %s137, %s138
      %p150 = scmp.eq.s32.totalorder %s23, 1
      %p151 = por %p149, %p150
      %p153 = scmp.ne.s32.totalorder %s138, %s152
      %p154 = scmp.eq.s32.totalorder %s23, 0
      %p155 = por %p153, %p154
      %s157 = sadd.s32 %s156, 1
      %p160 = scmp.eq.s32.totalorder %s17, 1
      %p161 = scmp.ne.s32.totalorder %s156, %s158
      %p162 = scmp.eq.s32.totalorder %s17, 0
      %p163 = por %p161, %p162
      %p164 = scmp.ne.s32.totalorder %s156, %s158
      %p165 = scmp.eq.s32.totalorder %s22, 1
      %p166 = por %p164, %p165
      %p167 = scmp.ne.s32.totalorder %s158, %s159
      %p168 = scmp.eq.s32.totalorder %s22, 0
      %p169 = por %p167, %p168
      %p170 = scmp.ne.s32.totalorder %s158, %s159
      %p171 = scmp.eq.s32.totalorder %s23, 1
      %p172 = por %p170, %p171
      %p174 = scmp.ne.s32.totalorder %s159, %s173
      %p175 = scmp.eq.s32.totalorder %s23, 0
      %p176 = por %p174, %p175
      %s177 = ssub.s32 %s17, %s24
      %p178 = scmp.eq.s32.totalorder %s177, 0
      %s180 = sadd.s32 %s179, 1
      %s181 = scalar_select %p178, %s179, %s180
      %p184 = pneg %p178
      %p185 = scmp.eq.s32.totalorder %s17, 1
      %p186 = por %p184, %p185
      %p187 = scmp.ne.s32.totalorder %s179, %s182
      %p188 = scmp.eq.s32.totalorder %s17, 0
      %p189 = por %p187, %p188
      %p190 = scmp.ne.s32.totalorder %s179, %s182
      %p191 = scmp.eq.s32.totalorder %s22, 1
      %p192 = por %p190, %p191
      %p193 = scmp.ne.s32.totalorder %s182, %s183
      %p194 = scmp.eq.s32.totalorder %s22, 0
      %p195 = por %p193, %p194
      %p196 = scmp.ne.s32.totalorder %s182, %s183
      %p197 = scmp.eq.s32.totalorder %s23, 1
      %p198 = por %p196, %p197
      %p200 = scmp.ne.s32.totalorder %s183, %s199
      %p201 = scmp.eq.s32.totalorder %s23, 0
      %p202 = por %p200, %p201
      %p203 = scmp.le.s32.totalorder 1, %s17
      %p204 = scmp.lt.s32.totalorder %s17, 3
      %p205 = pnand %p203, %p204
      %p206 = pneg %p205
      // Predicated region
      $region9: #{tpu_custom_call.1} parent=5 // pred_check
        _
      $region10: #{tpu_custom_call.1} parent=5 // pred_check_branch
        %208 = sbr.rel (%p205) target = $region12
      $region11: #{tpu_custom_call.1} parent=5 // pred_region
        %s209 = ssub.s32 %s17, 1
        // Predicated region
        $region13: #{tpu_custom_call.1} parent=11 // pred_check
          %p210 = pneg %p64
        $region14: #{tpu_custom_call.1} parent=11 // pred_check_branch
          %212 = sbr.rel (%p210) target = $region16
        $region15: #{tpu_custom_call.1} parent=11 // pred_region
          _
        $region16: #{tpu_custom_call.1} parent=11 // pred_fallthru
          _
        // Predicated region
        $region17: #{tpu_custom_call.1} parent=11 // pred_check
          %p213 = pneg %p85
        $region18: #{tpu_custom_call.1} parent=11 // pred_check_branch
          %215 = sbr.rel (%p213) target = $region20
        $region19: #{tpu_custom_call.1} parent=11 // pred_region
          _
        $region20: #{tpu_custom_call.1} parent=11 // pred_fallthru
          _
        // Predicated region
        $region21: #{tpu_custom_call.1} parent=11 // pred_check
          %p216 = pneg %p106
        $region22: #{tpu_custom_call.1} parent=11 // pred_check_branch
          %218 = sbr.rel (%p216) target = $region24
        $region23: #{tpu_custom_call.1} parent=11 // pred_region
          _
        $region24: #{tpu_custom_call.1} parent=11 // pred_fallthru
          _
        // Predicated region
        $region25: #{tpu_custom_call.1} parent=11 // pred_check
          %p219 = pneg %p127
        $region26: #{tpu_custom_call.1} parent=11 // pred_check_branch
          %221 = sbr.rel (%p219) target = $region28
        $region27: #{tpu_custom_call.1} parent=11 // pred_region
          %223 = vsyncadd [#allocation4], 0
          %s224 = sshll.u32 %s4, 4
          %s225 = int_to_ptr.hbm [resolvable:$true] %s224
          %s226 = sshll.u32 [#allocation3], 4
          %s227 = int_to_ptr.vmem [resolvable:$true] %s226
          %232 = dma.hbm_to_vmem [thread:$0]  %s225, 9216, %s227, [#allocation4], 64, 64, 4
        $region28: #{tpu_custom_call.1} parent=11 // pred_fallthru
          _
        // Predicated region
        $region29: #{tpu_custom_call.1} parent=11 // pred_check
          %p233 = pneg %p148
        $region30: #{tpu_custom_call.1} parent=11 // pred_check_branch
          %235 = sbr.rel (%p233) target = $region32
        $region31: #{tpu_custom_call.1} parent=11 // pred_region
          _
        $region32: #{tpu_custom_call.1} parent=11 // pred_fallthru
          _
        // Predicated region
        $region33: #{tpu_custom_call.1} parent=11 // pred_check
          %p236 = pneg %p169
        $region34: #{tpu_custom_call.1} parent=11 // pred_check_branch
          %238 = sbr.rel (%p236) target = $region36
        $region35: #{tpu_custom_call.1} parent=11 // pred_region
          _
        $region36: #{tpu_custom_call.1} parent=11 // pred_fallthru
          _
      $region12: #{tpu_custom_call.1} parent=5 // pred_fallthru
        _
      %p239 = scmp.lt.s32.totalorder %s17, 2
      // Predicated region
      $region37: #{tpu_custom_call.1} parent=5 // pred_check
        %p240 = pneg %p239
      $region38: #{tpu_custom_call.1} parent=5 // pred_check_branch
        %242 = sbr.rel (%p240) target = $region40
      $region39: #{tpu_custom_call.1} parent=5 // pred_region
        // Predicated region
        $region41: #{tpu_custom_call.1} parent=39 // pred_check
          %p243 = pneg %p37
        $region42: #{tpu_custom_call.1} parent=39 // pred_check_branch
          %245 = sbr.rel (%p243) target = $region44
        $region43: #{tpu_custom_call.1} parent=39 // pred_region
          %p246 = scmp.lt.s32.totalorder %s17, 1
          %s247 = scalar_select %p246, %s17, 1
          %s248 = smul.addr %s247, 54
          %s249 = smul.addr %s248, 4
          %s250 = scalar_lea.vmem %s0, %s249
        $region44: #{tpu_custom_call.1} parent=39 // pred_fallthru
          _
      $region40: #{tpu_custom_call.1} parent=5 // pred_fallthru
        _
      %p251 = scmp.le.s32.totalorder 1, %s17
      %p252 = scmp.lt.s32.totalorder %s17, 3
      %p253 = pnand %p251, %p252
      %p254 = pneg %p253
      // Predicated region
      $region45: #{tpu_custom_call.1} parent=5 // pred_check
        _
      $region46: #{tpu_custom_call.1} parent=5 // pred_check_branch
        %256 = sbr.rel (%p253) target = $region48
      $region47: #{tpu_custom_call.1} parent=5 // pred_region
        %s257 = ssub.s32 %s17, 1
        // Predicated region
        $region49: #{tpu_custom_call.1} parent=47 // pred_check
          %p258 = pneg %p127
        $region50: #{tpu_custom_call.1} parent=47 // pred_check_branch
          %260 = sbr.rel (%p258) target = $region52
        $region51: #{tpu_custom_call.1} parent=47 // pred_region
          %262 = dma.done [#allocation4], 9216
        $region52: #{tpu_custom_call.1} parent=47 // pred_fallthru
          _
        %p263 = scmp.lt.s32.totalorder %s22, 1
        %s264 = scalar_select %p263, %s22, 1
        %s265 = smul.addr %s264, 54
        %s266 = smul.addr %s265, 4
        %s267 = scalar_lea.vmem %s0, %s266
        %p268 = pneg %p43
        %p269 = pneg %p40
        %p270 = pneg %p64
        %p271 = pneg %p61
        %p272 = pneg %p85
        %p273 = pneg %p82
        %p274 = pneg %p106
        %p275 = pneg %p103
        %p276 = pneg %p127
        %p277 = pneg %p124
        %p278 = pneg %p148
        %p279 = pneg %p145
        %p280 = pneg %p169
        %p281 = pneg %p166
        %p282 = pneg %p195
        %p283 = pneg %p192
        %s284 = sand.u32 %s182, 1
        %s285 = scalar_lea.sflag [#allocation5], %s284
        %s286 = sand.u32 %s182, 1
        %s287 = smul.addr %s286, 128
        %s288 = scalar_lea.vmem [#allocation6], %s287
        %p289 = scmp.lt.s32.totalorder %s22, 1
        %s290 = scalar_select %p289, %s22, 1
        %s291 = smul.addr %s290, 54
        %s292 = smul.addr %s291, 4
        %s293 = scalar_lea.vmem %s0, %s292
        %v295 = vld [vmem:[%s293] sm:$0xf]
        %v296 = vld [vmem:[%s293 + $0x4] sm:$0xf]
        %v297 = vld [vmem:[%s293 + $0xc] sm:$0xf]
        %v298 = vld [vmem:[%s293 + $0x10] sm:$0xf]
        %v299 = vld [vmem:[%s293 + $0x18] sm:$0xf]
        %v300 = vld [vmem:[%s293 + $0x1c] sm:$0xf]
        %v301 = vld [vmem:[%s293 + $0x24] sm:$0xf]
        %v302 = vld [vmem:[%s293 + $0x28] sm:$0xf]
        %v303 = vld [vmem:[%s293 + $0x30] sm:$0xf]
        %v304 = vld [vmem:[%s293 + $0x34] sm:$0xf]
        %v305 = vld [vmem:[%s293 + $0x3c] sm:$0xf]
        %v306 = vld [vmem:[%s293 + $0x40] sm:$0xf]
        %v307 = vld [vmem:[%s293 + $0x48] sm:$0xf]
        %v308 = vld [vmem:[%s293 + $0x4c] sm:$0xf]
        %v309 = vld [vmem:[%s293 + $0x54] sm:$0xf]
        %v310 = vld [vmem:[%s293 + $0x58] sm:$0xf]
        %v311 = vld [vmem:[%s293 + $0x60] sm:$0xf]
        %v312 = vld [vmem:[%s293 + $0x64] sm:$0xf]
        %v313 = vld [vmem:[%s293 + $0x6c] sm:$0xf]
        %v314 = vld [vmem:[%s293 + $0x70] sm:$0xf]
        %v315 = vld [vmem:[%s293 + $0x78] sm:$0xf]
        %v316 = vld [vmem:[%s293 + $0x7c] sm:$0xf]
        %v317 = vld [vmem:[%s293 + $0x84] sm:$0xf]
        %v318 = vld [vmem:[%s293 + $0x88] sm:$0xf]
        %v319 = vld [vmem:[%s293 + $0x90] sm:$0xf]
        %v320 = vld [vmem:[%s293 + $0x94] sm:$0xf]
        %v321 = vld [vmem:[%s293 + $0x9c] sm:$0xf]
        %v322 = vld [vmem:[%s293 + $0xa0] sm:$0xf]
        %v323 = vld [vmem:[%s293 + $0xa8] sm:$0xf]
        %v324 = vld [vmem:[%s293 + $0xac] sm:$0xf]
        %v325 = vld [vmem:[%s293 + $0xb4] sm:$0xf]
        %v326 = vld [vmem:[%s293 + $0xb8] sm:$0xf]
        %v327 = vld [vmem:[%s293 + $0xc0] sm:$0xf]
        %v328 = vld [vmem:[%s293 + $0xc4] sm:$0xf]
        %v329 = vld [vmem:[%s293 + $0xcc] sm:$0xf]
        %v330 = vld [vmem:[%s293 + $0xd0] sm:$0xf]
        %v363 = vunpack.c.l.b16 %v295
        %v364 = vunpack.c.l.b16 %v296
        %v365 = vunpack.c.l.b16 %v297
        %v366 = vunpack.c.l.b16 %v298
        %v367 = vunpack.c.l.b16 %v299
        %v368 = vunpack.c.l.b16 %v300
        %v369 = vunpack.c.l.b16 %v301
        %v370 = vunpack.c.l.b16 %v302
        %v371 = vunpack.c.l.b16 %v303
        %v372 = vunpack.c.l.b16 %v304
        %v373 = vunpack.c.l.b16 %v305
        %v374 = vunpack.c.l.b16 %v306
        %v375 = vunpack.c.l.b16 %v307
        %v376 = vunpack.c.l.b16 %v308
        %v377 = vunpack.c.l.b16 %v309
        %v378 = vunpack.c.l.b16 %v310
        %v379 = vunpack.c.l.b16 %v311
        %v380 = vunpack.c.l.b16 %v312
        %v381 = vunpack.c.l.b16 %v313
        %v382 = vunpack.c.l.b16 %v314
        %v383 = vunpack.c.l.b16 %v315
        %v384 = vunpack.c.l.b16 %v316
        %v385 = vunpack.c.l.b16 %v317
        %v386 = vunpack.c.l.b16 %v318
        %v387 = vunpack.c.l.b16 %v319
        %v388 = vunpack.c.l.b16 %v320
        %v389 = vunpack.c.l.b16 %v321
        %v390 = vunpack.c.l.b16 %v322
        %v391 = vunpack.c.l.b16 %v323
        %v392 = vunpack.c.l.b16 %v324
        %v393 = vunpack.c.l.b16 %v325
        %v394 = vunpack.c.l.b16 %v326
        %v395 = vpack.c.b16 %v364, %v363
        %v396 = vpack.c.b16 %v366, %v365
        %v397 = vpack.c.b16 %v368, %v367
        %v398 = vpack.c.b16 %v370, %v369
        %v399 = vpack.c.b16 %v372, %v371
        %v400 = vpack.c.b16 %v374, %v373
        %v401 = vpack.c.b16 %v376, %v375
        %v402 = vpack.c.b16 %v378, %v377
        %v403 = vpack.c.b16 %v380, %v379
        %v404 = vpack.c.b16 %v382, %v381
        %v405 = vpack.c.b16 %v384, %v383
        %v406 = vpack.c.b16 %v386, %v385
        %v407 = vpack.c.b16 %v388, %v387
        %v408 = vpack.c.b16 %v390, %v389
        %v409 = vpack.c.b16 %v392, %v391
        %v410 = vpack.c.b16 %v394, %v393
        %v429 = vunpack.c.l.b16 %v327
        %v430 = vunpack.c.l.b16 %v328
        %v431 = vpack.c.b16 %v430, %v429
        %v435 = vunpack.c.l.b16 %v329
        %v436 = vunpack.c.l.b16 %v330
        %v437 = vpack.c.b16 %v436, %v435
        %v439 = vld [vmem:[%s1] sm:$0xf]
        %v440 = vld [vmem:[%s1 + $0x4] sm:$0xf]
        %v441 = vld [vmem:[%s1 + $0x8] sm:$0xf]
        %v442 = vld [vmem:[%s1 + $0xc] sm:$0xf]
        %v443 = vld [vmem:[%s1 + $0x10] sm:$0xf]
        %v444 = vld [vmem:[%s1 + $0x14] sm:$0xf]
        %v445 = vld [vmem:[%s1 + $0x18] sm:$0xf]
        %v446 = vld [vmem:[%s1 + $0x1c] sm:$0xf]
        %v447 = vld [vmem:[%s1 + $0x20] sm:$0xf]
        %v448 = vld [vmem:[%s1 + $0x24] sm:$0xf]
        %v449 = vld [vmem:[%s1 + $0x28] sm:$0xf]
        %v450 = vld [vmem:[%s1 + $0x2c] sm:$0xf]
        %v451 = vld [vmem:[%s1 + $0x30] sm:$0xf]
        %v452 = vld [vmem:[%s1 + $0x34] sm:$0xf]
        %v453 = vld [vmem:[%s1 + $0x38] sm:$0xf]
        %v454 = vld [vmem:[%s1 + $0x3c] sm:$0xf]
        %v455 = vld [vmem:[%s1 + $0x40] sm:$0xf]
        %v456 = vld [vmem:[%s1 + $0x44] sm:$0xf]
        %v457 = vld [vmem:[%s1 + $0x48] sm:$0xf]
        %v458 = vld [vmem:[%s1 + $0x4c] sm:$0xf]
        %v459 = vld [vmem:[%s1 + $0x50] sm:$0xf]
        %v460 = vld [vmem:[%s1 + $0x54] sm:$0xf]
        %v461 = vld [vmem:[%s1 + $0x58] sm:$0xf]
        %v462 = vld [vmem:[%s1 + $0x5c] sm:$0xf]
        %v463 = vld [vmem:[%s1 + $0x60] sm:$0xf]
        %v464 = vld [vmem:[%s1 + $0x64] sm:$0xf]
        %v465 = vld [vmem:[%s1 + $0x68] sm:$0xf]
        %v466 = vld [vmem:[%s1 + $0x6c] sm:$0xf]
        %v467 = vld [vmem:[%s1 + $0x70] sm:$0xf]
        %v468 = vld [vmem:[%s1 + $0x74] sm:$0xf]
        %v469 = vld [vmem:[%s1 + $0x78] sm:$0xf]
        %v470 = vld [vmem:[%s1 + $0x7c] sm:$0xf]
        %v471 = vld [vmem:[%s1 + $0x80] sm:$0xf]
        %v472 = vld [vmem:[%s1 + $0x84] sm:$0xf]
        %v473 = vld [vmem:[%s1 + $0x88] sm:$0xf]
        %v474 = vld [vmem:[%s1 + $0x8c] sm:$0xf]
        %v475 = vld [vmem:[%s1 + $0x90] sm:$0xf]
        %v476 = vld [vmem:[%s1 + $0x94] sm:$0xf]
        %v477 = vld [vmem:[%s1 + $0x98] sm:$0xf]
        %v478 = vld [vmem:[%s1 + $0x9c] sm:$0xf]
        %v479 = vld [vmem:[%s1 + $0xa0] sm:$0xf]
        %v480 = vld [vmem:[%s1 + $0xa4] sm:$0xf]
        %v481 = vld [vmem:[%s1 + $0xa8] sm:$0xf]
        %v482 = vld [vmem:[%s1 + $0xac] sm:$0xf]
        %v483 = vld [vmem:[%s1 + $0xb0] sm:$0xf]
        %v484 = vld [vmem:[%s1 + $0xb4] sm:$0xf]
        %v485 = vld [vmem:[%s1 + $0xb8] sm:$0xf]
        %v486 = vld [vmem:[%s1 + $0xbc] sm:$0xf]
        %v487 = vld [vmem:[%s293 + $0x8] sm:$0x1]
        %v488 = vld [vmem:[%s293 + $0x14] sm:$0x1]
        %v489 = vld [vmem:[%s293 + $0x20] sm:$0x1]
        %v490 = vld [vmem:[%s293 + $0x2c] sm:$0x1]
        %v491 = vld [vmem:[%s293 + $0x38] sm:$0x1]
        %v492 = vld [vmem:[%s293 + $0x44] sm:$0x1]
        %v493 = vld [vmem:[%s293 + $0x50] sm:$0x1]
        %v494 = vld [vmem:[%s293 + $0x5c] sm:$0x1]
        %v495 = vld [vmem:[%s293 + $0x68] sm:$0x1]
        %v496 = vld [vmem:[%s293 + $0x74] sm:$0x1]
        %v497 = vld [vmem:[%s293 + $0x80] sm:$0x1]
        %v498 = vld [vmem:[%s293 + $0x8c] sm:$0x1]
        %v499 = vld [vmem:[%s293 + $0x98] sm:$0x1]
        %v500 = vld [vmem:[%s293 + $0xa4] sm:$0x1]
        %v501 = vld [vmem:[%s293 + $0xb0] sm:$0x1]
        %v502 = vld [vmem:[%s293 + $0xbc] sm:$0x1]
        %v503 = vld [vmem:[%s293 + $0xc8] sm:$0x1]
        %v504 = vld [vmem:[%s293 + $0xd4] sm:$0x1]
        %vm505 = vsmask.f32 3328
        %vm506 = vsmask.f32 7440
        %vm507 = vmor %vm505, %vm506
        %v509 = vshrl.u32 %v295, 16
        %v511 = vrot.slane %v509, 4
        %v512 = vshll.u32 %v295, 16
        %v514 = vrot.slane %v512, 5
        %v515 = vor.u32 %v511, %v514
        %v516 = vrot.slane %v515, 4
        %v518 = vshll.u32 %v296, 16
        %v520 = vrot.slane %v518, 5
        %v521 = vsel %vm507, %v516, %v520
        %v522 = vshrl.u32 %v296, 16
        %v524 = vrot.slane %v522, 4
        %v525 = vor.u32 %v524, %v520
        %v526 = vrot.slane %v525, 4
        %v528 = vshll.u32 %v487, 16
        %v530 = vrot.slane %v528, 5
        %v531 = vsel %vm507, %v526, %v530
        %v533 = vshrl.u32 %v297, 16
        %v535 = vrot.slane %v533, 4
        %v536 = vshll.u32 %v297, 16
        %v538 = vrot.slane %v536, 5
        %v539 = vor.u32 %v535, %v538
        %v540 = vrot.slane %v539, 4
        %v542 = vshll.u32 %v298, 16
        %v544 = vrot.slane %v542, 5
        %v545 = vsel %vm507, %v540, %v544
        %v546 = vshrl.u32 %v298, 16
        %v548 = vrot.slane %v546, 4
        %v549 = vor.u32 %v548, %v544
        %v550 = vrot.slane %v549, 4
        %v552 = vshll.u32 %v488, 16
        %v554 = vrot.slane %v552, 5
        %v555 = vsel %vm507, %v550, %v554
        %v557 = vshrl.u32 %v299, 16
        %v559 = vrot.slane %v557, 4
        %v560 = vshll.u32 %v299, 16
        %v562 = vrot.slane %v560, 5
        %v563 = vor.u32 %v559, %v562
        %v564 = vrot.slane %v563, 4
        %v566 = vshll.u32 %v300, 16
        %v568 = vrot.slane %v566, 5
        %v569 = vsel %vm507, %v564, %v568
        %v570 = vshrl.u32 %v300, 16
        %v572 = vrot.slane %v570, 4
        %v573 = vor.u32 %v572, %v568
        %v574 = vrot.slane %v573, 4
        %v576 = vshll.u32 %v489, 16
        %v578 = vrot.slane %v576, 5
        %v579 = vsel %vm507, %v574, %v578
        %v581 = vshrl.u32 %v301, 16
        %v583 = vrot.slane %v581, 4
        %v584 = vshll.u32 %v301, 16
        %v586 = vrot.slane %v584, 5
        %v587 = vor.u32 %v583, %v586
        %v588 = vrot.slane %v587, 4
        %v590 = vshll.u32 %v302, 16
        %v592 = vrot.slane %v590, 5
        %v593 = vsel %vm507, %v588, %v592
        %v594 = vshrl.u32 %v302, 16
        %v596 = vrot.slane %v594, 4
        %v597 = vor.u32 %v596, %v592
        %v598 = vrot.slane %v597, 4
        %v600 = vshll.u32 %v490, 16
        %v602 = vrot.slane %v600, 5
        %v603 = vsel %vm507, %v598, %v602
        %v605 = vshrl.u32 %v303, 16
        %v607 = vrot.slane %v605, 4
        %v608 = vshll.u32 %v303, 16
        %v610 = vrot.slane %v608, 5
        %v611 = vor.u32 %v607, %v610
        %v612 = vrot.slane %v611, 4
        %v614 = vshll.u32 %v304, 16
        %v616 = vrot.slane %v614, 5
        %v617 = vsel %vm507, %v612, %v616
        %v618 = vshrl.u32 %v304, 16
        %v620 = vrot.slane %v618, 4
        %v621 = vor.u32 %v620, %v616
        %v622 = vrot.slane %v621, 4
        %v624 = vshll.u32 %v491, 16
        %v626 = vrot.slane %v624, 5
        %v627 = vsel %vm507, %v622, %v626
        %v629 = vshrl.u32 %v305, 16
        %v631 = vrot.slane %v629, 4
        %v632 = vshll.u32 %v305, 16
        %v634 = vrot.slane %v632, 5
        %v635 = vor.u32 %v631, %v634
        %v636 = vrot.slane %v635, 4
        %v638 = vshll.u32 %v306, 16
        %v640 = vrot.slane %v638, 5
        %v641 = vsel %vm507, %v636, %v640
        %v642 = vshrl.u32 %v306, 16
        %v644 = vrot.slane %v642, 4
        %v645 = vor.u32 %v644, %v640
        %v646 = vrot.slane %v645, 4
        %v648 = vshll.u32 %v492, 16
        %v650 = vrot.slane %v648, 5
        %v651 = vsel %vm507, %v646, %v650
        %v653 = vshrl.u32 %v307, 16
        %v655 = vrot.slane %v653, 4
        %v656 = vshll.u32 %v307, 16
        %v658 = vrot.slane %v656, 5
        %v659 = vor.u32 %v655, %v658
        %v660 = vrot.slane %v659, 4
        %v662 = vshll.u32 %v308, 16
        %v664 = vrot.slane %v662, 5
        %v665 = vsel %vm507, %v660, %v664
        %v666 = vshrl.u32 %v308, 16
        %v668 = vrot.slane %v666, 4
        %v669 = vor.u32 %v668, %v664
        %v670 = vrot.slane %v669, 4
        %v672 = vshll.u32 %v493, 16
        %v674 = vrot.slane %v672, 5
        %v675 = vsel %vm507, %v670, %v674
        %v677 = vshrl.u32 %v309, 16
        %v679 = vrot.slane %v677, 4
        %v680 = vshll.u32 %v309, 16
        %v682 = vrot.slane %v680, 5
        %v683 = vor.u32 %v679, %v682
        %v684 = vrot.slane %v683, 4
        %v686 = vshll.u32 %v310, 16
        %v688 = vrot.slane %v686, 5
        %v689 = vsel %vm507, %v684, %v688
        %v690 = vshrl.u32 %v310, 16
        %v692 = vrot.slane %v690, 4
        %v693 = vor.u32 %v692, %v688
        %v694 = vrot.slane %v693, 4
        %v696 = vshll.u32 %v494, 16
        %v698 = vrot.slane %v696, 5
        %v699 = vsel %vm507, %v694, %v698
        %v701 = vshrl.u32 %v311, 16
        %v703 = vrot.slane %v701, 4
        %v704 = vshll.u32 %v311, 16
        %v706 = vrot.slane %v704, 5
        %v707 = vor.u32 %v703, %v706
        %v708 = vrot.slane %v707, 4
        %v710 = vshll.u32 %v312, 16
        %v712 = vrot.slane %v710, 5
        %v713 = vsel %vm507, %v708, %v712
        %v714 = vshrl.u32 %v312, 16
        %v716 = vrot.slane %v714, 4
        %v717 = vor.u32 %v716, %v712
        %v718 = vrot.slane %v717, 4
        %v720 = vshll.u32 %v495, 16
        %v722 = vrot.slane %v720, 5
        %v723 = vsel %vm507, %v718, %v722
        %v725 = vshrl.u32 %v313, 16
        %v727 = vrot.slane %v725, 4
        %v728 = vshll.u32 %v313, 16
        %v730 = vrot.slane %v728, 5
        %v731 = vor.u32 %v727, %v730
        %v732 = vrot.slane %v731, 4
        %v734 = vshll.u32 %v314, 16
        %v736 = vrot.slane %v734, 5
        %v737 = vsel %vm507, %v732, %v736
        %v738 = vshrl.u32 %v314, 16
        %v740 = vrot.slane %v738, 4
        %v741 = vor.u32 %v740, %v736
        %v742 = vrot.slane %v741, 4
        %v744 = vshll.u32 %v496, 16
        %v746 = vrot.slane %v744, 5
        %v747 = vsel %vm507, %v742, %v746
        %v749 = vshrl.u32 %v315, 16
        %v751 = vrot.slane %v749, 4
        %v752 = vshll.u32 %v315, 16
        %v754 = vrot.slane %v752, 5
        %v755 = vor.u32 %v751, %v754
        %v756 = vrot.slane %v755, 4
        %v758 = vshll.u32 %v316, 16
        %v760 = vrot.slane %v758, 5
        %v761 = vsel %vm507, %v756, %v760
        %v762 = vshrl.u32 %v316, 16
        %v764 = vrot.slane %v762, 4
        %v765 = vor.u32 %v764, %v760
        %v766 = vrot.slane %v765, 4
        %v768 = vshll.u32 %v497, 16
        %v770 = vrot.slane %v768, 5
        %v771 = vsel %vm507, %v766, %v770
        %v773 = vshrl.u32 %v317, 16
        %v775 = vrot.slane %v773, 4
        %v776 = vshll.u32 %v317, 16
        %v778 = vrot.slane %v776, 5
        %v779 = vor.u32 %v775, %v778
        %v780 = vrot.slane %v779, 4
        %v782 = vshll.u32 %v318, 16
        %v784 = vrot.slane %v782, 5
        %v785 = vsel %vm507, %v780, %v784
        %v786 = vshrl.u32 %v318, 16
        %v788 = vrot.slane %v786, 4
        %v789 = vor.u32 %v788, %v784
        %v790 = vrot.slane %v789, 4
        %v792 = vshll.u32 %v498, 16
        %v794 = vrot.slane %v792, 5
        %v795 = vsel %vm507, %v790, %v794
        %v797 = vshrl.u32 %v319, 16
        %v799 = vrot.slane %v797, 4
        %v800 = vshll.u32 %v319, 16
        %v802 = vrot.slane %v800, 5
        %v803 = vor.u32 %v799, %v802
        %v804 = vrot.slane %v803, 4
        %v806 = vshll.u32 %v320, 16
        %v808 = vrot.slane %v806, 5
        %v809 = vsel %vm507, %v804, %v808
        %v810 = vshrl.u32 %v320, 16
        %v812 = vrot.slane %v810, 4
        %v813 = vor.u32 %v812, %v808
        %v814 = vrot.slane %v813, 4
        %v816 = vshll.u32 %v499, 16
        %v818 = vrot.slane %v816, 5
        %v819 = vsel %vm507, %v814, %v818
        %v821 = vshrl.u32 %v321, 16
        %v823 = vrot.slane %v821, 4
        %v824 = vshll.u32 %v321, 16
        %v826 = vrot.slane %v824, 5
        %v827 = vor.u32 %v823, %v826
        %v828 = vrot.slane %v827, 4
        %v830 = vshll.u32 %v322, 16
        %v832 = vrot.slane %v830, 5
        %v833 = vsel %vm507, %v828, %v832
        %v834 = vshrl.u32 %v322, 16
        %v836 = vrot.slane %v834, 4
        %v837 = vor.u32 %v836, %v832
        %v838 = vrot.slane %v837, 4
        %v840 = vshll.u32 %v500, 16
        %v842 = vrot.slane %v840, 5
        %v843 = vsel %vm507, %v838, %v842
        %v845 = vshrl.u32 %v323, 16
        %v847 = vrot.slane %v845, 4
        %v848 = vshll.u32 %v323, 16
        %v850 = vrot.slane %v848, 5
        %v851 = vor.u32 %v847, %v850
        %v852 = vrot.slane %v851, 4
        %v854 = vshll.u32 %v324, 16
        %v856 = vrot.slane %v854, 5
        %v857 = vsel %vm507, %v852, %v856
        %v858 = vshrl.u32 %v324, 16
        %v860 = vrot.slane %v858, 4
        %v861 = vor.u32 %v860, %v856
        %v862 = vrot.slane %v861, 4
        %v864 = vshll.u32 %v501, 16
        %v866 = vrot.slane %v864, 5
        %v867 = vsel %vm507, %v862, %v866
        %v869 = vshrl.u32 %v325, 16
        %v871 = vrot.slane %v869, 4
        %v872 = vshll.u32 %v325, 16
        %v874 = vrot.slane %v872, 5
        %v875 = vor.u32 %v871, %v874
        %v876 = vrot.slane %v875, 4
        %v878 = vshll.u32 %v326, 16
        %v880 = vrot.slane %v878, 5
        %v881 = vsel %vm507, %v876, %v880
        %v882 = vshrl.u32 %v326, 16
        %v884 = vrot.slane %v882, 4
        %v885 = vor.u32 %v884, %v880
        %v886 = vrot.slane %v885, 4
        %v888 = vshll.u32 %v502, 16
        %v890 = vrot.slane %v888, 5
        %v891 = vsel %vm507, %v886, %v890
        %v893 = vshrl.u32 %v327, 16
        %v895 = vrot.slane %v893, 4
        %v896 = vshll.u32 %v327, 16
        %v898 = vrot.slane %v896, 5
        %v899 = vor.u32 %v895, %v898
        %v900 = vrot.slane %v899, 4
        %v902 = vshll.u32 %v328, 16
        %v904 = vrot.slane %v902, 5
        %v905 = vsel %vm507, %v900, %v904
        %v906 = vshrl.u32 %v328, 16
        %v908 = vrot.slane %v906, 4
        %v909 = vor.u32 %v908, %v904
        %v910 = vrot.slane %v909, 4
        %v912 = vshll.u32 %v503, 16
        %v914 = vrot.slane %v912, 5
        %v915 = vsel %vm507, %v910, %v914
        %v917 = vshrl.u32 %v329, 16
        %v919 = vrot.slane %v917, 4
        %v920 = vshll.u32 %v329, 16
        %v922 = vrot.slane %v920, 5
        %v923 = vor.u32 %v919, %v922
        %v924 = vrot.slane %v923, 4
        %v926 = vshll.u32 %v330, 16
        %v928 = vrot.slane %v926, 5
        %v929 = vsel %vm507, %v924, %v928
        %v930 = vshrl.u32 %v330, 16
        %v932 = vrot.slane %v930, 4
        %v933 = vor.u32 %v932, %v928
        %v934 = vrot.slane %v933, 4
        %v936 = vshll.u32 %v504, 16
        %v938 = vrot.slane %v936, 5
        %v939 = vsel %vm507, %v934, %v938
        %v972 = vunpack.c.l.b16 %v521
        %v973 = vunpack.c.l.b16 %v531
        %v974 = vunpack.c.l.b16 %v545
        %v975 = vunpack.c.l.b16 %v555
        %v976 = vunpack.c.l.b16 %v569
        %v977 = vunpack.c.l.b16 %v579
        %v978 = vunpack.c.l.b16 %v593
        %v979 = vunpack.c.l.b16 %v603
        %v980 = vunpack.c.l.b16 %v617
        %v981 = vunpack.c.l.b16 %v627
        %v982 = vunpack.c.l.b16 %v641
        %v983 = vunpack.c.l.b16 %v651
        %v984 = vunpack.c.l.b16 %v665
        %v985 = vunpack.c.l.b16 %v675
        %v986 = vunpack.c.l.b16 %v689
        %v987 = vunpack.c.l.b16 %v699
        %v988 = vunpack.c.l.b16 %v713
        %v989 = vunpack.c.l.b16 %v723
        %v990 = vunpack.c.l.b16 %v737
        %v991 = vunpack.c.l.b16 %v747
        %v992 = vunpack.c.l.b16 %v761
        %v993 = vunpack.c.l.b16 %v771
        %v994 = vunpack.c.l.b16 %v785
        %v995 = vunpack.c.l.b16 %v795
        %v996 = vunpack.c.l.b16 %v809
        %v997 = vunpack.c.l.b16 %v819
        %v998 = vunpack.c.l.b16 %v833
        %v999 = vunpack.c.l.b16 %v843
        %v1000 = vunpack.c.l.b16 %v857
        %v1001 = vunpack.c.l.b16 %v867
        %v1002 = vunpack.c.l.b16 %v881
        %v1003 = vunpack.c.l.b16 %v891
        %v1004 = vpack.c.b16 %v973, %v972
        %v1005 = vpack.c.b16 %v975, %v974
        %v1006 = vpack.c.b16 %v977, %v976
        %v1007 = vpack.c.b16 %v979, %v978
        %v1008 = vpack.c.b16 %v981, %v980
        %v1009 = vpack.c.b16 %v983, %v982
        %v1010 = vpack.c.b16 %v985, %v984
        %v1011 = vpack.c.b16 %v987, %v986
        %v1012 = vpack.c.b16 %v989, %v988
        %v1013 = vpack.c.b16 %v991, %v990
        %v1014 = vpack.c.b16 %v993, %v992
        %v1015 = vpack.c.b16 %v995, %v994
        %v1016 = vpack.c.b16 %v997, %v996
        %v1017 = vpack.c.b16 %v999, %v998
        %v1018 = vpack.c.b16 %v1001, %v1000
        %v1019 = vpack.c.b16 %v1003, %v1002
        %v1036 = vunpack.c.l.b16 %v905
        %v1037 = vunpack.c.l.b16 %v915
        %v1038 = vpack.c.b16 %v1037, %v1036
        %v1040 = vunpack.c.l.b16 %v929
        %v1041 = vunpack.c.l.b16 %v939
        %v1042 = vpack.c.b16 %v1041, %v1040
        %s1044 = scalar_lea.vmem %s1, 192
        %v1045 = vld [vmem:[%s1044] sm:$0xf]
        %v1046 = vld [vmem:[%s1044 + $0x4] sm:$0xf]
        %v1047 = vld [vmem:[%s1044 + $0x8] sm:$0xf]
        %v1048 = vld [vmem:[%s1044 + $0xc] sm:$0xf]
        %v1049 = vld [vmem:[%s1044 + $0x10] sm:$0xf]
        %v1050 = vld [vmem:[%s1044 + $0x14] sm:$0xf]
        %v1051 = vld [vmem:[%s1044 + $0x18] sm:$0xf]
        %v1052 = vld [vmem:[%s1044 + $0x1c] sm:$0xf]
        %v1053 = vld [vmem:[%s1044 + $0x20] sm:$0xf]
        %v1054 = vld [vmem:[%s1044 + $0x24] sm:$0xf]
        %v1055 = vld [vmem:[%s1044 + $0x28] sm:$0xf]
        %v1056 = vld [vmem:[%s1044 + $0x2c] sm:$0xf]
        %v1057 = vld [vmem:[%s1044 + $0x30] sm:$0xf]
        %v1058 = vld [vmem:[%s1044 + $0x34] sm:$0xf]
        %v1059 = vld [vmem:[%s1044 + $0x38] sm:$0xf]
        %v1060 = vld [vmem:[%s1044 + $0x3c] sm:$0xf]
        %v1061 = vld [vmem:[%s1044 + $0x40] sm:$0xf]
        %v1062 = vld [vmem:[%s1044 + $0x44] sm:$0xf]
        %v1063 = vld [vmem:[%s1044 + $0x48] sm:$0xf]
        %v1064 = vld [vmem:[%s1044 + $0x4c] sm:$0xf]
        %v1065 = vld [vmem:[%s1044 + $0x50] sm:$0xf]
        %v1066 = vld [vmem:[%s1044 + $0x54] sm:$0xf]
        %v1067 = vld [vmem:[%s1044 + $0x58] sm:$0xf]
        %v1068 = vld [vmem:[%s1044 + $0x5c] sm:$0xf]
        %v1069 = vld [vmem:[%s1044 + $0x60] sm:$0xf]
        %v1070 = vld [vmem:[%s1044 + $0x64] sm:$0xf]
        %v1071 = vld [vmem:[%s1044 + $0x68] sm:$0xf]
        %v1072 = vld [vmem:[%s1044 + $0x6c] sm:$0xf]
        %v1073 = vld [vmem:[%s1044 + $0x70] sm:$0xf]
        %v1074 = vld [vmem:[%s1044 + $0x74] sm:$0xf]
        %v1075 = vld [vmem:[%s1044 + $0x78] sm:$0xf]
        %v1076 = vld [vmem:[%s1044 + $0x7c] sm:$0xf]
        %v1077 = vld [vmem:[%s1044 + $0x80] sm:$0xf]
        %v1078 = vld [vmem:[%s1044 + $0x84] sm:$0xf]
        %v1079 = vld [vmem:[%s1044 + $0x88] sm:$0xf]
        %v1080 = vld [vmem:[%s1044 + $0x8c] sm:$0xf]
        %v1081 = vld [vmem:[%s1044 + $0x90] sm:$0xf]
        %v1082 = vld [vmem:[%s1044 + $0x94] sm:$0xf]
        %v1083 = vld [vmem:[%s1044 + $0x98] sm:$0xf]
        %v1084 = vld [vmem:[%s1044 + $0x9c] sm:$0xf]
        %v1085 = vld [vmem:[%s1044 + $0xa0] sm:$0xf]
        %v1086 = vld [vmem:[%s1044 + $0xa4] sm:$0xf]
        %v1087 = vld [vmem:[%s1044 + $0xa8] sm:$0xf]
        %v1088 = vld [vmem:[%s1044 + $0xac] sm:$0xf]
        %v1089 = vld [vmem:[%s1044 + $0xb0] sm:$0xf]
        %v1090 = vld [vmem:[%s1044 + $0xb4] sm:$0xf]
        %v1091 = vld [vmem:[%s1044 + $0xb8] sm:$0xf]
        %v1092 = vld [vmem:[%s1044 + $0xbc] sm:$0xf]
        %v1141 = vunpack.c.l.b16 %v1045
        %v1142 = vunpack.c.l.b16 %v1046
        %v1143 = vunpack.c.l.b16 %v1047
        %v1144 = vunpack.c.l.b16 %v1048
        %v1145 = vunpack.c.l.b16 %v1049
        %v1146 = vunpack.c.l.b16 %v1050
        %v1147 = vunpack.c.l.b16 %v1051
        %v1148 = vunpack.c.l.b16 %v1052
        %v1149 = vunpack.c.l.b16 %v1053
        %v1150 = vunpack.c.l.b16 %v1054
        %v1151 = vunpack.c.l.b16 %v1055
        %v1152 = vunpack.c.l.b16 %v1056
        %v1153 = vunpack.c.l.b16 %v1057
        %v1154 = vunpack.c.l.b16 %v1058
        %v1155 = vunpack.c.l.b16 %v1059
        %v1156 = vunpack.c.l.b16 %v1060
        %v1157 = vunpack.c.l.b16 %v1061
        %v1158 = vunpack.c.l.b16 %v1062
        %v1159 = vunpack.c.l.b16 %v1063
        %v1160 = vunpack.c.l.b16 %v1064
        %v1161 = vunpack.c.l.b16 %v1065
        %v1162 = vunpack.c.l.b16 %v1066
        %v1163 = vunpack.c.l.b16 %v1067
        %v1164 = vunpack.c.l.b16 %v1068
        %v1165 = vunpack.c.l.b16 %v1069
        %v1166 = vunpack.c.l.b16 %v1070
        %v1167 = vunpack.c.l.b16 %v1071
        %v1168 = vunpack.c.l.b16 %v1072
        %v1169 = vunpack.c.l.b16 %v1073
        %v1170 = vunpack.c.l.b16 %v1074
        %v1171 = vunpack.c.l.b16 %v1075
        %v1172 = vunpack.c.l.b16 %v1076
        %v1173 = vunpack.c.l.b16 %v1077
        %v1174 = vunpack.c.l.b16 %v1078
        %v1175 = vunpack.c.l.b16 %v1079
        %v1176 = vunpack.c.l.b16 %v1080
        %v1177 = vunpack.c.l.b16 %v1081
        %v1178 = vunpack.c.l.b16 %v1082
        %v1179 = vunpack.c.l.b16 %v1083
        %v1180 = vunpack.c.l.b16 %v1084
        %v1181 = vunpack.c.l.b16 %v1085
        %v1182 = vunpack.c.l.b16 %v1086
        %v1183 = vunpack.c.l.b16 %v1087
        %v1184 = vunpack.c.l.b16 %v1088
        %v1185 = vunpack.c.l.b16 %v1089
        %v1186 = vunpack.c.l.b16 %v1090
        %v1187 = vunpack.c.l.b16 %v1091
        %v1188 = vunpack.c.l.b16 %v1092
        %v1189 = vpack.c.b16 %v1142, %v1141
        %v1190 = vpack.c.b16 %v1144, %v1143
        %v1191 = vpack.c.b16 %v1146, %v1145
        %v1192 = vpack.c.b16 %v1148, %v1147
        %v1193 = vpack.c.b16 %v1150, %v1149
        %v1194 = vpack.c.b16 %v1152, %v1151
        %v1195 = vpack.c.b16 %v1154, %v1153
        %v1196 = vpack.c.b16 %v1156, %v1155
        %v1197 = vpack.c.b16 %v1158, %v1157
        %v1198 = vpack.c.b16 %v1160, %v1159
        %v1199 = vpack.c.b16 %v1162, %v1161
        %v1200 = vpack.c.b16 %v1164, %v1163
        %v1201 = vpack.c.b16 %v1166, %v1165
        %v1202 = vpack.c.b16 %v1168, %v1167
        %v1203 = vpack.c.b16 %v1170, %v1169
        %v1204 = vpack.c.b16 %v1172, %v1171
        %v1205 = vpack.c.b16 %v1174, %v1173
        %v1206 = vpack.c.b16 %v1176, %v1175
        %v1207 = vpack.c.b16 %v1178, %v1177
        %v1208 = vpack.c.b16 %v1180, %v1179
        %v1209 = vpack.c.b16 %v1182, %v1181
        %v1210 = vpack.c.b16 %v1184, %v1183
        %v1211 = vpack.c.b16 %v1186, %v1185
        %v1212 = vpack.c.b16 %v1188, %v1187
        %1237 = vmatpush.bf16.msra.mxu0 %v1196
        %1238 = vmatpush.bf16.msra.mxu0 %v1195
        %1239 = vmatpush.bf16.msra.mxu0 %v1194
        %1240 = vmatpush.bf16.msra.mxu0 %v1193
        %1241 = vmatpush.bf16.msra.mxu0 %v1192
        %1242 = vmatpush.bf16.msra.mxu0 %v1191
        %1243 = vmatpush.bf16.msra.mxu0 %v1190
        %1244 = vmatpush.bf16.msra.mxu0 %v1189
        %1245 = vmatmul.bf16.gmra.mxu0 %v1004
        %v1246 = vpop.f32.mrf.mxu0
        %v1247 = vadd.f32 0.0, %v1246
        %v1248 = vpop.f32.mrf.mxu0
        %v1249 = vadd.f32 0.0, %v1248
        %1250 = vmatmul.bf16.gmra.mxu0 %v1005
        %v1251 = vpop.f32.mrf.mxu0
        %v1252 = vadd.f32 0.0, %v1251
        %v1253 = vpop.f32.mrf.mxu0
        %v1254 = vadd.f32 0.0, %v1253
        %1255 = vmatmul.bf16.gmra.mxu0 %v1006
        %v1256 = vpop.f32.mrf.mxu0
        %v1257 = vadd.f32 0.0, %v1256
        %v1258 = vpop.f32.mrf.mxu0
        %v1259 = vadd.f32 0.0, %v1258
        %1260 = vmatmul.bf16.gmra.mxu0 %v1007
        %v1261 = vpop.f32.mrf.mxu0
        %v1262 = vadd.f32 0.0, %v1261
        %v1263 = vpop.f32.mrf.mxu0
        %v1264 = vadd.f32 0.0, %v1263
        %1265 = vmatmul.bf16.gmra.mxu0 %v1008
        %v1266 = vpop.f32.mrf.mxu0
        %v1267 = vadd.f32 0.0, %v1266
        %v1268 = vpop.f32.mrf.mxu0
        %v1269 = vadd.f32 0.0, %v1268
        %1270 = vmatmul.bf16.gmra.mxu0 %v1009
        %v1271 = vpop.f32.mrf.mxu0
        %v1272 = vadd.f32 0.0, %v1271
        %v1273 = vpop.f32.mrf.mxu0
        %v1274 = vadd.f32 0.0, %v1273
        %1275 = vmatmul.bf16.gmra.mxu0 %v1010
        %v1276 = vpop.f32.mrf.mxu0
        %v1277 = vadd.f32 0.0, %v1276
        %v1278 = vpop.f32.mrf.mxu0
        %v1279 = vadd.f32 0.0, %v1278
        %1280 = vmatmul.bf16.gmra.mxu0 %v1011
        %v1281 = vpop.f32.mrf.mxu0
        %v1282 = vadd.f32 0.0, %v1281
        %v1283 = vpop.f32.mrf.mxu0
        %v1284 = vadd.f32 0.0, %v1283
        %1285 = vmatmul.bf16.gmra.mxu0 %v1012
        %v1286 = vpop.f32.mrf.mxu0
        %v1287 = vadd.f32 0.0, %v1286
        %v1288 = vpop.f32.mrf.mxu0
        %v1289 = vadd.f32 0.0, %v1288
        %1290 = vmatmul.bf16.gmra.mxu0 %v1013
        %v1291 = vpop.f32.mrf.mxu0
        %v1292 = vadd.f32 0.0, %v1291
        %v1293 = vpop.f32.mrf.mxu0
        %v1294 = vadd.f32 0.0, %v1293
        %1295 = vmatmul.bf16.gmra.mxu0 %v1014
        %v1296 = vpop.f32.mrf.mxu0
        %v1297 = vadd.f32 0.0, %v1296
        %v1298 = vpop.f32.mrf.mxu0
        %v1299 = vadd.f32 0.0, %v1298
        %1300 = vmatmul.bf16.gmra.mxu0 %v1015
        %v1301 = vpop.f32.mrf.mxu0
        %v1302 = vadd.f32 0.0, %v1301
        %v1303 = vpop.f32.mrf.mxu0
        %v1304 = vadd.f32 0.0, %v1303
        %1305 = vmatmul.bf16.gmra.mxu0 %v1016
        %v1306 = vpop.f32.mrf.mxu0
        %v1307 = vadd.f32 0.0, %v1306
        %v1308 = vpop.f32.mrf.mxu0
        %v1309 = vadd.f32 0.0, %v1308
        %1310 = vmatmul.bf16.gmra.mxu0 %v1017
        %v1311 = vpop.f32.mrf.mxu0
        %v1312 = vadd.f32 0.0, %v1311
        %v1313 = vpop.f32.mrf.mxu0
        %v1314 = vadd.f32 0.0, %v1313
        %1315 = vmatmul.bf16.gmra.mxu0 %v1018
        %v1316 = vpop.f32.mrf.mxu0
        %v1317 = vadd.f32 0.0, %v1316
        %v1318 = vpop.f32.mrf.mxu0
        %v1319 = vadd.f32 0.0, %v1318
        %1320 = vmatmul.bf16.gmra.mxu0 %v1019
        %v1321 = vpop.f32.mrf.mxu0
        %v1322 = vadd.f32 0.0, %v1321
        %v1323 = vpop.f32.mrf.mxu0
        %v1324 = vadd.f32 0.0, %v1323
        %1325 = vdwg.mxu0
        %1326 = vmatpush.bf16.msra.mxu0 %v1204
        %1327 = vmatpush.bf16.msra.mxu0 %v1203
        %1328 = vmatpush.bf16.msra.mxu0 %v1202
        %1329 = vmatpush.bf16.msra.mxu0 %v1201
        %1330 = vmatpush.bf16.msra.mxu0 %v1200
        %1331 = vmatpush.bf16.msra.mxu0 %v1199
        %1332 = vmatpush.bf16.msra.mxu0 %v1198
        %1333 = vmatpush.bf16.msra.mxu0 %v1197
        %1334 = vmatmul.bf16.gmra.mxu0 %v1005
        %v1335 = vpop.f32.mrf.mxu0
        %v1336 = vadd.f32 %v1247, %v1335
        %v1337 = vpop.f32.mrf.mxu0
        %v1338 = vadd.f32 %v1249, %v1337
        %1339 = vmatmul.bf16.gmra.mxu0 %v1006
        %v1340 = vpop.f32.mrf.mxu0
        %v1341 = vadd.f32 %v1252, %v1340
        %v1342 = vpop.f32.mrf.mxu0
        %v1343 = vadd.f32 %v1254, %v1342
        %1344 = vmatmul.bf16.gmra.mxu0 %v1007
        %v1345 = vpop.f32.mrf.mxu0
        %v1346 = vadd.f32 %v1257, %v1345
        %v1347 = vpop.f32.mrf.mxu0
        %v1348 = vadd.f32 %v1259, %v1347
        %1349 = vmatmul.bf16.gmra.mxu0 %v1008
        %v1350 = vpop.f32.mrf.mxu0
        %v1351 = vadd.f32 %v1262, %v1350
        %v1352 = vpop.f32.mrf.mxu0
        %v1353 = vadd.f32 %v1264, %v1352
        %1354 = vmatmul.bf16.gmra.mxu0 %v1009
        %v1355 = vpop.f32.mrf.mxu0
        %v1356 = vadd.f32 %v1267, %v1355
        %v1357 = vpop.f32.mrf.mxu0
        %v1358 = vadd.f32 %v1269, %v1357
        %1359 = vmatmul.bf16.gmra.mxu0 %v1010
        %v1360 = vpop.f32.mrf.mxu0
        %v1361 = vadd.f32 %v1272, %v1360
        %v1362 = vpop.f32.mrf.mxu0
        %v1363 = vadd.f32 %v1274, %v1362
        %1364 = vmatmul.bf16.gmra.mxu0 %v1011
        %v1365 = vpop.f32.mrf.mxu0
        %v1366 = vadd.f32 %v1277, %v1365
        %v1367 = vpop.f32.mrf.mxu0
        %v1368 = vadd.f32 %v1279, %v1367
        %1369 = vmatmul.bf16.gmra.mxu0 %v1012
        %v1370 = vpop.f32.mrf.mxu0
        %v1371 = vadd.f32 %v1282, %v1370
        %v1372 = vpop.f32.mrf.mxu0
        %v1373 = vadd.f32 %v1284, %v1372
        %1374 = vmatmul.bf16.gmra.mxu0 %v1013
        %v1375 = vpop.f32.mrf.mxu0
        %v1376 = vadd.f32 %v1287, %v1375
        %v1377 = vpop.f32.mrf.mxu0
        %v1378 = vadd.f32 %v1289, %v1377
        %1379 = vmatmul.bf16.gmra.mxu0 %v1014
        %v1380 = vpop.f32.mrf.mxu0
        %v1381 = vadd.f32 %v1292, %v1380
        %v1382 = vpop.f32.mrf.mxu0
        %v1383 = vadd.f32 %v1294, %v1382
        %1384 = vmatmul.bf16.gmra.mxu0 %v1015
        %v1385 = vpop.f32.mrf.mxu0
        %v1386 = vadd.f32 %v1297, %v1385
        %v1387 = vpop.f32.mrf.mxu0
        %v1388 = vadd.f32 %v1299, %v1387
        %1389 = vmatmul.bf16.gmra.mxu0 %v1016
        %v1390 = vpop.f32.mrf.mxu0
        %v1391 = vadd.f32 %v1302, %v1390
        %v1392 = vpop.f32.mrf.mxu0
        %v1393 = vadd.f32 %v1304, %v1392
        %1394 = vmatmul.bf16.gmra.mxu0 %v1017
        %v1395 = vpop.f32.mrf.mxu0
        %v1396 = vadd.f32 %v1307, %v1395
        %v1397 = vpop.f32.mrf.mxu0
        %v1398 = vadd.f32 %v1309, %v1397
        %1399 = vmatmul.bf16.gmra.mxu0 %v1018
        %v1400 = vpop.f32.mrf.mxu0
        %v1401 = vadd.f32 %v1312, %v1400
        %v1402 = vpop.f32.mrf.mxu0
        %v1403 = vadd.f32 %v1314, %v1402
        %1404 = vmatmul.bf16.gmra.mxu0 %v1019
        %v1405 = vpop.f32.mrf.mxu0
        %v1406 = vadd.f32 %v1317, %v1405
        %v1407 = vpop.f32.mrf.mxu0
        %v1408 = vadd.f32 %v1319, %v1407
        %1409 = vmatmul.bf16.gmra.mxu0 %v1038
        %v1410 = vpop.f32.mrf.mxu0
        %v1411 = vadd.f32 %v1322, %v1410
        %v1412 = vpop.f32.mrf.mxu0
        %v1413 = vadd.f32 %v1324, %v1412
        %1414 = vdwg.mxu0
        %1415 = vmatpush.bf16.msra.mxu0 %v1212
        %1416 = vmatpush.bf16.msra.mxu0 %v1211
        %1417 = vmatpush.bf16.msra.mxu0 %v1210
        %1418 = vmatpush.bf16.msra.mxu0 %v1209
        %1419 = vmatpush.bf16.msra.mxu0 %v1208
        %1420 = vmatpush.bf16.msra.mxu0 %v1207
        %1421 = vmatpush.bf16.msra.mxu0 %v1206
        %1422 = vmatpush.bf16.msra.mxu0 %v1205
        %1423 = vmatmul.bf16.gmra.mxu0 %v1006
        %v1424 = vpop.f32.mrf.mxu0
        %v1425 = vadd.f32 %v1336, %v1424
        %v1426 = vpop.f32.mrf.mxu0
        %v1427 = vadd.f32 %v1338, %v1426
        %1428 = vmatmul.bf16.gmra.mxu0 %v1007
        %v1429 = vpop.f32.mrf.mxu0
        %v1430 = vadd.f32 %v1341, %v1429
        %v1431 = vpop.f32.mrf.mxu0
        %v1432 = vadd.f32 %v1343, %v1431
        %1433 = vmatmul.bf16.gmra.mxu0 %v1008
        %v1434 = vpop.f32.mrf.mxu0
        %v1435 = vadd.f32 %v1346, %v1434
        %v1436 = vpop.f32.mrf.mxu0
        %v1437 = vadd.f32 %v1348, %v1436
        %1438 = vmatmul.bf16.gmra.mxu0 %v1009
        %v1439 = vpop.f32.mrf.mxu0
        %v1440 = vadd.f32 %v1351, %v1439
        %v1441 = vpop.f32.mrf.mxu0
        %v1442 = vadd.f32 %v1353, %v1441
        %1443 = vmatmul.bf16.gmra.mxu0 %v1010
        %v1444 = vpop.f32.mrf.mxu0
        %v1445 = vadd.f32 %v1356, %v1444
        %v1446 = vpop.f32.mrf.mxu0
        %v1447 = vadd.f32 %v1358, %v1446
        %1448 = vmatmul.bf16.gmra.mxu0 %v1011
        %v1449 = vpop.f32.mrf.mxu0
        %v1450 = vadd.f32 %v1361, %v1449
        %v1451 = vpop.f32.mrf.mxu0
        %v1452 = vadd.f32 %v1363, %v1451
        %1453 = vmatmul.bf16.gmra.mxu0 %v1012
        %v1454 = vpop.f32.mrf.mxu0
        %v1455 = vadd.f32 %v1366, %v1454
        %v1456 = vpop.f32.mrf.mxu0
        %v1457 = vadd.f32 %v1368, %v1456
        %1458 = vmatmul.bf16.gmra.mxu0 %v1013
        %v1459 = vpop.f32.mrf.mxu0
        %v1460 = vadd.f32 %v1371, %v1459
        %v1461 = vpop.f32.mrf.mxu0
        %v1462 = vadd.f32 %v1373, %v1461
        %1463 = vmatmul.bf16.gmra.mxu0 %v1014
        %v1464 = vpop.f32.mrf.mxu0
        %v1465 = vadd.f32 %v1376, %v1464
        %v1466 = vpop.f32.mrf.mxu0
        %v1467 = vadd.f32 %v1378, %v1466
        %1468 = vmatmul.bf16.gmra.mxu0 %v1015
        %v1469 = vpop.f32.mrf.mxu0
        %v1470 = vadd.f32 %v1381, %v1469
        %v1471 = vpop.f32.mrf.mxu0
        %v1472 = vadd.f32 %v1383, %v1471
        %1473 = vmatmul.bf16.gmra.mxu0 %v1016
        %v1474 = vpop.f32.mrf.mxu0
        %v1475 = vadd.f32 %v1386, %v1474
        %v1476 = vpop.f32.mrf.mxu0
        %v1477 = vadd.f32 %v1388, %v1476
        %1478 = vmatmul.bf16.gmra.mxu0 %v1017
        %v1479 = vpop.f32.mrf.mxu0
        %v1480 = vadd.f32 %v1391, %v1479
        %v1481 = vpop.f32.mrf.mxu0
        %v1482 = vadd.f32 %v1393, %v1481
        %1483 = vmatmul.bf16.gmra.mxu0 %v1018
        %v1484 = vpop.f32.mrf.mxu0
        %v1485 = vadd.f32 %v1396, %v1484
        %v1486 = vpop.f32.mrf.mxu0
        %v1487 = vadd.f32 %v1398, %v1486
        %1488 = vmatmul.bf16.gmra.mxu0 %v1019
        %v1489 = vpop.f32.mrf.mxu0
        %v1490 = vadd.f32 %v1401, %v1489
        %v1491 = vpop.f32.mrf.mxu0
        %v1492 = vadd.f32 %v1403, %v1491
        %1493 = vmatmul.bf16.gmra.mxu0 %v1038
        %v1494 = vpop.f32.mrf.mxu0
        %v1495 = vadd.f32 %v1406, %v1494
        %v1496 = vpop.f32.mrf.mxu0
        %v1497 = vadd.f32 %v1408, %v1496
        %1498 = vmatmul.bf16.gmra.mxu0 %v1042
        %v1499 = vpop.f32.mrf.mxu0
        %v1500 = vadd.f32 %v1411, %v1499
        %v1501 = vpop.f32.mrf.mxu0
        %v1502 = vadd.f32 %v1413, %v1501
        %1503 = vdwg.mxu0
        %v1552 = vunpack.c.l.b16 %v439
        %v1553 = vunpack.c.l.b16 %v440
        %v1554 = vunpack.c.l.b16 %v441
        %v1555 = vunpack.c.l.b16 %v442
        %v1556 = vunpack.c.l.b16 %v443
        %v1557 = vunpack.c.l.b16 %v444
        %v1558 = vunpack.c.l.b16 %v445
        %v1559 = vunpack.c.l.b16 %v446
        %v1560 = vunpack.c.l.b16 %v447
        %v1561 = vunpack.c.l.b16 %v448
        %v1562 = vunpack.c.l.b16 %v449
        %v1563 = vunpack.c.l.b16 %v450
        %v1564 = vunpack.c.l.b16 %v451
        %v1565 = vunpack.c.l.b16 %v452
        %v1566 = vunpack.c.l.b16 %v453
        %v1567 = vunpack.c.l.b16 %v454
        %v1568 = vunpack.c.l.b16 %v455
        %v1569 = vunpack.c.l.b16 %v456
        %v1570 = vunpack.c.l.b16 %v457
        %v1571 = vunpack.c.l.b16 %v458
        %v1572 = vunpack.c.l.b16 %v459
        %v1573 = vunpack.c.l.b16 %v460
        %v1574 = vunpack.c.l.b16 %v461
        %v1575 = vunpack.c.l.b16 %v462
        %v1576 = vunpack.c.l.b16 %v463
        %v1577 = vunpack.c.l.b16 %v464
        %v1578 = vunpack.c.l.b16 %v465
        %v1579 = vunpack.c.l.b16 %v466
        %v1580 = vunpack.c.l.b16 %v467
        %v1581 = vunpack.c.l.b16 %v468
        %v1582 = vunpack.c.l.b16 %v469
        %v1583 = vunpack.c.l.b16 %v470
        %v1584 = vunpack.c.l.b16 %v471
        %v1585 = vunpack.c.l.b16 %v472
        %v1586 = vunpack.c.l.b16 %v473
        %v1587 = vunpack.c.l.b16 %v474
        %v1588 = vunpack.c.l.b16 %v475
        %v1589 = vunpack.c.l.b16 %v476
        %v1590 = vunpack.c.l.b16 %v477
        %v1591 = vunpack.c.l.b16 %v478
        %v1592 = vunpack.c.l.b16 %v479
        %v1593 = vunpack.c.l.b16 %v480
        %v1594 = vunpack.c.l.b16 %v481
        %v1595 = vunpack.c.l.b16 %v482
        %v1596 = vunpack.c.l.b16 %v483
        %v1597 = vunpack.c.l.b16 %v484
        %v1598 = vunpack.c.l.b16 %v485
        %v1599 = vunpack.c.l.b16 %v486
        %v1600 = vpack.c.b16 %v1553, %v1552
        %v1601 = vpack.c.b16 %v1555, %v1554
        %v1602 = vpack.c.b16 %v1557, %v1556
        %v1603 = vpack.c.b16 %v1559, %v1558
        %v1604 = vpack.c.b16 %v1561, %v1560
        %v1605 = vpack.c.b16 %v1563, %v1562
        %v1606 = vpack.c.b16 %v1565, %v1564
        %v1607 = vpack.c.b16 %v1567, %v1566
        %v1608 = vpack.c.b16 %v1569, %v1568
        %v1609 = vpack.c.b16 %v1571, %v1570
        %v1610 = vpack.c.b16 %v1573, %v1572
        %v1611 = vpack.c.b16 %v1575, %v1574
        %v1612 = vpack.c.b16 %v1577, %v1576
        %v1613 = vpack.c.b16 %v1579, %v1578
        %v1614 = vpack.c.b16 %v1581, %v1580
        %v1615 = vpack.c.b16 %v1583, %v1582
        %v1616 = vpack.c.b16 %v1585, %v1584
        %v1617 = vpack.c.b16 %v1587, %v1586
        %v1618 = vpack.c.b16 %v1589, %v1588
        %v1619 = vpack.c.b16 %v1591, %v1590
        %v1620 = vpack.c.b16 %v1593, %v1592
        %v1621 = vpack.c.b16 %v1595, %v1594
        %v1622 = vpack.c.b16 %v1597, %v1596
        %v1623 = vpack.c.b16 %v1599, %v1598
        %1648 = vmatpush.bf16.msra.mxu0 %v1607
        %1649 = vmatpush.bf16.msra.mxu0 %v1606
        %1650 = vmatpush.bf16.msra.mxu0 %v1605
        %1651 = vmatpush.bf16.msra.mxu0 %v1604
        %1652 = vmatpush.bf16.msra.mxu0 %v1603
        %1653 = vmatpush.bf16.msra.mxu0 %v1602
        %1654 = vmatpush.bf16.msra.mxu0 %v1601
        %1655 = vmatpush.bf16.msra.mxu0 %v1600
        %1656 = vmatmul.bf16.gmra.mxu0 %v395
        %v1657 = vpop.f32.mrf.mxu0
        %v1658 = vadd.f32 %v1425, %v1657
        %v1659 = vpop.f32.mrf.mxu0
        %v1660 = vadd.f32 %v1427, %v1659
        %1661 = vmatmul.bf16.gmra.mxu0 %v396
        %v1662 = vpop.f32.mrf.mxu0
        %v1663 = vadd.f32 %v1430, %v1662
        %v1664 = vpop.f32.mrf.mxu0
        %v1665 = vadd.f32 %v1432, %v1664
        %1666 = vmatmul.bf16.gmra.mxu0 %v397
        %v1667 = vpop.f32.mrf.mxu0
        %v1668 = vadd.f32 %v1435, %v1667
        %v1669 = vpop.f32.mrf.mxu0
        %v1670 = vadd.f32 %v1437, %v1669
        %1671 = vmatmul.bf16.gmra.mxu0 %v398
        %v1672 = vpop.f32.mrf.mxu0
        %v1673 = vadd.f32 %v1440, %v1672
        %v1674 = vpop.f32.mrf.mxu0
        %v1675 = vadd.f32 %v1442, %v1674
        %1676 = vmatmul.bf16.gmra.mxu0 %v399
        %v1677 = vpop.f32.mrf.mxu0
        %v1678 = vadd.f32 %v1445, %v1677
        %v1679 = vpop.f32.mrf.mxu0
        %v1680 = vadd.f32 %v1447, %v1679
        %1681 = vmatmul.bf16.gmra.mxu0 %v400
        %v1682 = vpop.f32.mrf.mxu0
        %v1683 = vadd.f32 %v1450, %v1682
        %v1684 = vpop.f32.mrf.mxu0
        %v1685 = vadd.f32 %v1452, %v1684
        %1686 = vmatmul.bf16.gmra.mxu0 %v401
        %v1687 = vpop.f32.mrf.mxu0
        %v1688 = vadd.f32 %v1455, %v1687
        %v1689 = vpop.f32.mrf.mxu0
        %v1690 = vadd.f32 %v1457, %v1689
        %1691 = vmatmul.bf16.gmra.mxu0 %v402
        %v1692 = vpop.f32.mrf.mxu0
        %v1693 = vadd.f32 %v1460, %v1692
        %v1694 = vpop.f32.mrf.mxu0
        %v1695 = vadd.f32 %v1462, %v1694
        %1696 = vmatmul.bf16.gmra.mxu0 %v403
        %v1697 = vpop.f32.mrf.mxu0
        %v1698 = vadd.f32 %v1465, %v1697
        %v1699 = vpop.f32.mrf.mxu0
        %v1700 = vadd.f32 %v1467, %v1699
        %1701 = vmatmul.bf16.gmra.mxu0 %v404
        %v1702 = vpop.f32.mrf.mxu0
        %v1703 = vadd.f32 %v1470, %v1702
        %v1704 = vpop.f32.mrf.mxu0
        %v1705 = vadd.f32 %v1472, %v1704
        %1706 = vmatmul.bf16.gmra.mxu0 %v405
        %v1707 = vpop.f32.mrf.mxu0
        %v1708 = vadd.f32 %v1475, %v1707
        %v1709 = vpop.f32.mrf.mxu0
        %v1710 = vadd.f32 %v1477, %v1709
        %1711 = vmatmul.bf16.gmra.mxu0 %v406
        %v1712 = vpop.f32.mrf.mxu0
        %v1713 = vadd.f32 %v1480, %v1712
        %v1714 = vpop.f32.mrf.mxu0
        %v1715 = vadd.f32 %v1482, %v1714
        %1716 = vmatmul.bf16.gmra.mxu0 %v407
        %v1717 = vpop.f32.mrf.mxu0
        %v1718 = vadd.f32 %v1485, %v1717
        %v1719 = vpop.f32.mrf.mxu0
        %v1720 = vadd.f32 %v1487, %v1719
        %1721 = vmatmul.bf16.gmra.mxu0 %v408
        %v1722 = vpop.f32.mrf.mxu0
        %v1723 = vadd.f32 %v1490, %v1722
        %v1724 = vpop.f32.mrf.mxu0
        %v1725 = vadd.f32 %v1492, %v1724
        %1726 = vmatmul.bf16.gmra.mxu0 %v409
        %v1727 = vpop.f32.mrf.mxu0
        %v1728 = vadd.f32 %v1495, %v1727
        %v1729 = vpop.f32.mrf.mxu0
        %v1730 = vadd.f32 %v1497, %v1729
        %1731 = vmatmul.bf16.gmra.mxu0 %v410
        %v1732 = vpop.f32.mrf.mxu0
        %v1733 = vadd.f32 %v1500, %v1732
        %v1734 = vpop.f32.mrf.mxu0
        %v1735 = vadd.f32 %v1502, %v1734
        %1736 = vdwg.mxu0
        %1737 = vmatpush.bf16.msra.mxu0 %v1615
        %1738 = vmatpush.bf16.msra.mxu0 %v1614
        %1739 = vmatpush.bf16.msra.mxu0 %v1613
        %1740 = vmatpush.bf16.msra.mxu0 %v1612
        %1741 = vmatpush.bf16.msra.mxu0 %v1611
        %1742 = vmatpush.bf16.msra.mxu0 %v1610
        %1743 = vmatpush.bf16.msra.mxu0 %v1609
        %1744 = vmatpush.bf16.msra.mxu0 %v1608
        %1745 = vmatmul.bf16.gmra.mxu0 %v396
        %v1746 = vpop.f32.mrf.mxu0
        %v1747 = vadd.f32 %v1658, %v1746
        %v1748 = vpop.f32.mrf.mxu0
        %v1749 = vadd.f32 %v1660, %v1748
        %1750 = vmatmul.bf16.gmra.mxu0 %v397
        %v1751 = vpop.f32.mrf.mxu0
        %v1752 = vadd.f32 %v1663, %v1751
        %v1753 = vpop.f32.mrf.mxu0
        %v1754 = vadd.f32 %v1665, %v1753
        %1755 = vmatmul.bf16.gmra.mxu0 %v398
        %v1756 = vpop.f32.mrf.mxu0
        %v1757 = vadd.f32 %v1668, %v1756
        %v1758 = vpop.f32.mrf.mxu0
        %v1759 = vadd.f32 %v1670, %v1758
        %1760 = vmatmul.bf16.gmra.mxu0 %v399
        %v1761 = vpop.f32.mrf.mxu0
        %v1762 = vadd.f32 %v1673, %v1761
        %v1763 = vpop.f32.mrf.mxu0
        %v1764 = vadd.f32 %v1675, %v1763
        %1765 = vmatmul.bf16.gmra.mxu0 %v400
        %v1766 = vpop.f32.mrf.mxu0
        %v1767 = vadd.f32 %v1678, %v1766
        %v1768 = vpop.f32.mrf.mxu0
        %v1769 = vadd.f32 %v1680, %v1768
        %1770 = vmatmul.bf16.gmra.mxu0 %v401
        %v1771 = vpop.f32.mrf.mxu0
        %v1772 = vadd.f32 %v1683, %v1771
        %v1773 = vpop.f32.mrf.mxu0
        %v1774 = vadd.f32 %v1685, %v1773
        %1775 = vmatmul.bf16.gmra.mxu0 %v402
        %v1776 = vpop.f32.mrf.mxu0
        %v1777 = vadd.f32 %v1688, %v1776
        %v1778 = vpop.f32.mrf.mxu0
        %v1779 = vadd.f32 %v1690, %v1778
        %1780 = vmatmul.bf16.gmra.mxu0 %v403
        %v1781 = vpop.f32.mrf.mxu0
        %v1782 = vadd.f32 %v1693, %v1781
        %v1783 = vpop.f32.mrf.mxu0
        %v1784 = vadd.f32 %v1695, %v1783
        %1785 = vmatmul.bf16.gmra.mxu0 %v404
        %v1786 = vpop.f32.mrf.mxu0
        %v1787 = vadd.f32 %v1698, %v1786
        %v1788 = vpop.f32.mrf.mxu0
        %v1789 = vadd.f32 %v1700, %v1788
        %1790 = vmatmul.bf16.gmra.mxu0 %v405
        %v1791 = vpop.f32.mrf.mxu0
        %v1792 = vadd.f32 %v1703, %v1791
        %v1793 = vpop.f32.mrf.mxu0
        %v1794 = vadd.f32 %v1705, %v1793
        %1795 = vmatmul.bf16.gmra.mxu0 %v406
        %v1796 = vpop.f32.mrf.mxu0
        %v1797 = vadd.f32 %v1708, %v1796
        %v1798 = vpop.f32.mrf.mxu0
        %v1799 = vadd.f32 %v1710, %v1798
        %1800 = vmatmul.bf16.gmra.mxu0 %v407
        %v1801 = vpop.f32.mrf.mxu0
        %v1802 = vadd.f32 %v1713, %v1801
        %v1803 = vpop.f32.mrf.mxu0
        %v1804 = vadd.f32 %v1715, %v1803
        %1805 = vmatmul.bf16.gmra.mxu0 %v408
        %v1806 = vpop.f32.mrf.mxu0
        %v1807 = vadd.f32 %v1718, %v1806
        %v1808 = vpop.f32.mrf.mxu0
        %v1809 = vadd.f32 %v1720, %v1808
        %1810 = vmatmul.bf16.gmra.mxu0 %v409
        %v1811 = vpop.f32.mrf.mxu0
        %v1812 = vadd.f32 %v1723, %v1811
        %v1813 = vpop.f32.mrf.mxu0
        %v1814 = vadd.f32 %v1725, %v1813
        %1815 = vmatmul.bf16.gmra.mxu0 %v410
        %v1816 = vpop.f32.mrf.mxu0
        %v1817 = vadd.f32 %v1728, %v1816
        %v1818 = vpop.f32.mrf.mxu0
        %v1819 = vadd.f32 %v1730, %v1818
        %1820 = vmatmul.bf16.gmra.mxu0 %v431
        %v1821 = vpop.f32.mrf.mxu0
        %v1822 = vadd.f32 %v1733, %v1821
        %v1823 = vpop.f32.mrf.mxu0
        %v1824 = vadd.f32 %v1735, %v1823
        %1825 = vdwg.mxu0
        %1826 = vmatpush.bf16.msra.mxu0 %v1623
        %1827 = vmatpush.bf16.msra.mxu0 %v1622
        %1828 = vmatpush.bf16.msra.mxu0 %v1621
        %1829 = vmatpush.bf16.msra.mxu0 %v1620
        %1830 = vmatpush.bf16.msra.mxu0 %v1619
        %1831 = vmatpush.bf16.msra.mxu0 %v1618
        %1832 = vmatpush.bf16.msra.mxu0 %v1617
        %1833 = vmatpush.bf16.msra.mxu0 %v1616
        %1834 = vmatmul.bf16.gmra.mxu0 %v397
        %v1835 = vpop.f32.mrf.mxu0
        %v1836 = vadd.f32 %v1747, %v1835
        %v1837 = vpop.f32.mrf.mxu0
        %v1838 = vadd.f32 %v1749, %v1837
        %1839 = vmatmul.bf16.gmra.mxu0 %v398
        %v1840 = vpop.f32.mrf.mxu0
        %v1841 = vadd.f32 %v1752, %v1840
        %v1842 = vpop.f32.mrf.mxu0
        %v1843 = vadd.f32 %v1754, %v1842
        %1844 = vmatmul.bf16.gmra.mxu0 %v399
        %v1845 = vpop.f32.mrf.mxu0
        %v1846 = vadd.f32 %v1757, %v1845
        %v1847 = vpop.f32.mrf.mxu0
        %v1848 = vadd.f32 %v1759, %v1847
        %1849 = vmatmul.bf16.gmra.mxu0 %v400
        %v1850 = vpop.f32.mrf.mxu0
        %v1851 = vadd.f32 %v1762, %v1850
        %v1852 = vpop.f32.mrf.mxu0
        %v1853 = vadd.f32 %v1764, %v1852
        %1854 = vmatmul.bf16.gmra.mxu0 %v401
        %v1855 = vpop.f32.mrf.mxu0
        %v1856 = vadd.f32 %v1767, %v1855
        %v1857 = vpop.f32.mrf.mxu0
        %v1858 = vadd.f32 %v1769, %v1857
        %1859 = vmatmul.bf16.gmra.mxu0 %v402
        %v1860 = vpop.f32.mrf.mxu0
        %v1861 = vadd.f32 %v1772, %v1860
        %v1862 = vpop.f32.mrf.mxu0
        %v1863 = vadd.f32 %v1774, %v1862
        %1864 = vmatmul.bf16.gmra.mxu0 %v403
        %v1865 = vpop.f32.mrf.mxu0
        %v1866 = vadd.f32 %v1777, %v1865
        %v1867 = vpop.f32.mrf.mxu0
        %v1868 = vadd.f32 %v1779, %v1867
        %1869 = vmatmul.bf16.gmra.mxu0 %v404
        %v1870 = vpop.f32.mrf.mxu0
        %v1871 = vadd.f32 %v1782, %v1870
        %v1872 = vpop.f32.mrf.mxu0
        %v1873 = vadd.f32 %v1784, %v1872
        %1874 = vmatmul.bf16.gmra.mxu0 %v405
        %v1875 = vpop.f32.mrf.mxu0
        %v1876 = vadd.f32 %v1787, %v1875
        %v1877 = vpop.f32.mrf.mxu0
        %v1878 = vadd.f32 %v1789, %v1877
        %1879 = vmatmul.bf16.gmra.mxu0 %v406
        %v1880 = vpop.f32.mrf.mxu0
        %v1881 = vadd.f32 %v1792, %v1880
        %v1882 = vpop.f32.mrf.mxu0
        %v1883 = vadd.f32 %v1794, %v1882
        %1884 = vmatmul.bf16.gmra.mxu0 %v407
        %v1885 = vpop.f32.mrf.mxu0
        %v1886 = vadd.f32 %v1797, %v1885
        %v1887 = vpop.f32.mrf.mxu0
        %v1888 = vadd.f32 %v1799, %v1887
        %1889 = vmatmul.bf16.gmra.mxu0 %v408
        %v1890 = vpop.f32.mrf.mxu0
        %v1891 = vadd.f32 %v1802, %v1890
        %v1892 = vpop.f32.mrf.mxu0
        %v1893 = vadd.f32 %v1804, %v1892
        %1894 = vmatmul.bf16.gmra.mxu0 %v409
        %v1895 = vpop.f32.mrf.mxu0
        %v1896 = vadd.f32 %v1807, %v1895
        %v1897 = vpop.f32.mrf.mxu0
        %v1898 = vadd.f32 %v1809, %v1897
        %1899 = vmatmul.bf16.gmra.mxu0 %v410
        %v1900 = vpop.f32.mrf.mxu0
        %v1901 = vadd.f32 %v1812, %v1900
        %v1902 = vpop.f32.mrf.mxu0
        %v1903 = vadd.f32 %v1814, %v1902
        %1904 = vmatmul.bf16.gmra.mxu0 %v431
        %v1905 = vpop.f32.mrf.mxu0
        %v1906 = vadd.f32 %v1817, %v1905
        %v1907 = vpop.f32.mrf.mxu0
        %v1908 = vadd.f32 %v1819, %v1907
        %1909 = vmatmul.bf16.gmra.mxu0 %v437
        %v1910 = vpop.f32.mrf.mxu0
        %v1911 = vadd.f32 %v1822, %v1910
        %v1912 = vpop.f32.mrf.mxu0
        %v1913 = vadd.f32 %v1824, %v1912
        %1914 = vdwg.mxu0
        %v1915 = vld [vmem:[%s293] sm:$0xe]
        %v1916 = vld [vmem:[%s293 + $0xc] sm:$0xe]
        %v1917 = vld [vmem:[%s293 + $0x18] sm:$0xe]
        %v1918 = vld [vmem:[%s293 + $0x24] sm:$0xe]
        %v1919 = vld [vmem:[%s293 + $0x30] sm:$0xe]
        %v1920 = vld [vmem:[%s293 + $0x3c] sm:$0xe]
        %v1921 = vld [vmem:[%s293 + $0x48] sm:$0xe]
        %v1922 = vld [vmem:[%s293 + $0x54] sm:$0xe]
        %v1923 = vld [vmem:[%s293 + $0x60] sm:$0xe]
        %v1924 = vld [vmem:[%s293 + $0x6c] sm:$0xe]
        %v1925 = vld [vmem:[%s293 + $0x78] sm:$0xe]
        %v1926 = vld [vmem:[%s293 + $0x84] sm:$0xe]
        %v1927 = vld [vmem:[%s293 + $0x90] sm:$0xe]
        %v1928 = vld [vmem:[%s293 + $0x9c] sm:$0xe]
        %v1929 = vld [vmem:[%s293 + $0xa8] sm:$0xe]
        %v1930 = vld [vmem:[%s293 + $0xb4] sm:$0xe]
        %v1931 = vld [vmem:[%s293 + $0xc0] sm:$0xe]
        %v1932 = vld [vmem:[%s293 + $0xcc] sm:$0xe]
        %vm1969 = vcmask 1042432
        %vm1970 = vcmask 1046532
        %vm1971 = vmor %vm1969, %vm1970
        %v1972 = vrot.slane %v1915, 5
        %v1973 = vrot.slane %v1972, 4
        %v1974 = vrot.slane %v296, 5
        %v1975 = vsel %vm1971, %v1973, %v1974
        %v1976 = vrot.slane %v1974, 4
        %v1977 = vrot.slane %v487, 5
        %v1978 = vsel %vm1971, %v1976, %v1977
        %v1979 = vrot.slane %v1916, 5
        %v1980 = vrot.slane %v1979, 4
        %v1981 = vrot.slane %v298, 5
        %v1982 = vsel %vm1971, %v1980, %v1981
        %v1983 = vrot.slane %v1981, 4
        %v1984 = vrot.slane %v488, 5
        %v1985 = vsel %vm1971, %v1983, %v1984
        %v1986 = vrot.slane %v1917, 5
        %v1987 = vrot.slane %v1986, 4
        %v1988 = vrot.slane %v300, 5
        %v1989 = vsel %vm1971, %v1987, %v1988
        %v1990 = vrot.slane %v1988, 4
        %v1991 = vrot.slane %v489, 5
        %v1992 = vsel %vm1971, %v1990, %v1991
        %v1993 = vrot.slane %v1918, 5
        %v1994 = vrot.slane %v1993, 4
        %v1995 = vrot.slane %v302, 5
        %v1996 = vsel %vm1971, %v1994, %v1995
        %v1997 = vrot.slane %v1995, 4
        %v1998 = vrot.slane %v490, 5
        %v1999 = vsel %vm1971, %v1997, %v1998
        %v2000 = vrot.slane %v1919, 5
        %v2001 = vrot.slane %v2000, 4
        %v2002 = vrot.slane %v304, 5
        %v2003 = vsel %vm1971, %v2001, %v2002
        %v2004 = vrot.slane %v2002, 4
        %v2005 = vrot.slane %v491, 5
        %v2006 = vsel %vm1971, %v2004, %v2005
        %v2007 = vrot.slane %v1920, 5
        %v2008 = vrot.slane %v2007, 4
        %v2009 = vrot.slane %v306, 5
        %v2010 = vsel %vm1971, %v2008, %v2009
        %v2011 = vrot.slane %v2009, 4
        %v2012 = vrot.slane %v492, 5
        %v2013 = vsel %vm1971, %v2011, %v2012
        %v2014 = vrot.slane %v1921, 5
        %v2015 = vrot.slane %v2014, 4
        %v2016 = vrot.slane %v308, 5
        %v2017 = vsel %vm1971, %v2015, %v2016
        %v2018 = vrot.slane %v2016, 4
        %v2019 = vrot.slane %v493, 5
        %v2020 = vsel %vm1971, %v2018, %v2019
        %v2021 = vrot.slane %v1922, 5
        %v2022 = vrot.slane %v2021, 4
        %v2023 = vrot.slane %v310, 5
        %v2024 = vsel %vm1971, %v2022, %v2023
        %v2025 = vrot.slane %v2023, 4
        %v2026 = vrot.slane %v494, 5
        %v2027 = vsel %vm1971, %v2025, %v2026
        %v2028 = vrot.slane %v1923, 5
        %v2029 = vrot.slane %v2028, 4
        %v2030 = vrot.slane %v312, 5
        %v2031 = vsel %vm1971, %v2029, %v2030
        %v2032 = vrot.slane %v2030, 4
        %v2033 = vrot.slane %v495, 5
        %v2034 = vsel %vm1971, %v2032, %v2033
        %v2035 = vrot.slane %v1924, 5
        %v2036 = vrot.slane %v2035, 4
        %v2037 = vrot.slane %v314, 5
        %v2038 = vsel %vm1971, %v2036, %v2037
        %v2039 = vrot.slane %v2037, 4
        %v2040 = vrot.slane %v496, 5
        %v2041 = vsel %vm1971, %v2039, %v2040
        %v2042 = vrot.slane %v1925, 5
        %v2043 = vrot.slane %v2042, 4
        %v2044 = vrot.slane %v316, 5
        %v2045 = vsel %vm1971, %v2043, %v2044
        %v2046 = vrot.slane %v2044, 4
        %v2047 = vrot.slane %v497, 5
        %v2048 = vsel %vm1971, %v2046, %v2047
        %v2049 = vrot.slane %v1926, 5
        %v2050 = vrot.slane %v2049, 4
        %v2051 = vrot.slane %v318, 5
        %v2052 = vsel %vm1971, %v2050, %v2051
        %v2053 = vrot.slane %v2051, 4
        %v2054 = vrot.slane %v498, 5
        %v2055 = vsel %vm1971, %v2053, %v2054
        %v2056 = vrot.slane %v1927, 5
        %v2057 = vrot.slane %v2056, 4
        %v2058 = vrot.slane %v320, 5
        %v2059 = vsel %vm1971, %v2057, %v2058
        %v2060 = vrot.slane %v2058, 4
        %v2061 = vrot.slane %v499, 5
        %v2062 = vsel %vm1971, %v2060, %v2061
        %v2063 = vrot.slane %v1928, 5
        %v2064 = vrot.slane %v2063, 4
        %v2065 = vrot.slane %v322, 5
        %v2066 = vsel %vm1971, %v2064, %v2065
        %v2067 = vrot.slane %v2065, 4
        %v2068 = vrot.slane %v500, 5
        %v2069 = vsel %vm1971, %v2067, %v2068
        %v2070 = vrot.slane %v1929, 5
        %v2071 = vrot.slane %v2070, 4
        %v2072 = vrot.slane %v324, 5
        %v2073 = vsel %vm1971, %v2071, %v2072
        %v2074 = vrot.slane %v2072, 4
        %v2075 = vrot.slane %v501, 5
        %v2076 = vsel %vm1971, %v2074, %v2075
        %v2077 = vrot.slane %v1930, 5
        %v2078 = vrot.slane %v2077, 4
        %v2079 = vrot.slane %v326, 5
        %v2080 = vsel %vm1971, %v2078, %v2079
        %v2081 = vrot.slane %v2079, 4
        %v2082 = vrot.slane %v502, 5
        %v2083 = vsel %vm1971, %v2081, %v2082
        %v2084 = vrot.slane %v1931, 5
        %v2085 = vrot.slane %v2084, 4
        %v2086 = vrot.slane %v328, 5
        %v2087 = vsel %vm1971, %v2085, %v2086
        %v2088 = vrot.slane %v2086, 4
        %v2089 = vrot.slane %v503, 5
        %v2090 = vsel %vm1971, %v2088, %v2089
        %v2091 = vrot.slane %v1932, 5
        %v2092 = vrot.slane %v2091, 4
        %v2093 = vrot.slane %v330, 5
        %v2094 = vsel %vm1971, %v2092, %v2093
        %v2095 = vrot.slane %v2093, 4
        %v2096 = vrot.slane %v504, 5
        %v2097 = vsel %vm1971, %v2095, %v2096
        %v2098 = vunpack.c.l.b16 %v1975
        %v2099 = vunpack.c.l.b16 %v1978
        %v2100 = vunpack.c.l.b16 %v1982
        %v2101 = vunpack.c.l.b16 %v1985
        %v2102 = vunpack.c.l.b16 %v1989
        %v2103 = vunpack.c.l.b16 %v1992
        %v2104 = vunpack.c.l.b16 %v1996
        %v2105 = vunpack.c.l.b16 %v1999
        %v2106 = vunpack.c.l.b16 %v2003
        %v2107 = vunpack.c.l.b16 %v2006
        %v2108 = vunpack.c.l.b16 %v2010
        %v2109 = vunpack.c.l.b16 %v2013
        %v2110 = vunpack.c.l.b16 %v2017
        %v2111 = vunpack.c.l.b16 %v2020
        %v2112 = vunpack.c.l.b16 %v2024
        %v2113 = vunpack.c.l.b16 %v2027
        %v2114 = vunpack.c.l.b16 %v2031
        %v2115 = vunpack.c.l.b16 %v2034
        %v2116 = vunpack.c.l.b16 %v2038
        %v2117 = vunpack.c.l.b16 %v2041
        %v2118 = vunpack.c.l.b16 %v2045
        %v2119 = vunpack.c.l.b16 %v2048
        %v2120 = vunpack.c.l.b16 %v2052
        %v2121 = vunpack.c.l.b16 %v2055
        %v2122 = vunpack.c.l.b16 %v2059
        %v2123 = vunpack.c.l.b16 %v2062
        %v2124 = vunpack.c.l.b16 %v2066
        %v2125 = vunpack.c.l.b16 %v2069
        %v2126 = vunpack.c.l.b16 %v2073
        %v2127 = vunpack.c.l.b16 %v2076
        %v2128 = vunpack.c.l.b16 %v2080
        %v2129 = vunpack.c.l.b16 %v2083
        %v2130 = vpack.c.b16 %v2099, %v2098
        %v2131 = vpack.c.b16 %v2101, %v2100
        %v2132 = vpack.c.b16 %v2103, %v2102
        %v2133 = vpack.c.b16 %v2105, %v2104
        %v2134 = vpack.c.b16 %v2107, %v2106
        %v2135 = vpack.c.b16 %v2109, %v2108
        %v2136 = vpack.c.b16 %v2111, %v2110
        %v2137 = vpack.c.b16 %v2113, %v2112
        %v2138 = vpack.c.b16 %v2115, %v2114
        %v2139 = vpack.c.b16 %v2117, %v2116
        %v2140 = vpack.c.b16 %v2119, %v2118
        %v2141 = vpack.c.b16 %v2121, %v2120
        %v2142 = vpack.c.b16 %v2123, %v2122
        %v2143 = vpack.c.b16 %v2125, %v2124
        %v2144 = vpack.c.b16 %v2127, %v2126
        %v2145 = vpack.c.b16 %v2129, %v2128
        %v2162 = vunpack.c.l.b16 %v2087
        %v2163 = vunpack.c.l.b16 %v2090
        %v2164 = vpack.c.b16 %v2163, %v2162
        %v2166 = vunpack.c.l.b16 %v2094
        %v2167 = vunpack.c.l.b16 %v2097
        %v2168 = vpack.c.b16 %v2167, %v2166
        %s2170 = scalar_lea.vmem %s1, 384
        %v2171 = vld [vmem:[%s2170] sm:$0xf]
        %v2172 = vld [vmem:[%s2170 + $0x4] sm:$0xf]
        %v2173 = vld [vmem:[%s2170 + $0x8] sm:$0xf]
        %v2174 = vld [vmem:[%s2170 + $0xc] sm:$0xf]
        %v2175 = vld [vmem:[%s2170 + $0x10] sm:$0xf]
        %v2176 = vld [vmem:[%s2170 + $0x14] sm:$0xf]
        %v2177 = vld [vmem:[%s2170 + $0x18] sm:$0xf]
        %v2178 = vld [vmem:[%s2170 + $0x1c] sm:$0xf]
        %v2179 = vld [vmem:[%s2170 + $0x20] sm:$0xf]
        %v2180 = vld [vmem:[%s2170 + $0x24] sm:$0xf]
        %v2181 = vld [vmem:[%s2170 + $0x28] sm:$0xf]
        %v2182 = vld [vmem:[%s2170 + $0x2c] sm:$0xf]
        %v2183 = vld [vmem:[%s2170 + $0x30] sm:$0xf]
        %v2184 = vld [vmem:[%s2170 + $0x34] sm:$0xf]
        %v2185 = vld [vmem:[%s2170 + $0x38] sm:$0xf]
        %v2186 = vld [vmem:[%s2170 + $0x3c] sm:$0xf]
        %v2187 = vld [vmem:[%s2170 + $0x40] sm:$0xf]
        %v2188 = vld [vmem:[%s2170 + $0x44] sm:$0xf]
        %v2189 = vld [vmem:[%s2170 + $0x48] sm:$0xf]
        %v2190 = vld [vmem:[%s2170 + $0x4c] sm:$0xf]
        %v2191 = vld [vmem:[%s2170 + $0x50] sm:$0xf]
        %v2192 = vld [vmem:[%s2170 + $0x54] sm:$0xf]
        %v2193 = vld [vmem:[%s2170 + $0x58] sm:$0xf]
        %v2194 = vld [vmem:[%s2170 + $0x5c] sm:$0xf]
        %v2195 = vld [vmem:[%s2170 + $0x60] sm:$0xf]
        %v2196 = vld [vmem:[%s2170 + $0x64] sm:$0xf]
        %v2197 = vld [vmem:[%s2170 + $0x68] sm:$0xf]
        %v2198 = vld [vmem:[%s2170 + $0x6c] sm:$0xf]
        %v2199 = vld [vmem:[%s2170 + $0x70] sm:$0xf]
        %v2200 = vld [vmem:[%s2170 + $0x74] sm:$0xf]
        %v2201 = vld [vmem:[%s2170 + $0x78] sm:$0xf]
        %v2202 = vld [vmem:[%s2170 + $0x7c] sm:$0xf]
        %v2203 = vld [vmem:[%s2170 + $0x80] sm:$0xf]
        %v2204 = vld [vmem:[%s2170 + $0x84] sm:$0xf]
        %v2205 = vld [vmem:[%s2170 + $0x88] sm:$0xf]
        %v2206 = vld [vmem:[%s2170 + $0x8c] sm:$0xf]
        %v2207 = vld [vmem:[%s2170 + $0x90] sm:$0xf]
        %v2208 = vld [vmem:[%s2170 + $0x94] sm:$0xf]
        %v2209 = vld [vmem:[%s2170 + $0x98] sm:$0xf]
        %v2210 = vld [vmem:[%s2170 + $0x9c] sm:$0xf]
        %v2211 = vld [vmem:[%s2170 + $0xa0] sm:$0xf]
        %v2212 = vld [vmem:[%s2170 + $0xa4] sm:$0xf]
        %v2213 = vld [vmem:[%s2170 + $0xa8] sm:$0xf]
        %v2214 = vld [vmem:[%s2170 + $0xac] sm:$0xf]
        %v2215 = vld [vmem:[%s2170 + $0xb0] sm:$0xf]
        %v2216 = vld [vmem:[%s2170 + $0xb4] sm:$0xf]
        %v2217 = vld [vmem:[%s2170 + $0xb8] sm:$0xf]
        %v2218 = vld [vmem:[%s2170 + $0xbc] sm:$0xf]
        %v2267 = vunpack.c.l.b16 %v2171
        %v2268 = vunpack.c.l.b16 %v2172
        %v2269 = vunpack.c.l.b16 %v2173
        %v2270 = vunpack.c.l.b16 %v2174
        %v2271 = vunpack.c.l.b16 %v2175
        %v2272 = vunpack.c.l.b16 %v2176
        %v2273 = vunpack.c.l.b16 %v2177
        %v2274 = vunpack.c.l.b16 %v2178
        %v2275 = vunpack.c.l.b16 %v2179
        %v2276 = vunpack.c.l.b16 %v2180
        %v2277 = vunpack.c.l.b16 %v2181
        %v2278 = vunpack.c.l.b16 %v2182
        %v2279 = vunpack.c.l.b16 %v2183
        %v2280 = vunpack.c.l.b16 %v2184
        %v2281 = vunpack.c.l.b16 %v2185
        %v2282 = vunpack.c.l.b16 %v2186
        %v2283 = vunpack.c.l.b16 %v2187
        %v2284 = vunpack.c.l.b16 %v2188
        %v2285 = vunpack.c.l.b16 %v2189
        %v2286 = vunpack.c.l.b16 %v2190
        %v2287 = vunpack.c.l.b16 %v2191
        %v2288 = vunpack.c.l.b16 %v2192
        %v2289 = vunpack.c.l.b16 %v2193
        %v2290 = vunpack.c.l.b16 %v2194
        %v2291 = vunpack.c.l.b16 %v2195
        %v2292 = vunpack.c.l.b16 %v2196
        %v2293 = vunpack.c.l.b16 %v2197
        %v2294 = vunpack.c.l.b16 %v2198
        %v2295 = vunpack.c.l.b16 %v2199
        %v2296 = vunpack.c.l.b16 %v2200
        %v2297 = vunpack.c.l.b16 %v2201
        %v2298 = vunpack.c.l.b16 %v2202
        %v2299 = vunpack.c.l.b16 %v2203
        %v2300 = vunpack.c.l.b16 %v2204
        %v2301 = vunpack.c.l.b16 %v2205
        %v2302 = vunpack.c.l.b16 %v2206
        %v2303 = vunpack.c.l.b16 %v2207
        %v2304 = vunpack.c.l.b16 %v2208
        %v2305 = vunpack.c.l.b16 %v2209
        %v2306 = vunpack.c.l.b16 %v2210
        %v2307 = vunpack.c.l.b16 %v2211
        %v2308 = vunpack.c.l.b16 %v2212
        %v2309 = vunpack.c.l.b16 %v2213
        %v2310 = vunpack.c.l.b16 %v2214
        %v2311 = vunpack.c.l.b16 %v2215
        %v2312 = vunpack.c.l.b16 %v2216
        %v2313 = vunpack.c.l.b16 %v2217
        %v2314 = vunpack.c.l.b16 %v2218
        %v2315 = vpack.c.b16 %v2268, %v2267
        %v2316 = vpack.c.b16 %v2270, %v2269
        %v2317 = vpack.c.b16 %v2272, %v2271
        %v2318 = vpack.c.b16 %v2274, %v2273
        %v2319 = vpack.c.b16 %v2276, %v2275
        %v2320 = vpack.c.b16 %v2278, %v2277
        %v2321 = vpack.c.b16 %v2280, %v2279
        %v2322 = vpack.c.b16 %v2282, %v2281
        %v2323 = vpack.c.b16 %v2284, %v2283
        %v2324 = vpack.c.b16 %v2286, %v2285
        %v2325 = vpack.c.b16 %v2288, %v2287
        %v2326 = vpack.c.b16 %v2290, %v2289
        %v2327 = vpack.c.b16 %v2292, %v2291
        %v2328 = vpack.c.b16 %v2294, %v2293
        %v2329 = vpack.c.b16 %v2296, %v2295
        %v2330 = vpack.c.b16 %v2298, %v2297
        %v2331 = vpack.c.b16 %v2300, %v2299
        %v2332 = vpack.c.b16 %v2302, %v2301
        %v2333 = vpack.c.b16 %v2304, %v2303
        %v2334 = vpack.c.b16 %v2306, %v2305
        %v2335 = vpack.c.b16 %v2308, %v2307
        %v2336 = vpack.c.b16 %v2310, %v2309
        %v2337 = vpack.c.b16 %v2312, %v2311
        %v2338 = vpack.c.b16 %v2314, %v2313
        %2363 = vmatpush.bf16.msra.mxu0 %v2322
        %2364 = vmatpush.bf16.msra.mxu0 %v2321
        %2365 = vmatpush.bf16.msra.mxu0 %v2320
        %2366 = vmatpush.bf16.msra.mxu0 %v2319
        %2367 = vmatpush.bf16.msra.mxu0 %v2318
        %2368 = vmatpush.bf16.msra.mxu0 %v2317
        %2369 = vmatpush.bf16.msra.mxu0 %v2316
        %2370 = vmatpush.bf16.msra.mxu0 %v2315
        %2371 = vmatmul.bf16.gmra.mxu0 %v2130
        %v2372 = vpop.f32.mrf.mxu0
        %v2373 = vadd.f32 0.0, %v2372
        %v2374 = vpop.f32.mrf.mxu0
        %v2375 = vadd.f32 0.0, %v2374
        %2376 = vmatmul.bf16.gmra.mxu0 %v2131
        %v2377 = vpop.f32.mrf.mxu0
        %v2378 = vadd.f32 0.0, %v2377
        %v2379 = vpop.f32.mrf.mxu0
        %v2380 = vadd.f32 0.0, %v2379
        %2381 = vmatmul.bf16.gmra.mxu0 %v2132
        %v2382 = vpop.f32.mrf.mxu0
        %v2383 = vadd.f32 0.0, %v2382
        %v2384 = vpop.f32.mrf.mxu0
        %v2385 = vadd.f32 0.0, %v2384
        %2386 = vmatmul.bf16.gmra.mxu0 %v2133
        %v2387 = vpop.f32.mrf.mxu0
        %v2388 = vadd.f32 0.0, %v2387
        %v2389 = vpop.f32.mrf.mxu0
        %v2390 = vadd.f32 0.0, %v2389
        %2391 = vmatmul.bf16.gmra.mxu0 %v2134
        %v2392 = vpop.f32.mrf.mxu0
        %v2393 = vadd.f32 0.0, %v2392
        %v2394 = vpop.f32.mrf.mxu0
        %v2395 = vadd.f32 0.0, %v2394
        %2396 = vmatmul.bf16.gmra.mxu0 %v2135
        %v2397 = vpop.f32.mrf.mxu0
        %v2398 = vadd.f32 0.0, %v2397
        %v2399 = vpop.f32.mrf.mxu0
        %v2400 = vadd.f32 0.0, %v2399
        %2401 = vmatmul.bf16.gmra.mxu0 %v2136
        %v2402 = vpop.f32.mrf.mxu0
        %v2403 = vadd.f32 0.0, %v2402
        %v2404 = vpop.f32.mrf.mxu0
        %v2405 = vadd.f32 0.0, %v2404
        %2406 = vmatmul.bf16.gmra.mxu0 %v2137
        %v2407 = vpop.f32.mrf.mxu0
        %v2408 = vadd.f32 0.0, %v2407
        %v2409 = vpop.f32.mrf.mxu0
        %v2410 = vadd.f32 0.0, %v2409
        %2411 = vmatmul.bf16.gmra.mxu0 %v2138
        %v2412 = vpop.f32.mrf.mxu0
        %v2413 = vadd.f32 0.0, %v2412
        %v2414 = vpop.f32.mrf.mxu0
        %v2415 = vadd.f32 0.0, %v2414
        %2416 = vmatmul.bf16.gmra.mxu0 %v2139
        %v2417 = vpop.f32.mrf.mxu0
        %v2418 = vadd.f32 0.0, %v2417
        %v2419 = vpop.f32.mrf.mxu0
        %v2420 = vadd.f32 0.0, %v2419
        %2421 = vmatmul.bf16.gmra.mxu0 %v2140
        %v2422 = vpop.f32.mrf.mxu0
        %v2423 = vadd.f32 0.0, %v2422
        %v2424 = vpop.f32.mrf.mxu0
        %v2425 = vadd.f32 0.0, %v2424
        %2426 = vmatmul.bf16.gmra.mxu0 %v2141
        %v2427 = vpop.f32.mrf.mxu0
        %v2428 = vadd.f32 0.0, %v2427
        %v2429 = vpop.f32.mrf.mxu0
        %v2430 = vadd.f32 0.0, %v2429
        %2431 = vmatmul.bf16.gmra.mxu0 %v2142
        %v2432 = vpop.f32.mrf.mxu0
        %v2433 = vadd.f32 0.0, %v2432
        %v2434 = vpop.f32.mrf.mxu0
        %v2435 = vadd.f32 0.0, %v2434
        %2436 = vmatmul.bf16.gmra.mxu0 %v2143
        %v2437 = vpop.f32.mrf.mxu0
        %v2438 = vadd.f32 0.0, %v2437
        %v2439 = vpop.f32.mrf.mxu0
        %v2440 = vadd.f32 0.0, %v2439
        %2441 = vmatmul.bf16.gmra.mxu0 %v2144
        %v2442 = vpop.f32.mrf.mxu0
        %v2443 = vadd.f32 0.0, %v2442
        %v2444 = vpop.f32.mrf.mxu0
        %v2445 = vadd.f32 0.0, %v2444
        %2446 = vmatmul.bf16.gmra.mxu0 %v2145
        %v2447 = vpop.f32.mrf.mxu0
        %v2448 = vadd.f32 0.0, %v2447
        %v2449 = vpop.f32.mrf.mxu0
        %v2450 = vadd.f32 0.0, %v2449
        %2451 = vdwg.mxu0
        %2452 = vmatpush.bf16.msra.mxu0 %v2330
        %2453 = vmatpush.bf16.msra.mxu0 %v2329
        %2454 = vmatpush.bf16.msra.mxu0 %v2328
        %2455 = vmatpush.bf16.msra.mxu0 %v2327
        %2456 = vmatpush.bf16.msra.mxu0 %v2326
        %2457 = vmatpush.bf16.msra.mxu0 %v2325
        %2458 = vmatpush.bf16.msra.mxu0 %v2324
        %2459 = vmatpush.bf16.msra.mxu0 %v2323
        %2460 = vmatmul.bf16.gmra.mxu0 %v2131
        %v2461 = vpop.f32.mrf.mxu0
        %v2462 = vadd.f32 %v2373, %v2461
        %v2463 = vpop.f32.mrf.mxu0
        %v2464 = vadd.f32 %v2375, %v2463
        %2465 = vmatmul.bf16.gmra.mxu0 %v2132
        %v2466 = vpop.f32.mrf.mxu0
        %v2467 = vadd.f32 %v2378, %v2466
        %v2468 = vpop.f32.mrf.mxu0
        %v2469 = vadd.f32 %v2380, %v2468
        %2470 = vmatmul.bf16.gmra.mxu0 %v2133
        %v2471 = vpop.f32.mrf.mxu0
        %v2472 = vadd.f32 %v2383, %v2471
        %v2473 = vpop.f32.mrf.mxu0
        %v2474 = vadd.f32 %v2385, %v2473
        %2475 = vmatmul.bf16.gmra.mxu0 %v2134
        %v2476 = vpop.f32.mrf.mxu0
        %v2477 = vadd.f32 %v2388, %v2476
        %v2478 = vpop.f32.mrf.mxu0
        %v2479 = vadd.f32 %v2390, %v2478
        %2480 = vmatmul.bf16.gmra.mxu0 %v2135
        %v2481 = vpop.f32.mrf.mxu0
        %v2482 = vadd.f32 %v2393, %v2481
        %v2483 = vpop.f32.mrf.mxu0
        %v2484 = vadd.f32 %v2395, %v2483
        %2485 = vmatmul.bf16.gmra.mxu0 %v2136
        %v2486 = vpop.f32.mrf.mxu0
        %v2487 = vadd.f32 %v2398, %v2486
        %v2488 = vpop.f32.mrf.mxu0
        %v2489 = vadd.f32 %v2400, %v2488
        %2490 = vmatmul.bf16.gmra.mxu0 %v2137
        %v2491 = vpop.f32.mrf.mxu0
        %v2492 = vadd.f32 %v2403, %v2491
        %v2493 = vpop.f32.mrf.mxu0
        %v2494 = vadd.f32 %v2405, %v2493
        %2495 = vmatmul.bf16.gmra.mxu0 %v2138
        %v2496 = vpop.f32.mrf.mxu0
        %v2497 = vadd.f32 %v2408, %v2496
        %v2498 = vpop.f32.mrf.mxu0
        %v2499 = vadd.f32 %v2410, %v2498
        %2500 = vmatmul.bf16.gmra.mxu0 %v2139
        %v2501 = vpop.f32.mrf.mxu0
        %v2502 = vadd.f32 %v2413, %v2501
        %v2503 = vpop.f32.mrf.mxu0
        %v2504 = vadd.f32 %v2415, %v2503
        %2505 = vmatmul.bf16.gmra.mxu0 %v2140
        %v2506 = vpop.f32.mrf.mxu0
        %v2507 = vadd.f32 %v2418, %v2506
        %v2508 = vpop.f32.mrf.mxu0
        %v2509 = vadd.f32 %v2420, %v2508
        %2510 = vmatmul.bf16.gmra.mxu0 %v2141
        %v2511 = vpop.f32.mrf.mxu0
        %v2512 = vadd.f32 %v2423, %v2511
        %v2513 = vpop.f32.mrf.mxu0
        %v2514 = vadd.f32 %v2425, %v2513
        %2515 = vmatmul.bf16.gmra.mxu0 %v2142
        %v2516 = vpop.f32.mrf.mxu0
        %v2517 = vadd.f32 %v2428, %v2516
        %v2518 = vpop.f32.mrf.mxu0
        %v2519 = vadd.f32 %v2430, %v2518
        %2520 = vmatmul.bf16.gmra.mxu0 %v2143
        %v2521 = vpop.f32.mrf.mxu0
        %v2522 = vadd.f32 %v2433, %v2521
        %v2523 = vpop.f32.mrf.mxu0
        %v2524 = vadd.f32 %v2435, %v2523
        %2525 = vmatmul.bf16.gmra.mxu0 %v2144
        %v2526 = vpop.f32.mrf.mxu0
        %v2527 = vadd.f32 %v2438, %v2526
        %v2528 = vpop.f32.mrf.mxu0
        %v2529 = vadd.f32 %v2440, %v2528
        %2530 = vmatmul.bf16.gmra.mxu0 %v2145
        %v2531 = vpop.f32.mrf.mxu0
        %v2532 = vadd.f32 %v2443, %v2531
        %v2533 = vpop.f32.mrf.mxu0
        %v2534 = vadd.f32 %v2445, %v2533
        %2535 = vmatmul.bf16.gmra.mxu0 %v2164
        %v2536 = vpop.f32.mrf.mxu0
        %v2537 = vadd.f32 %v2448, %v2536
        %v2538 = vpop.f32.mrf.mxu0
        %v2539 = vadd.f32 %v2450, %v2538
        %2540 = vdwg.mxu0
        %2541 = vmatpush.bf16.msra.mxu0 %v2338
        %2542 = vmatpush.bf16.msra.mxu0 %v2337
        %2543 = vmatpush.bf16.msra.mxu0 %v2336
        %2544 = vmatpush.bf16.msra.mxu0 %v2335
        %2545 = vmatpush.bf16.msra.mxu0 %v2334
        %2546 = vmatpush.bf16.msra.mxu0 %v2333
        %2547 = vmatpush.bf16.msra.mxu0 %v2332
        %2548 = vmatpush.bf16.msra.mxu0 %v2331
        %2549 = vmatmul.bf16.gmra.mxu0 %v2132
        %v2550 = vpop.f32.mrf.mxu0
        %v2551 = vadd.f32 %v2462, %v2550
        %v2552 = vpop.f32.mrf.mxu0
        %v2553 = vadd.f32 %v2464, %v2552
        %2554 = vmatmul.bf16.gmra.mxu0 %v2133
        %v2555 = vpop.f32.mrf.mxu0
        %v2556 = vadd.f32 %v2467, %v2555
        %v2557 = vpop.f32.mrf.mxu0
        %v2558 = vadd.f32 %v2469, %v2557
        %2559 = vmatmul.bf16.gmra.mxu0 %v2134
        %v2560 = vpop.f32.mrf.mxu0
        %v2561 = vadd.f32 %v2472, %v2560
        %v2562 = vpop.f32.mrf.mxu0
        %v2563 = vadd.f32 %v2474, %v2562
        %2564 = vmatmul.bf16.gmra.mxu0 %v2135
        %v2565 = vpop.f32.mrf.mxu0
        %v2566 = vadd.f32 %v2477, %v2565
        %v2567 = vpop.f32.mrf.mxu0
        %v2568 = vadd.f32 %v2479, %v2567
        %2569 = vmatmul.bf16.gmra.mxu0 %v2136
        %v2570 = vpop.f32.mrf.mxu0
        %v2571 = vadd.f32 %v2482, %v2570
        %v2572 = vpop.f32.mrf.mxu0
        %v2573 = vadd.f32 %v2484, %v2572
        %2574 = vmatmul.bf16.gmra.mxu0 %v2137
        %v2575 = vpop.f32.mrf.mxu0
        %v2576 = vadd.f32 %v2487, %v2575
        %v2577 = vpop.f32.mrf.mxu0
        %v2578 = vadd.f32 %v2489, %v2577
        %2579 = vmatmul.bf16.gmra.mxu0 %v2138
        %v2580 = vpop.f32.mrf.mxu0
        %v2581 = vadd.f32 %v2492, %v2580
        %v2582 = vpop.f32.mrf.mxu0
        %v2583 = vadd.f32 %v2494, %v2582
        %2584 = vmatmul.bf16.gmra.mxu0 %v2139
        %v2585 = vpop.f32.mrf.mxu0
        %v2586 = vadd.f32 %v2497, %v2585
        %v2587 = vpop.f32.mrf.mxu0
        %v2588 = vadd.f32 %v2499, %v2587
        %2589 = vmatmul.bf16.gmra.mxu0 %v2140
        %v2590 = vpop.f32.mrf.mxu0
        %v2591 = vadd.f32 %v2502, %v2590
        %v2592 = vpop.f32.mrf.mxu0
        %v2593 = vadd.f32 %v2504, %v2592
        %2594 = vmatmul.bf16.gmra.mxu0 %v2141
        %v2595 = vpop.f32.mrf.mxu0
        %v2596 = vadd.f32 %v2507, %v2595
        %v2597 = vpop.f32.mrf.mxu0
        %v2598 = vadd.f32 %v2509, %v2597
        %2599 = vmatmul.bf16.gmra.mxu0 %v2142
        %v2600 = vpop.f32.mrf.mxu0
        %v2601 = vadd.f32 %v2512, %v2600
        %v2602 = vpop.f32.mrf.mxu0
        %v2603 = vadd.f32 %v2514, %v2602
        %2604 = vmatmul.bf16.gmra.mxu0 %v2143
        %v2605 = vpop.f32.mrf.mxu0
        %v2606 = vadd.f32 %v2517, %v2605
        %v2607 = vpop.f32.mrf.mxu0
        %v2608 = vadd.f32 %v2519, %v2607
        %2609 = vmatmul.bf16.gmra.mxu0 %v2144
        %v2610 = vpop.f32.mrf.mxu0
        %v2611 = vadd.f32 %v2522, %v2610
        %v2612 = vpop.f32.mrf.mxu0
        %v2613 = vadd.f32 %v2524, %v2612
        %2614 = vmatmul.bf16.gmra.mxu0 %v2145
        %v2615 = vpop.f32.mrf.mxu0
        %v2616 = vadd.f32 %v2527, %v2615
        %v2617 = vpop.f32.mrf.mxu0
        %v2618 = vadd.f32 %v2529, %v2617
        %2619 = vmatmul.bf16.gmra.mxu0 %v2164
        %v2620 = vpop.f32.mrf.mxu0
        %v2621 = vadd.f32 %v2532, %v2620
        %v2622 = vpop.f32.mrf.mxu0
        %v2623 = vadd.f32 %v2534, %v2622
        %2624 = vmatmul.bf16.gmra.mxu0 %v2168
        %v2625 = vpop.f32.mrf.mxu0
        %v2626 = vadd.f32 %v2537, %v2625
        %v2627 = vpop.f32.mrf.mxu0
        %v2628 = vadd.f32 %v2539, %v2627
        %2629 = vdwg.mxu0
        %v2630 = vadd.f32 %v1836, %v2551
        %v2631 = vadd.f32 %v1838, %v2553
        %v2632 = vadd.f32 %v1841, %v2556
        %v2633 = vadd.f32 %v1843, %v2558
        %v2634 = vadd.f32 %v1846, %v2561
        %v2635 = vadd.f32 %v1848, %v2563
        %v2636 = vadd.f32 %v1851, %v2566
        %v2637 = vadd.f32 %v1853, %v2568
        %v2638 = vadd.f32 %v1856, %v2571
        %v2639 = vadd.f32 %v1858, %v2573
        %v2640 = vadd.f32 %v1861, %v2576
        %v2641 = vadd.f32 %v1863, %v2578
        %v2642 = vadd.f32 %v1866, %v2581
        %v2643 = vadd.f32 %v1868, %v2583
        %v2644 = vadd.f32 %v1871, %v2586
        %v2645 = vadd.f32 %v1873, %v2588
        %v2646 = vadd.f32 %v1876, %v2591
        %v2647 = vadd.f32 %v1878, %v2593
        %v2648 = vadd.f32 %v1881, %v2596
        %v2649 = vadd.f32 %v1883, %v2598
        %v2650 = vadd.f32 %v1886, %v2601
        %v2651 = vadd.f32 %v1888, %v2603
        %v2652 = vadd.f32 %v1891, %v2606
        %v2653 = vadd.f32 %v1893, %v2608
        %v2654 = vadd.f32 %v1896, %v2611
        %v2655 = vadd.f32 %v1898, %v2613
        %v2656 = vadd.f32 %v1901, %v2616
        %v2657 = vadd.f32 %v1903, %v2618
        %v2658 = vadd.f32 %v1906, %v2621
        %v2659 = vadd.f32 %v1908, %v2623
        %v2660 = vadd.f32 %v1911, %v2626
        %v2661 = vadd.f32 %v1913, %v2628
        %v2662 = vld [vmem:[%s2] sm:$0x1]
        %v2664 = vperm.slane %v2662, 0
        %v2666 = vmul.f32 %v2630, %v2664
        %v2667 = vmul.f32 %v2631, %v2664
        %v2668 = vmul.f32 %v2632, %v2664
        %v2669 = vmul.f32 %v2633, %v2664
        %v2670 = vmul.f32 %v2634, %v2664
        %v2671 = vmul.f32 %v2635, %v2664
        %v2672 = vmul.f32 %v2636, %v2664
        %v2673 = vmul.f32 %v2637, %v2664
        %v2674 = vmul.f32 %v2638, %v2664
        %v2675 = vmul.f32 %v2639, %v2664
        %v2676 = vmul.f32 %v2640, %v2664
        %v2677 = vmul.f32 %v2641, %v2664
        %v2678 = vmul.f32 %v2642, %v2664
        %v2679 = vmul.f32 %v2643, %v2664
        %v2680 = vmul.f32 %v2644, %v2664
        %v2681 = vmul.f32 %v2645, %v2664
        %v2682 = vmul.f32 %v2646, %v2664
        %v2683 = vmul.f32 %v2647, %v2664
        %v2684 = vmul.f32 %v2648, %v2664
        %v2685 = vmul.f32 %v2649, %v2664
        %v2686 = vmul.f32 %v2650, %v2664
        %v2687 = vmul.f32 %v2651, %v2664
        %v2688 = vmul.f32 %v2652, %v2664
        %v2689 = vmul.f32 %v2653, %v2664
        %v2690 = vmul.f32 %v2654, %v2664
        %v2691 = vmul.f32 %v2655, %v2664
        %v2692 = vmul.f32 %v2656, %v2664
        %v2693 = vmul.f32 %v2657, %v2664
        %v2694 = vmul.f32 %v2658, %v2664
        %v2695 = vmul.f32 %v2659, %v2664
        %v2696 = vmul.f32 %v2660, %v2664
        %v2697 = vmul.f32 %v2661, %v2664
        %v2698 = vld [vmem:[%s3] sm:$0x1]
        %v2700 = vperm.slane %v2698, 0
        %v2702 = vadd.f32 %v2666, %v2700
        %v2703 = vadd.f32 %v2667, %v2700
        %v2704 = vadd.f32 %v2668, %v2700
        %v2705 = vadd.f32 %v2669, %v2700
        %v2706 = vadd.f32 %v2670, %v2700
        %v2707 = vadd.f32 %v2671, %v2700
        %v2708 = vadd.f32 %v2672, %v2700
        %v2709 = vadd.f32 %v2673, %v2700
        %v2710 = vadd.f32 %v2674, %v2700
        %v2711 = vadd.f32 %v2675, %v2700
        %v2712 = vadd.f32 %v2676, %v2700
        %v2713 = vadd.f32 %v2677, %v2700
        %v2714 = vadd.f32 %v2678, %v2700
        %v2715 = vadd.f32 %v2679, %v2700
        %v2716 = vadd.f32 %v2680, %v2700
        %v2717 = vadd.f32 %v2681, %v2700
        %v2718 = vadd.f32 %v2682, %v2700
        %v2719 = vadd.f32 %v2683, %v2700
        %v2720 = vadd.f32 %v2684, %v2700
        %v2721 = vadd.f32 %v2685, %v2700
        %v2722 = vadd.f32 %v2686, %v2700
        %v2723 = vadd.f32 %v2687, %v2700
        %v2724 = vadd.f32 %v2688, %v2700
        %v2725 = vadd.f32 %v2689, %v2700
        %v2726 = vadd.f32 %v2690, %v2700
        %v2727 = vadd.f32 %v2691, %v2700
        %v2728 = vadd.f32 %v2692, %v2700
        %v2729 = vadd.f32 %v2693, %v2700
        %v2730 = vadd.f32 %v2694, %v2700
        %v2731 = vadd.f32 %v2695, %v2700
        %v2732 = vadd.f32 %v2696, %v2700
        %v2733 = vadd.f32 %v2697, %v2700
        %v2734 = vmax.f32 %v2702, 0.0
        %v2735 = vmax.f32 %v2703, 0.0
        %v2736 = vmax.f32 %v2704, 0.0
        %v2737 = vmax.f32 %v2705, 0.0
        %v2738 = vmax.f32 %v2706, 0.0
        %v2739 = vmax.f32 %v2707, 0.0
        %v2740 = vmax.f32 %v2708, 0.0
        %v2741 = vmax.f32 %v2709, 0.0
        %v2742 = vmax.f32 %v2710, 0.0
        %v2743 = vmax.f32 %v2711, 0.0
        %v2744 = vmax.f32 %v2712, 0.0
        %v2745 = vmax.f32 %v2713, 0.0
        %v2746 = vmax.f32 %v2714, 0.0
        %v2747 = vmax.f32 %v2715, 0.0
        %v2748 = vmax.f32 %v2716, 0.0
        %v2749 = vmax.f32 %v2717, 0.0
        %v2750 = vmax.f32 %v2718, 0.0
        %v2751 = vmax.f32 %v2719, 0.0
        %v2752 = vmax.f32 %v2720, 0.0
        %v2753 = vmax.f32 %v2721, 0.0
        %v2754 = vmax.f32 %v2722, 0.0
        %v2755 = vmax.f32 %v2723, 0.0
        %v2756 = vmax.f32 %v2724, 0.0
        %v2757 = vmax.f32 %v2725, 0.0
        %v2758 = vmax.f32 %v2726, 0.0
        %v2759 = vmax.f32 %v2727, 0.0
        %v2760 = vmax.f32 %v2728, 0.0
        %v2761 = vmax.f32 %v2729, 0.0
        %v2762 = vmax.f32 %v2730, 0.0
        %v2763 = vmax.f32 %v2731, 0.0
        %v2764 = vmax.f32 %v2732, 0.0
        %v2765 = vmax.f32 %v2733, 0.0
        %2766 = vst [vmem:[#allocation2] sm:$0xf] 0
        %2767 = vst [vmem:[#allocation2 + $0x4] sm:$0xf] 0
        %2768 = vst [vmem:[#allocation2 + $0x8] sm:$0xf] 0
        %2769 = vst [vmem:[#allocation2 + $0xc] sm:$0xf] 0
        %2770 = vst [vmem:[#allocation2 + $0x10] sm:$0xf] 0
        %2771 = vst [vmem:[#allocation2 + $0x14] sm:$0xf] 0
        %s2772 = scalar_lea.vmem [#allocation2], 408
        %2773 = vst [vmem:[%s2772] sm:$0xf] 0
        %2774 = vst [vmem:[%s2772 + $0x4] sm:$0xf] 0
        %2775 = vst [vmem:[%s2772 + $0x8] sm:$0xf] 0
        %2776 = vst [vmem:[%s2772 + $0xc] sm:$0xf] 0
        %2777 = vst [vmem:[%s2772 + $0x10] sm:$0xf] 0
        %2778 = vst [vmem:[%s2772 + $0x14] sm:$0xf] 0
        %vm2779 = vcmask 1043459
        %vm2780 = vsmask.f32 7950
        %vm2781 = vmand %vm2779, %vm2780
        %v2782 = vld [vmem:[#allocation2 + $0x4] sm:$0x8]
        %v2783 = vsel %vm2781, 0, %v2782
        %2784 = vst [vmem:[#allocation2 + $0x4] sm:$0x8] %v2783
        %v2785 = vld [vmem:[#allocation2 + $0x1c] sm:$0x8]
        %v2786 = vsel %vm2781, 0, %v2785
        %2787 = vst [vmem:[#allocation2 + $0x1c] sm:$0x8] %v2786
        %v2788 = vld [vmem:[#allocation2 + $0x34] sm:$0x8]
        %v2789 = vsel %vm2781, 0, %v2788
        %2790 = vst [vmem:[#allocation2 + $0x34] sm:$0x8] %v2789
        %v2791 = vld [vmem:[#allocation2 + $0x4c] sm:$0x8]
        %v2792 = vsel %vm2781, 0, %v2791
        %2793 = vst [vmem:[#allocation2 + $0x4c] sm:$0x8] %v2792
        %v2794 = vld [vmem:[#allocation2 + $0x64] sm:$0x8]
        %v2795 = vsel %vm2781, 0, %v2794
        %2796 = vst [vmem:[#allocation2 + $0x64] sm:$0x8] %v2795
        %v2797 = vld [vmem:[#allocation2 + $0x7c] sm:$0x8]
        %v2798 = vsel %vm2781, 0, %v2797
        %2799 = vst [vmem:[#allocation2 + $0x7c] sm:$0x8] %v2798
        %v2800 = vld [vmem:[#allocation2 + $0x94] sm:$0x8]
        %v2801 = vsel %vm2781, 0, %v2800
        %2802 = vst [vmem:[#allocation2 + $0x94] sm:$0x8] %v2801
        %v2803 = vld [vmem:[#allocation2 + $0xac] sm:$0x8]
        %v2804 = vsel %vm2781, 0, %v2803
        %2805 = vst [vmem:[#allocation2 + $0xac] sm:$0x8] %v2804
        %v2806 = vld [vmem:[#allocation2 + $0xc4] sm:$0x8]
        %v2807 = vsel %vm2781, 0, %v2806
        %2808 = vst [vmem:[#allocation2 + $0xc4] sm:$0x8] %v2807
        %v2809 = vld [vmem:[#allocation2 + $0xdc] sm:$0x8]
        %v2810 = vsel %vm2781, 0, %v2809
        %2811 = vst [vmem:[#allocation2 + $0xdc] sm:$0x8] %v2810
        %v2812 = vld [vmem:[#allocation2 + $0xf4] sm:$0x8]
        %v2813 = vsel %vm2781, 0, %v2812
        %2814 = vst [vmem:[#allocation2 + $0xf4] sm:$0x8] %v2813
        %v2815 = vld [vmem:[#allocation2 + $0x10c] sm:$0x8]
        %v2816 = vsel %vm2781, 0, %v2815
        %2817 = vst [vmem:[#allocation2 + $0x10c] sm:$0x8] %v2816
        %v2818 = vld [vmem:[#allocation2 + $0x124] sm:$0x8]
        %v2819 = vsel %vm2781, 0, %v2818
        %2820 = vst [vmem:[#allocation2 + $0x124] sm:$0x8] %v2819
        %v2821 = vld [vmem:[#allocation2 + $0x13c] sm:$0x8]
        %v2822 = vsel %vm2781, 0, %v2821
        %2823 = vst [vmem:[#allocation2 + $0x13c] sm:$0x8] %v2822
        %v2824 = vld [vmem:[#allocation2 + $0x154] sm:$0x8]
        %v2825 = vsel %vm2781, 0, %v2824
        %2826 = vst [vmem:[#allocation2 + $0x154] sm:$0x8] %v2825
        %v2827 = vld [vmem:[#allocation2 + $0x16c] sm:$0x8]
        %v2828 = vsel %vm2781, 0, %v2827
        %2829 = vst [vmem:[#allocation2 + $0x16c] sm:$0x8] %v2828
        %v2830 = vld [vmem:[#allocation2 + $0x184] sm:$0x8]
        %v2831 = vsel %vm2781, 0, %v2830
        %2832 = vst [vmem:[#allocation2 + $0x184] sm:$0x8] %v2831
        %v2833 = vld [vmem:[#allocation2 + $0x19c] sm:$0x8]
        %v2834 = vsel %vm2781, 0, %v2833
        %2835 = vst [vmem:[#allocation2 + $0x19c] sm:$0x8] %v2834
        %vm2836 = vcmask 1040384
        %vm2837 = vsmask.f32 256
        %vm2838 = vmand %vm2836, %vm2837
        %v2839 = vld [vmem:[#allocation2 + $0x10] sm:$0x1]
        %v2840 = vsel %vm2838, 0, %v2839
        %2841 = vst [vmem:[#allocation2 + $0x10] sm:$0x1] %v2840
        %v2842 = vld [vmem:[#allocation2 + $0x28] sm:$0x1]
        %v2843 = vsel %vm2838, 0, %v2842
        %2844 = vst [vmem:[#allocation2 + $0x28] sm:$0x1] %v2843
        %v2845 = vld [vmem:[#allocation2 + $0x40] sm:$0x1]
        %v2846 = vsel %vm2838, 0, %v2845
        %2847 = vst [vmem:[#allocation2 + $0x40] sm:$0x1] %v2846
        %v2848 = vld [vmem:[#allocation2 + $0x58] sm:$0x1]
        %v2849 = vsel %vm2838, 0, %v2848
        %2850 = vst [vmem:[#allocation2 + $0x58] sm:$0x1] %v2849
        %v2851 = vld [vmem:[#allocation2 + $0x70] sm:$0x1]
        %v2852 = vsel %vm2838, 0, %v2851
        %2853 = vst [vmem:[#allocation2 + $0x70] sm:$0x1] %v2852
        %v2854 = vld [vmem:[#allocation2 + $0x88] sm:$0x1]
        %v2855 = vsel %vm2838, 0, %v2854
        %2856 = vst [vmem:[#allocation2 + $0x88] sm:$0x1] %v2855
        %v2857 = vld [vmem:[#allocation2 + $0xa0] sm:$0x1]
        %v2858 = vsel %vm2838, 0, %v2857
        %2859 = vst [vmem:[#allocation2 + $0xa0] sm:$0x1] %v2858
        %v2860 = vld [vmem:[#allocation2 + $0xb8] sm:$0x1]
        %v2861 = vsel %vm2838, 0, %v2860
        %2862 = vst [vmem:[#allocation2 + $0xb8] sm:$0x1] %v2861
        %v2863 = vld [vmem:[#allocation2 + $0xd0] sm:$0x1]
        %v2864 = vsel %vm2838, 0, %v2863
        %2865 = vst [vmem:[#allocation2 + $0xd0] sm:$0x1] %v2864
        %v2866 = vld [vmem:[#allocation2 + $0xe8] sm:$0x1]
        %v2867 = vsel %vm2838, 0, %v2866
        %2868 = vst [vmem:[#allocation2 + $0xe8] sm:$0x1] %v2867
        %v2869 = vld [vmem:[#allocation2 + $0x100] sm:$0x1]
        %v2870 = vsel %vm2838, 0, %v2869
        %2871 = vst [vmem:[#allocation2 + $0x100] sm:$0x1] %v2870
        %v2872 = vld [vmem:[#allocation2 + $0x118] sm:$0x1]
        %v2873 = vsel %vm2838, 0, %v2872
        %2874 = vst [vmem:[#allocation2 + $0x118] sm:$0x1] %v2873
        %v2875 = vld [vmem:[#allocation2 + $0x130] sm:$0x1]
        %v2876 = vsel %vm2838, 0, %v2875
        %2877 = vst [vmem:[#allocation2 + $0x130] sm:$0x1] %v2876
        %v2878 = vld [vmem:[#allocation2 + $0x148] sm:$0x1]
        %v2879 = vsel %vm2838, 0, %v2878
        %2880 = vst [vmem:[#allocation2 + $0x148] sm:$0x1] %v2879
        %v2881 = vld [vmem:[#allocation2 + $0x160] sm:$0x1]
        %v2882 = vsel %vm2838, 0, %v2881
        %2883 = vst [vmem:[#allocation2 + $0x160] sm:$0x1] %v2882
        %v2884 = vld [vmem:[#allocation2 + $0x178] sm:$0x1]
        %v2885 = vsel %vm2838, 0, %v2884
        %2886 = vst [vmem:[#allocation2 + $0x178] sm:$0x1] %v2885
        %v2887 = vld [vmem:[#allocation2 + $0x190] sm:$0x1]
        %v2888 = vsel %vm2838, 0, %v2887
        %2889 = vst [vmem:[#allocation2 + $0x190] sm:$0x1] %v2888
        %v2890 = vld [vmem:[#allocation2 + $0x1a8] sm:$0x1]
        %v2891 = vsel %vm2838, 0, %v2890
        %2892 = vst [vmem:[#allocation2 + $0x1a8] sm:$0x1] %v2891
        %v2893 = vpack.c.bf16 %v2734, %v2734
        %v2894 = vpack.c.bf16 %v2735, %v2735
        %v2895 = vpack.c.bf16 %v2736, %v2736
        %v2896 = vpack.c.bf16 %v2737, %v2737
        %v2897 = vpack.c.bf16 %v2738, %v2738
        %v2898 = vpack.c.bf16 %v2739, %v2739
        %v2899 = vpack.c.bf16 %v2740, %v2740
        %v2900 = vpack.c.bf16 %v2741, %v2741
        %v2901 = vpack.c.bf16 %v2742, %v2742
        %v2902 = vpack.c.bf16 %v2743, %v2743
        %v2903 = vpack.c.bf16 %v2744, %v2744
        %v2904 = vpack.c.bf16 %v2745, %v2745
        %v2905 = vpack.c.bf16 %v2746, %v2746
        %v2906 = vpack.c.bf16 %v2747, %v2747
        %v2907 = vpack.c.bf16 %v2748, %v2748
        %v2908 = vpack.c.bf16 %v2749, %v2749
        %v2909 = vpack.c.bf16 %v2750, %v2750
        %v2910 = vpack.c.bf16 %v2751, %v2751
        %v2911 = vpack.c.bf16 %v2752, %v2752
        %v2912 = vpack.c.bf16 %v2753, %v2753
        %v2913 = vpack.c.bf16 %v2754, %v2754
        %v2914 = vpack.c.bf16 %v2755, %v2755
        %v2915 = vpack.c.bf16 %v2756, %v2756
        %v2916 = vpack.c.bf16 %v2757, %v2757
        %v2917 = vpack.c.bf16 %v2758, %v2758
        %v2918 = vpack.c.bf16 %v2759, %v2759
        %v2919 = vpack.c.bf16 %v2760, %v2760
        %v2920 = vpack.c.bf16 %v2761, %v2761
        %v2921 = vpack.c.bf16 %v2762, %v2762
        %v2922 = vpack.c.bf16 %v2763, %v2763
        %v2923 = vpack.c.bf16 %v2764, %v2764
        %v2924 = vpack.c.bf16 %v2765, %v2765
        %s2925 = scalar_lea.vmem [#allocation2], 24
        %2926 = vst [vmem:[%s2925 + $0x8] sm:$0xf] %v2893
        %2927 = vst [vmem:[%s2925 + $0xc] sm:$0xf] %v2894
        %2928 = vst [vmem:[%s2925 + $0x20] sm:$0xf] %v2895
        %2929 = vst [vmem:[%s2925 + $0x24] sm:$0xf] %v2896
        %2930 = vst [vmem:[%s2925 + $0x38] sm:$0xf] %v2897
        %2931 = vst [vmem:[%s2925 + $0x3c] sm:$0xf] %v2898
        %2932 = vst [vmem:[%s2925 + $0x50] sm:$0xf] %v2899
        %2933 = vst [vmem:[%s2925 + $0x54] sm:$0xf] %v2900
        %2934 = vst [vmem:[%s2925 + $0x68] sm:$0xf] %v2901
        %2935 = vst [vmem:[%s2925 + $0x6c] sm:$0xf] %v2902
        %2936 = vst [vmem:[%s2925 + $0x80] sm:$0xf] %v2903
        %2937 = vst [vmem:[%s2925 + $0x84] sm:$0xf] %v2904
        %2938 = vst [vmem:[%s2925 + $0x98] sm:$0xf] %v2905
        %2939 = vst [vmem:[%s2925 + $0x9c] sm:$0xf] %v2906
        %2940 = vst [vmem:[%s2925 + $0xb0] sm:$0xf] %v2907
        %2941 = vst [vmem:[%s2925 + $0xb4] sm:$0xf] %v2908
        %2942 = vst [vmem:[%s2925 + $0xc8] sm:$0xf] %v2909
        %2943 = vst [vmem:[%s2925 + $0xcc] sm:$0xf] %v2910
        %2944 = vst [vmem:[%s2925 + $0xe0] sm:$0xf] %v2911
        %2945 = vst [vmem:[%s2925 + $0xe4] sm:$0xf] %v2912
        %2946 = vst [vmem:[%s2925 + $0xf8] sm:$0xf] %v2913
        %2947 = vst [vmem:[%s2925 + $0xfc] sm:$0xf] %v2914
        %2948 = vst [vmem:[%s2925 + $0x110] sm:$0xf] %v2915
        %2949 = vst [vmem:[%s2925 + $0x114] sm:$0xf] %v2916
        %2950 = vst [vmem:[%s2925 + $0x128] sm:$0xf] %v2917
        %2951 = vst [vmem:[%s2925 + $0x12c] sm:$0xf] %v2918
        %2952 = vst [vmem:[%s2925 + $0x140] sm:$0xf] %v2919
        %2953 = vst [vmem:[%s2925 + $0x144] sm:$0xf] %v2920
        %2954 = vst [vmem:[%s2925 + $0x158] sm:$0xf] %v2921
        %2955 = vst [vmem:[%s2925 + $0x15c] sm:$0xf] %v2922
        %2956 = vst [vmem:[%s2925 + $0x170] sm:$0xf] %v2923
        %2957 = vst [vmem:[%s2925 + $0x174] sm:$0xf] %v2924
        %v2958 = vld [vmem:[#allocation2 + $0x4] sm:$0x8]
        %v2959 = vld [vmem:[#allocation2 + $0x8] sm:$0xf]
        %v2960 = vld [vmem:[#allocation2 + $0xc] sm:$0xf]
        %v2961 = vld [vmem:[#allocation2 + $0x1c] sm:$0x8]
        %v2962 = vld [vmem:[#allocation2 + $0x20] sm:$0xf]
        %v2963 = vld [vmem:[#allocation2 + $0x24] sm:$0xf]
        %v2964 = vld [vmem:[#allocation2 + $0x34] sm:$0x8]
        %v2965 = vld [vmem:[#allocation2 + $0x38] sm:$0xf]
        %v2966 = vld [vmem:[#allocation2 + $0x3c] sm:$0xf]
        %v2967 = vld [vmem:[#allocation2 + $0x4c] sm:$0x8]
        %v2968 = vld [vmem:[#allocation2 + $0x50] sm:$0xf]
        %v2969 = vld [vmem:[#allocation2 + $0x54] sm:$0xf]
        %v2970 = vld [vmem:[#allocation2 + $0x64] sm:$0x8]
        %v2971 = vld [vmem:[#allocation2 + $0x68] sm:$0xf]
        %v2972 = vld [vmem:[#allocation2 + $0x6c] sm:$0xf]
        %v2973 = vld [vmem:[#allocation2 + $0x7c] sm:$0x8]
        %v2974 = vld [vmem:[#allocation2 + $0x80] sm:$0xf]
        %v2975 = vld [vmem:[#allocation2 + $0x84] sm:$0xf]
        %v2976 = vld [vmem:[#allocation2 + $0x94] sm:$0x8]
        %v2977 = vld [vmem:[#allocation2 + $0x98] sm:$0xf]
        %v2978 = vld [vmem:[#allocation2 + $0x9c] sm:$0xf]
        %v2979 = vld [vmem:[#allocation2 + $0xac] sm:$0x8]
        %v2980 = vld [vmem:[#allocation2 + $0xb0] sm:$0xf]
        %v2981 = vld [vmem:[#allocation2 + $0xb4] sm:$0xf]
        %v2982 = vld [vmem:[#allocation2 + $0xc4] sm:$0x8]
        %v2983 = vld [vmem:[#allocation2 + $0xc8] sm:$0xf]
        %v2984 = vld [vmem:[#allocation2 + $0xcc] sm:$0xf]
        %v2985 = vld [vmem:[#allocation2 + $0xdc] sm:$0x8]
        %v2986 = vld [vmem:[#allocation2 + $0xe0] sm:$0xf]
        %v2987 = vld [vmem:[#allocation2 + $0xe4] sm:$0xf]
        %v2988 = vld [vmem:[#allocation2 + $0xf4] sm:$0x8]
        %v2989 = vld [vmem:[#allocation2 + $0xf8] sm:$0xf]
        %v2990 = vld [vmem:[#allocation2 + $0xfc] sm:$0xf]
        %v2991 = vld [vmem:[#allocation2 + $0x10c] sm:$0x8]
        %v2992 = vld [vmem:[#allocation2 + $0x110] sm:$0xf]
        %v2993 = vld [vmem:[#allocation2 + $0x114] sm:$0xf]
        %v2994 = vld [vmem:[#allocation2 + $0x124] sm:$0x8]
        %v2995 = vld [vmem:[#allocation2 + $0x128] sm:$0xf]
        %v2996 = vld [vmem:[#allocation2 + $0x12c] sm:$0xf]
        %v2997 = vld [vmem:[#allocation2 + $0x13c] sm:$0x8]
        %v2998 = vld [vmem:[#allocation2 + $0x140] sm:$0xf]
        %v2999 = vld [vmem:[#allocation2 + $0x144] sm:$0xf]
        %v3000 = vld [vmem:[#allocation2 + $0x154] sm:$0x8]
        %v3001 = vld [vmem:[#allocation2 + $0x158] sm:$0xf]
        %v3002 = vld [vmem:[#allocation2 + $0x15c] sm:$0xf]
        %v3003 = vld [vmem:[#allocation2 + $0x16c] sm:$0x8]
        %v3004 = vld [vmem:[#allocation2 + $0x170] sm:$0xf]
        %v3005 = vld [vmem:[#allocation2 + $0x174] sm:$0xf]
        %v3006 = vld [vmem:[#allocation2 + $0x184] sm:$0x8]
        %v3007 = vld [vmem:[#allocation2 + $0x188] sm:$0xf]
        %v3008 = vld [vmem:[#allocation2 + $0x18c] sm:$0xf]
        %v3009 = vld [vmem:[#allocation2 + $0x19c] sm:$0x8]
        %v3010 = vld [vmem:[#allocation2 + $0x1a0] sm:$0xf]
        %v3011 = vld [vmem:[#allocation2 + $0x1a4] sm:$0xf]
        %vm3012 = vsmask.f32 4368
        %vm3013 = vmor %vm2837, %vm3012
        %v3015 = vshrl.u32 %v2958, 16
        %v3017 = vrot.slane %v3015, 7
        %v3018 = vrot.slane %v3017, 4
        %v3020 = vshrl.u32 %v2959, 16
        %v3022 = vrot.slane %v3020, 7
        %v3023 = vshll.u32 %v2959, 16
        %v3025 = vor.u32 %v3022, %v3023
        %v3026 = vsel %vm3013, %v3018, %v3025
        %v3027 = vrot.slane %v3022, 4
        %v3029 = vshrl.u32 %v2960, 16
        %v3031 = vrot.slane %v3029, 7
        %v3032 = vshll.u32 %v2960, 16
        %v3034 = vor.u32 %v3031, %v3032
        %v3035 = vsel %vm3013, %v3027, %v3034
        %v3037 = vshrl.u32 %v2961, 16
        %v3039 = vrot.slane %v3037, 7
        %v3040 = vrot.slane %v3039, 4
        %v3042 = vshrl.u32 %v2962, 16
        %v3044 = vrot.slane %v3042, 7
        %v3045 = vshll.u32 %v2962, 16
        %v3047 = vor.u32 %v3044, %v3045
        %v3048 = vsel %vm3013, %v3040, %v3047
        %v3049 = vrot.slane %v3044, 4
        %v3051 = vshrl.u32 %v2963, 16
        %v3053 = vrot.slane %v3051, 7
        %v3054 = vshll.u32 %v2963, 16
        %v3056 = vor.u32 %v3053, %v3054
        %v3057 = vsel %vm3013, %v3049, %v3056
        %v3059 = vshrl.u32 %v2964, 16
        %v3061 = vrot.slane %v3059, 7
        %v3062 = vrot.slane %v3061, 4
        %v3064 = vshrl.u32 %v2965, 16
        %v3066 = vrot.slane %v3064, 7
        %v3067 = vshll.u32 %v2965, 16
        %v3069 = vor.u32 %v3066, %v3067
        %v3070 = vsel %vm3013, %v3062, %v3069
        %v3071 = vrot.slane %v3066, 4
        %v3073 = vshrl.u32 %v2966, 16
        %v3075 = vrot.slane %v3073, 7
        %v3076 = vshll.u32 %v2966, 16
        %v3078 = vor.u32 %v3075, %v3076
        %v3079 = vsel %vm3013, %v3071, %v3078
        %v3081 = vshrl.u32 %v2967, 16
        %v3083 = vrot.slane %v3081, 7
        %v3084 = vrot.slane %v3083, 4
        %v3086 = vshrl.u32 %v2968, 16
        %v3088 = vrot.slane %v3086, 7
        %v3089 = vshll.u32 %v2968, 16
        %v3091 = vor.u32 %v3088, %v3089
        %v3092 = vsel %vm3013, %v3084, %v3091
        %v3093 = vrot.slane %v3088, 4
        %v3095 = vshrl.u32 %v2969, 16
        %v3097 = vrot.slane %v3095, 7
        %v3098 = vshll.u32 %v2969, 16
        %v3100 = vor.u32 %v3097, %v3098
        %v3101 = vsel %vm3013, %v3093, %v3100
        %v3103 = vshrl.u32 %v2970, 16
        %v3105 = vrot.slane %v3103, 7
        %v3106 = vrot.slane %v3105, 4
        %v3108 = vshrl.u32 %v2971, 16
        %v3110 = vrot.slane %v3108, 7
        %v3111 = vshll.u32 %v2971, 16
        %v3113 = vor.u32 %v3110, %v3111
        %v3114 = vsel %vm3013, %v3106, %v3113
        %v3115 = vrot.slane %v3110, 4
        %v3117 = vshrl.u32 %v2972, 16
        %v3119 = vrot.slane %v3117, 7
        %v3120 = vshll.u32 %v2972, 16
        %v3122 = vor.u32 %v3119, %v3120
        %v3123 = vsel %vm3013, %v3115, %v3122
        %v3125 = vshrl.u32 %v2973, 16
        %v3127 = vrot.slane %v3125, 7
        %v3128 = vrot.slane %v3127, 4
        %v3130 = vshrl.u32 %v2974, 16
        %v3132 = vrot.slane %v3130, 7
        %v3133 = vshll.u32 %v2974, 16
        %v3135 = vor.u32 %v3132, %v3133
        %v3136 = vsel %vm3013, %v3128, %v3135
        %v3137 = vrot.slane %v3132, 4
        %v3139 = vshrl.u32 %v2975, 16
        %v3141 = vrot.slane %v3139, 7
        %v3142 = vshll.u32 %v2975, 16
        %v3144 = vor.u32 %v3141, %v3142
        %v3145 = vsel %vm3013, %v3137, %v3144
        %v3147 = vshrl.u32 %v2976, 16
        %v3149 = vrot.slane %v3147, 7
        %v3150 = vrot.slane %v3149, 4
        %v3152 = vshrl.u32 %v2977, 16
        %v3154 = vrot.slane %v3152, 7
        %v3155 = vshll.u32 %v2977, 16
        %v3157 = vor.u32 %v3154, %v3155
        %v3158 = vsel %vm3013, %v3150, %v3157
        %v3159 = vrot.slane %v3154, 4
        %v3161 = vshrl.u32 %v2978, 16
        %v3163 = vrot.slane %v3161, 7
        %v3164 = vshll.u32 %v2978, 16
        %v3166 = vor.u32 %v3163, %v3164
        %v3167 = vsel %vm3013, %v3159, %v3166
        %v3169 = vshrl.u32 %v2979, 16
        %v3171 = vrot.slane %v3169, 7
        %v3172 = vrot.slane %v3171, 4
        %v3174 = vshrl.u32 %v2980, 16
        %v3176 = vrot.slane %v3174, 7
        %v3177 = vshll.u32 %v2980, 16
        %v3179 = vor.u32 %v3176, %v3177
        %v3180 = vsel %vm3013, %v3172, %v3179
        %v3181 = vrot.slane %v3176, 4
        %v3183 = vshrl.u32 %v2981, 16
        %v3185 = vrot.slane %v3183, 7
        %v3186 = vshll.u32 %v2981, 16
        %v3188 = vor.u32 %v3185, %v3186
        %v3189 = vsel %vm3013, %v3181, %v3188
        %v3191 = vshrl.u32 %v2982, 16
        %v3193 = vrot.slane %v3191, 7
        %v3194 = vrot.slane %v3193, 4
        %v3196 = vshrl.u32 %v2983, 16
        %v3198 = vrot.slane %v3196, 7
        %v3199 = vshll.u32 %v2983, 16
        %v3201 = vor.u32 %v3198, %v3199
        %v3202 = vsel %vm3013, %v3194, %v3201
        %v3203 = vrot.slane %v3198, 4
        %v3205 = vshrl.u32 %v2984, 16
        %v3207 = vrot.slane %v3205, 7
        %v3208 = vshll.u32 %v2984, 16
        %v3210 = vor.u32 %v3207, %v3208
        %v3211 = vsel %vm3013, %v3203, %v3210
        %v3213 = vshrl.u32 %v2985, 16
        %v3215 = vrot.slane %v3213, 7
        %v3216 = vrot.slane %v3215, 4
        %v3218 = vshrl.u32 %v2986, 16
        %v3220 = vrot.slane %v3218, 7
        %v3221 = vshll.u32 %v2986, 16
        %v3223 = vor.u32 %v3220, %v3221
        %v3224 = vsel %vm3013, %v3216, %v3223
        %v3225 = vrot.slane %v3220, 4
        %v3227 = vshrl.u32 %v2987, 16
        %v3229 = vrot.slane %v3227, 7
        %v3230 = vshll.u32 %v2987, 16
        %v3232 = vor.u32 %v3229, %v3230
        %v3233 = vsel %vm3013, %v3225, %v3232
        %v3235 = vshrl.u32 %v2988, 16
        %v3237 = vrot.slane %v3235, 7
        %v3238 = vrot.slane %v3237, 4
        %v3240 = vshrl.u32 %v2989, 16
        %v3242 = vrot.slane %v3240, 7
        %v3243 = vshll.u32 %v2989, 16
        %v3245 = vor.u32 %v3242, %v3243
        %v3246 = vsel %vm3013, %v3238, %v3245
        %v3247 = vrot.slane %v3242, 4
        %v3249 = vshrl.u32 %v2990, 16
        %v3251 = vrot.slane %v3249, 7
        %v3252 = vshll.u32 %v2990, 16
        %v3254 = vor.u32 %v3251, %v3252
        %v3255 = vsel %vm3013, %v3247, %v3254
        %v3257 = vshrl.u32 %v2991, 16
        %v3259 = vrot.slane %v3257, 7
        %v3260 = vrot.slane %v3259, 4
        %v3262 = vshrl.u32 %v2992, 16
        %v3264 = vrot.slane %v3262, 7
        %v3265 = vshll.u32 %v2992, 16
        %v3267 = vor.u32 %v3264, %v3265
        %v3268 = vsel %vm3013, %v3260, %v3267
        %v3269 = vrot.slane %v3264, 4
        %v3271 = vshrl.u32 %v2993, 16
        %v3273 = vrot.slane %v3271, 7
        %v3274 = vshll.u32 %v2993, 16
        %v3276 = vor.u32 %v3273, %v3274
        %v3277 = vsel %vm3013, %v3269, %v3276
        %v3279 = vshrl.u32 %v2994, 16
        %v3281 = vrot.slane %v3279, 7
        %v3282 = vrot.slane %v3281, 4
        %v3284 = vshrl.u32 %v2995, 16
        %v3286 = vrot.slane %v3284, 7
        %v3287 = vshll.u32 %v2995, 16
        %v3289 = vor.u32 %v3286, %v3287
        %v3290 = vsel %vm3013, %v3282, %v3289
        %v3291 = vrot.slane %v3286, 4
        %v3293 = vshrl.u32 %v2996, 16
        %v3295 = vrot.slane %v3293, 7
        %v3296 = vshll.u32 %v2996, 16
        %v3298 = vor.u32 %v3295, %v3296
        %v3299 = vsel %vm3013, %v3291, %v3298
        %v3301 = vshrl.u32 %v2997, 16
        %v3303 = vrot.slane %v3301, 7
        %v3304 = vrot.slane %v3303, 4
        %v3306 = vshrl.u32 %v2998, 16
        %v3308 = vrot.slane %v3306, 7
        %v3309 = vshll.u32 %v2998, 16
        %v3311 = vor.u32 %v3308, %v3309
        %v3312 = vsel %vm3013, %v3304, %v3311
        %v3313 = vrot.slane %v3308, 4
        %v3315 = vshrl.u32 %v2999, 16
        %v3317 = vrot.slane %v3315, 7
        %v3318 = vshll.u32 %v2999, 16
        %v3320 = vor.u32 %v3317, %v3318
        %v3321 = vsel %vm3013, %v3313, %v3320
        %v3323 = vshrl.u32 %v3000, 16
        %v3325 = vrot.slane %v3323, 7
        %v3326 = vrot.slane %v3325, 4
        %v3328 = vshrl.u32 %v3001, 16
        %v3330 = vrot.slane %v3328, 7
        %v3331 = vshll.u32 %v3001, 16
        %v3333 = vor.u32 %v3330, %v3331
        %v3334 = vsel %vm3013, %v3326, %v3333
        %v3335 = vrot.slane %v3330, 4
        %v3337 = vshrl.u32 %v3002, 16
        %v3339 = vrot.slane %v3337, 7
        %v3340 = vshll.u32 %v3002, 16
        %v3342 = vor.u32 %v3339, %v3340
        %v3343 = vsel %vm3013, %v3335, %v3342
        %v3345 = vshrl.u32 %v3003, 16
        %v3347 = vrot.slane %v3345, 7
        %v3348 = vrot.slane %v3347, 4
        %v3350 = vshrl.u32 %v3004, 16
        %v3352 = vrot.slane %v3350, 7
        %v3353 = vshll.u32 %v3004, 16
        %v3355 = vor.u32 %v3352, %v3353
        %v3356 = vsel %vm3013, %v3348, %v3355
        %v3357 = vrot.slane %v3352, 4
        %v3359 = vshrl.u32 %v3005, 16
        %v3361 = vrot.slane %v3359, 7
        %v3362 = vshll.u32 %v3005, 16
        %v3364 = vor.u32 %v3361, %v3362
        %v3365 = vsel %vm3013, %v3357, %v3364
        %v3367 = vshrl.u32 %v3006, 16
        %v3369 = vrot.slane %v3367, 7
        %v3370 = vrot.slane %v3369, 4
        %v3372 = vshrl.u32 %v3007, 16
        %v3374 = vrot.slane %v3372, 7
        %v3375 = vshll.u32 %v3007, 16
        %v3377 = vor.u32 %v3374, %v3375
        %v3378 = vsel %vm3013, %v3370, %v3377
        %v3379 = vrot.slane %v3374, 4
        %v3381 = vshrl.u32 %v3008, 16
        %v3383 = vrot.slane %v3381, 7
        %v3384 = vshll.u32 %v3008, 16
        %v3386 = vor.u32 %v3383, %v3384
        %v3387 = vsel %vm3013, %v3379, %v3386
        %v3389 = vshrl.u32 %v3009, 16
        %v3391 = vrot.slane %v3389, 7
        %v3392 = vrot.slane %v3391, 4
        %v3394 = vshrl.u32 %v3010, 16
        %v3396 = vrot.slane %v3394, 7
        %v3397 = vshll.u32 %v3010, 16
        %v3399 = vor.u32 %v3396, %v3397
        %v3400 = vsel %vm3013, %v3392, %v3399
        %v3401 = vrot.slane %v3396, 4
        %v3403 = vshrl.u32 %v3011, 16
        %v3405 = vrot.slane %v3403, 7
        %v3406 = vshll.u32 %v3011, 16
        %v3408 = vor.u32 %v3405, %v3406
        %v3409 = vsel %vm3013, %v3401, %v3408
        %v3410 = vunpack.c.l.b16 %v3026
        %v3411 = vunpack.c.l.b16 %v3035
        %v3412 = vunpack.c.l.b16 %v3048
        %v3413 = vunpack.c.l.b16 %v3057
        %v3414 = vunpack.c.l.b16 %v3070
        %v3415 = vunpack.c.l.b16 %v3079
        %v3416 = vunpack.c.l.b16 %v3092
        %v3417 = vunpack.c.l.b16 %v3101
        %v3418 = vunpack.c.l.b16 %v3114
        %v3419 = vunpack.c.l.b16 %v3123
        %v3420 = vunpack.c.l.b16 %v3136
        %v3421 = vunpack.c.l.b16 %v3145
        %v3422 = vunpack.c.l.b16 %v3158
        %v3423 = vunpack.c.l.b16 %v3167
        %v3424 = vunpack.c.l.b16 %v3180
        %v3425 = vunpack.c.l.b16 %v3189
        %v3426 = vunpack.c.l.b16 %v3202
        %v3427 = vunpack.c.l.b16 %v3211
        %v3428 = vunpack.c.l.b16 %v3224
        %v3429 = vunpack.c.l.b16 %v3233
        %v3430 = vunpack.c.l.b16 %v3246
        %v3431 = vunpack.c.l.b16 %v3255
        %v3432 = vunpack.c.l.b16 %v3268
        %v3433 = vunpack.c.l.b16 %v3277
        %v3434 = vunpack.c.l.b16 %v3290
        %v3435 = vunpack.c.l.b16 %v3299
        %v3436 = vunpack.c.l.b16 %v3312
        %v3437 = vunpack.c.l.b16 %v3321
        %v3438 = vunpack.c.l.b16 %v3334
        %v3439 = vunpack.c.l.b16 %v3343
        %v3440 = vunpack.c.l.b16 %v3356
        %v3441 = vunpack.c.l.b16 %v3365
        %v3442 = vpack.c.b16 %v3411, %v3410
        %v3443 = vpack.c.b16 %v3413, %v3412
        %v3444 = vpack.c.b16 %v3415, %v3414
        %v3445 = vpack.c.b16 %v3417, %v3416
        %v3446 = vpack.c.b16 %v3419, %v3418
        %v3447 = vpack.c.b16 %v3421, %v3420
        %v3448 = vpack.c.b16 %v3423, %v3422
        %v3449 = vpack.c.b16 %v3425, %v3424
        %v3450 = vpack.c.b16 %v3427, %v3426
        %v3451 = vpack.c.b16 %v3429, %v3428
        %v3452 = vpack.c.b16 %v3431, %v3430
        %v3453 = vpack.c.b16 %v3433, %v3432
        %v3454 = vpack.c.b16 %v3435, %v3434
        %v3455 = vpack.c.b16 %v3437, %v3436
        %v3456 = vpack.c.b16 %v3439, %v3438
        %v3457 = vpack.c.b16 %v3441, %v3440
        %v3474 = vunpack.c.l.b16 %v3378
        %v3475 = vunpack.c.l.b16 %v3387
        %v3476 = vpack.c.b16 %v3475, %v3474
        %v3478 = vunpack.c.l.b16 %v3400
        %v3479 = vunpack.c.l.b16 %v3409
        %v3480 = vpack.c.b16 %v3479, %v3478
        %v3482 = vld [vmem:[#allocation3] sm:$0xf]
        %v3483 = vld [vmem:[#allocation3 + $0x4] sm:$0xf]
        %v3484 = vld [vmem:[#allocation3 + $0x8] sm:$0xf]
        %v3485 = vld [vmem:[#allocation3 + $0xc] sm:$0xf]
        %v3486 = vld [vmem:[#allocation3 + $0x10] sm:$0xf]
        %v3487 = vld [vmem:[#allocation3 + $0x14] sm:$0xf]
        %v3488 = vld [vmem:[#allocation3 + $0x18] sm:$0xf]
        %v3489 = vld [vmem:[#allocation3 + $0x1c] sm:$0xf]
        %v3490 = vld [vmem:[#allocation3 + $0x20] sm:$0xf]
        %v3491 = vld [vmem:[#allocation3 + $0x24] sm:$0xf]
        %v3492 = vld [vmem:[#allocation3 + $0x28] sm:$0xf]
        %v3493 = vld [vmem:[#allocation3 + $0x2c] sm:$0xf]
        %v3494 = vld [vmem:[#allocation3 + $0x30] sm:$0xf]
        %v3495 = vld [vmem:[#allocation3 + $0x34] sm:$0xf]
        %v3496 = vld [vmem:[#allocation3 + $0x38] sm:$0xf]
        %v3497 = vld [vmem:[#allocation3 + $0x3c] sm:$0xf]
        %v3498 = vld [vmem:[#allocation3 + $0x40] sm:$0xf]
        %v3499 = vld [vmem:[#allocation3 + $0x44] sm:$0xf]
        %v3500 = vld [vmem:[#allocation3 + $0x48] sm:$0xf]
        %v3501 = vld [vmem:[#allocation3 + $0x4c] sm:$0xf]
        %v3502 = vld [vmem:[#allocation3 + $0x50] sm:$0xf]
        %v3503 = vld [vmem:[#allocation3 + $0x54] sm:$0xf]
        %v3504 = vld [vmem:[#allocation3 + $0x58] sm:$0xf]
        %v3505 = vld [vmem:[#allocation3 + $0x5c] sm:$0xf]
        %v3506 = vld [vmem:[#allocation3 + $0x60] sm:$0xf]
        %v3507 = vld [vmem:[#allocation3 + $0x64] sm:$0xf]
        %v3508 = vld [vmem:[#allocation3 + $0x68] sm:$0xf]
        %v3509 = vld [vmem:[#allocation3 + $0x6c] sm:$0xf]
        %v3510 = vld [vmem:[#allocation3 + $0x70] sm:$0xf]
        %v3511 = vld [vmem:[#allocation3 + $0x74] sm:$0xf]
        %v3512 = vld [vmem:[#allocation3 + $0x78] sm:$0xf]
        %v3513 = vld [vmem:[#allocation3 + $0x7c] sm:$0xf]
        %v3514 = vld [vmem:[#allocation3 + $0x80] sm:$0xf]
        %v3515 = vld [vmem:[#allocation3 + $0x84] sm:$0xf]
        %v3516 = vld [vmem:[#allocation3 + $0x88] sm:$0xf]
        %v3517 = vld [vmem:[#allocation3 + $0x8c] sm:$0xf]
        %v3518 = vld [vmem:[#allocation3 + $0x90] sm:$0xf]
        %v3519 = vld [vmem:[#allocation3 + $0x94] sm:$0xf]
        %v3520 = vld [vmem:[#allocation3 + $0x98] sm:$0xf]
        %v3521 = vld [vmem:[#allocation3 + $0x9c] sm:$0xf]
        %v3522 = vld [vmem:[#allocation3 + $0xa0] sm:$0xf]
        %v3523 = vld [vmem:[#allocation3 + $0xa4] sm:$0xf]
        %v3524 = vld [vmem:[#allocation3 + $0xa8] sm:$0xf]
        %v3525 = vld [vmem:[#allocation3 + $0xac] sm:$0xf]
        %v3526 = vld [vmem:[#allocation3 + $0xb0] sm:$0xf]
        %v3527 = vld [vmem:[#allocation3 + $0xb4] sm:$0xf]
        %v3528 = vld [vmem:[#allocation3 + $0xb8] sm:$0xf]
        %v3529 = vld [vmem:[#allocation3 + $0xbc] sm:$0xf]
        %v3562 = vunpack.c.l.b16 %v2959
        %v3563 = vunpack.c.l.b16 %v2960
        %v3564 = vunpack.c.l.b16 %v2962
        %v3565 = vunpack.c.l.b16 %v2963
        %v3566 = vunpack.c.l.b16 %v2965
        %v3567 = vunpack.c.l.b16 %v2966
        %v3568 = vunpack.c.l.b16 %v2968
        %v3569 = vunpack.c.l.b16 %v2969
        %v3570 = vunpack.c.l.b16 %v2971
        %v3571 = vunpack.c.l.b16 %v2972
        %v3572 = vunpack.c.l.b16 %v2974
        %v3573 = vunpack.c.l.b16 %v2975
        %v3574 = vunpack.c.l.b16 %v2977
        %v3575 = vunpack.c.l.b16 %v2978
        %v3576 = vunpack.c.l.b16 %v2980
        %v3577 = vunpack.c.l.b16 %v2981
        %v3578 = vunpack.c.l.b16 %v2983
        %v3579 = vunpack.c.l.b16 %v2984
        %v3580 = vunpack.c.l.b16 %v2986
        %v3581 = vunpack.c.l.b16 %v2987
        %v3582 = vunpack.c.l.b16 %v2989
        %v3583 = vunpack.c.l.b16 %v2990
        %v3584 = vunpack.c.l.b16 %v2992
        %v3585 = vunpack.c.l.b16 %v2993
        %v3586 = vunpack.c.l.b16 %v2995
        %v3587 = vunpack.c.l.b16 %v2996
        %v3588 = vunpack.c.l.b16 %v2998
        %v3589 = vunpack.c.l.b16 %v2999
        %v3590 = vunpack.c.l.b16 %v3001
        %v3591 = vunpack.c.l.b16 %v3002
        %v3592 = vunpack.c.l.b16 %v3004
        %v3593 = vunpack.c.l.b16 %v3005
        %v3594 = vpack.c.b16 %v3563, %v3562
        %v3595 = vpack.c.b16 %v3565, %v3564
        %v3596 = vpack.c.b16 %v3567, %v3566
        %v3597 = vpack.c.b16 %v3569, %v3568
        %v3598 = vpack.c.b16 %v3571, %v3570
        %v3599 = vpack.c.b16 %v3573, %v3572
        %v3600 = vpack.c.b16 %v3575, %v3574
        %v3601 = vpack.c.b16 %v3577, %v3576
        %v3602 = vpack.c.b16 %v3579, %v3578
        %v3603 = vpack.c.b16 %v3581, %v3580
        %v3604 = vpack.c.b16 %v3583, %v3582
        %v3605 = vpack.c.b16 %v3585, %v3584
        %v3606 = vpack.c.b16 %v3587, %v3586
        %v3607 = vpack.c.b16 %v3589, %v3588
        %v3608 = vpack.c.b16 %v3591, %v3590
        %v3609 = vpack.c.b16 %v3593, %v3592
        %v3628 = vunpack.c.l.b16 %v3007
        %v3629 = vunpack.c.l.b16 %v3008
        %v3630 = vpack.c.b16 %v3629, %v3628
        %v3634 = vunpack.c.l.b16 %v3010
        %v3635 = vunpack.c.l.b16 %v3011
        %v3636 = vpack.c.b16 %v3635, %v3634
        %s3638 = scalar_lea.vmem [#allocation3], 192
        %v3639 = vld [vmem:[%s3638] sm:$0xf]
        %v3640 = vld [vmem:[%s3638 + $0x4] sm:$0xf]
        %v3641 = vld [vmem:[%s3638 + $0x8] sm:$0xf]
        %v3642 = vld [vmem:[%s3638 + $0xc] sm:$0xf]
        %v3643 = vld [vmem:[%s3638 + $0x10] sm:$0xf]
        %v3644 = vld [vmem:[%s3638 + $0x14] sm:$0xf]
        %v3645 = vld [vmem:[%s3638 + $0x18] sm:$0xf]
        %v3646 = vld [vmem:[%s3638 + $0x1c] sm:$0xf]
        %v3647 = vld [vmem:[%s3638 + $0x20] sm:$0xf]
        %v3648 = vld [vmem:[%s3638 + $0x24] sm:$0xf]
        %v3649 = vld [vmem:[%s3638 + $0x28] sm:$0xf]
        %v3650 = vld [vmem:[%s3638 + $0x2c] sm:$0xf]
        %v3651 = vld [vmem:[%s3638 + $0x30] sm:$0xf]
        %v3652 = vld [vmem:[%s3638 + $0x34] sm:$0xf]
        %v3653 = vld [vmem:[%s3638 + $0x38] sm:$0xf]
        %v3654 = vld [vmem:[%s3638 + $0x3c] sm:$0xf]
        %v3655 = vld [vmem:[%s3638 + $0x40] sm:$0xf]
        %v3656 = vld [vmem:[%s3638 + $0x44] sm:$0xf]
        %v3657 = vld [vmem:[%s3638 + $0x48] sm:$0xf]
        %v3658 = vld [vmem:[%s3638 + $0x4c] sm:$0xf]
        %v3659 = vld [vmem:[%s3638 + $0x50] sm:$0xf]
        %v3660 = vld [vmem:[%s3638 + $0x54] sm:$0xf]
        %v3661 = vld [vmem:[%s3638 + $0x58] sm:$0xf]
        %v3662 = vld [vmem:[%s3638 + $0x5c] sm:$0xf]
        %v3663 = vld [vmem:[%s3638 + $0x60] sm:$0xf]
        %v3664 = vld [vmem:[%s3638 + $0x64] sm:$0xf]
        %v3665 = vld [vmem:[%s3638 + $0x68] sm:$0xf]
        %v3666 = vld [vmem:[%s3638 + $0x6c] sm:$0xf]
        %v3667 = vld [vmem:[%s3638 + $0x70] sm:$0xf]
        %v3668 = vld [vmem:[%s3638 + $0x74] sm:$0xf]
        %v3669 = vld [vmem:[%s3638 + $0x78] sm:$0xf]
        %v3670 = vld [vmem:[%s3638 + $0x7c] sm:$0xf]
        %v3671 = vld [vmem:[%s3638 + $0x80] sm:$0xf]
        %v3672 = vld [vmem:[%s3638 + $0x84] sm:$0xf]
        %v3673 = vld [vmem:[%s3638 + $0x88] sm:$0xf]
        %v3674 = vld [vmem:[%s3638 + $0x8c] sm:$0xf]
        %v3675 = vld [vmem:[%s3638 + $0x90] sm:$0xf]
        %v3676 = vld [vmem:[%s3638 + $0x94] sm:$0xf]
        %v3677 = vld [vmem:[%s3638 + $0x98] sm:$0xf]
        %v3678 = vld [vmem:[%s3638 + $0x9c] sm:$0xf]
        %v3679 = vld [vmem:[%s3638 + $0xa0] sm:$0xf]
        %v3680 = vld [vmem:[%s3638 + $0xa4] sm:$0xf]
        %v3681 = vld [vmem:[%s3638 + $0xa8] sm:$0xf]
        %v3682 = vld [vmem:[%s3638 + $0xac] sm:$0xf]
        %v3683 = vld [vmem:[%s3638 + $0xb0] sm:$0xf]
        %v3684 = vld [vmem:[%s3638 + $0xb4] sm:$0xf]
        %v3685 = vld [vmem:[%s3638 + $0xb8] sm:$0xf]
        %v3686 = vld [vmem:[%s3638 + $0xbc] sm:$0xf]
        %v3735 = vunpack.c.l.b16 %v3639
        %v3736 = vunpack.c.l.b16 %v3640
        %v3737 = vunpack.c.l.b16 %v3641
        %v3738 = vunpack.c.l.b16 %v3642
        %v3739 = vunpack.c.l.b16 %v3643
        %v3740 = vunpack.c.l.b16 %v3644
        %v3741 = vunpack.c.l.b16 %v3645
        %v3742 = vunpack.c.l.b16 %v3646
        %v3743 = vunpack.c.l.b16 %v3647
        %v3744 = vunpack.c.l.b16 %v3648
        %v3745 = vunpack.c.l.b16 %v3649
        %v3746 = vunpack.c.l.b16 %v3650
        %v3747 = vunpack.c.l.b16 %v3651
        %v3748 = vunpack.c.l.b16 %v3652
        %v3749 = vunpack.c.l.b16 %v3653
        %v3750 = vunpack.c.l.b16 %v3654
        %v3751 = vunpack.c.l.b16 %v3655
        %v3752 = vunpack.c.l.b16 %v3656
        %v3753 = vunpack.c.l.b16 %v3657
        %v3754 = vunpack.c.l.b16 %v3658
        %v3755 = vunpack.c.l.b16 %v3659
        %v3756 = vunpack.c.l.b16 %v3660
        %v3757 = vunpack.c.l.b16 %v3661
        %v3758 = vunpack.c.l.b16 %v3662
        %v3759 = vunpack.c.l.b16 %v3663
        %v3760 = vunpack.c.l.b16 %v3664
        %v3761 = vunpack.c.l.b16 %v3665
        %v3762 = vunpack.c.l.b16 %v3666
        %v3763 = vunpack.c.l.b16 %v3667
        %v3764 = vunpack.c.l.b16 %v3668
        %v3765 = vunpack.c.l.b16 %v3669
        %v3766 = vunpack.c.l.b16 %v3670
        %v3767 = vunpack.c.l.b16 %v3671
        %v3768 = vunpack.c.l.b16 %v3672
        %v3769 = vunpack.c.l.b16 %v3673
        %v3770 = vunpack.c.l.b16 %v3674
        %v3771 = vunpack.c.l.b16 %v3675
        %v3772 = vunpack.c.l.b16 %v3676
        %v3773 = vunpack.c.l.b16 %v3677
        %v3774 = vunpack.c.l.b16 %v3678
        %v3775 = vunpack.c.l.b16 %v3679
        %v3776 = vunpack.c.l.b16 %v3680
        %v3777 = vunpack.c.l.b16 %v3681
        %v3778 = vunpack.c.l.b16 %v3682
        %v3779 = vunpack.c.l.b16 %v3683
        %v3780 = vunpack.c.l.b16 %v3684
        %v3781 = vunpack.c.l.b16 %v3685
        %v3782 = vunpack.c.l.b16 %v3686
        %v3783 = vpack.c.b16 %v3736, %v3735
        %v3784 = vpack.c.b16 %v3738, %v3737
        %v3785 = vpack.c.b16 %v3740, %v3739
        %v3786 = vpack.c.b16 %v3742, %v3741
        %v3787 = vpack.c.b16 %v3744, %v3743
        %v3788 = vpack.c.b16 %v3746, %v3745
        %v3789 = vpack.c.b16 %v3748, %v3747
        %v3790 = vpack.c.b16 %v3750, %v3749
        %v3791 = vpack.c.b16 %v3752, %v3751
        %v3792 = vpack.c.b16 %v3754, %v3753
        %v3793 = vpack.c.b16 %v3756, %v3755
        %v3794 = vpack.c.b16 %v3758, %v3757
        %v3795 = vpack.c.b16 %v3760, %v3759
        %v3796 = vpack.c.b16 %v3762, %v3761
        %v3797 = vpack.c.b16 %v3764, %v3763
        %v3798 = vpack.c.b16 %v3766, %v3765
        %v3799 = vpack.c.b16 %v3768, %v3767
        %v3800 = vpack.c.b16 %v3770, %v3769
        %v3801 = vpack.c.b16 %v3772, %v3771
        %v3802 = vpack.c.b16 %v3774, %v3773
        %v3803 = vpack.c.b16 %v3776, %v3775
        %v3804 = vpack.c.b16 %v3778, %v3777
        %v3805 = vpack.c.b16 %v3780, %v3779
        %v3806 = vpack.c.b16 %v3782, %v3781
        %3831 = vmatpush.bf16.msra.mxu0 %v3790
        %3832 = vmatpush.bf16.msra.mxu0 %v3789
        %3833 = vmatpush.bf16.msra.mxu0 %v3788
        %3834 = vmatpush.bf16.msra.mxu0 %v3787
        %3835 = vmatpush.bf16.msra.mxu0 %v3786
        %3836 = vmatpush.bf16.msra.mxu0 %v3785
        %3837 = vmatpush.bf16.msra.mxu0 %v3784
        %3838 = vmatpush.bf16.msra.mxu0 %v3783
        %3839 = vmatmul.bf16.gmra.mxu0 %v3594
        %v3840 = vpop.f32.mrf.mxu0
        %v3841 = vadd.f32 0.0, %v3840
        %v3842 = vpop.f32.mrf.mxu0
        %v3843 = vadd.f32 0.0, %v3842
        %3844 = vmatmul.bf16.gmra.mxu0 %v3595
        %v3845 = vpop.f32.mrf.mxu0
        %v3846 = vadd.f32 0.0, %v3845
        %v3847 = vpop.f32.mrf.mxu0
        %v3848 = vadd.f32 0.0, %v3847
        %3849 = vmatmul.bf16.gmra.mxu0 %v3596
        %v3850 = vpop.f32.mrf.mxu0
        %v3851 = vadd.f32 0.0, %v3850
        %v3852 = vpop.f32.mrf.mxu0
        %v3853 = vadd.f32 0.0, %v3852
        %3854 = vmatmul.bf16.gmra.mxu0 %v3597
        %v3855 = vpop.f32.mrf.mxu0
        %v3856 = vadd.f32 0.0, %v3855
        %v3857 = vpop.f32.mrf.mxu0
        %v3858 = vadd.f32 0.0, %v3857
        %3859 = vmatmul.bf16.gmra.mxu0 %v3598
        %v3860 = vpop.f32.mrf.mxu0
        %v3861 = vadd.f32 0.0, %v3860
        %v3862 = vpop.f32.mrf.mxu0
        %v3863 = vadd.f32 0.0, %v3862
        %3864 = vmatmul.bf16.gmra.mxu0 %v3599
        %v3865 = vpop.f32.mrf.mxu0
        %v3866 = vadd.f32 0.0, %v3865
        %v3867 = vpop.f32.mrf.mxu0
        %v3868 = vadd.f32 0.0, %v3867
        %3869 = vmatmul.bf16.gmra.mxu0 %v3600
        %v3870 = vpop.f32.mrf.mxu0
        %v3871 = vadd.f32 0.0, %v3870
        %v3872 = vpop.f32.mrf.mxu0
        %v3873 = vadd.f32 0.0, %v3872
        %3874 = vmatmul.bf16.gmra.mxu0 %v3601
        %v3875 = vpop.f32.mrf.mxu0
        %v3876 = vadd.f32 0.0, %v3875
        %v3877 = vpop.f32.mrf.mxu0
        %v3878 = vadd.f32 0.0, %v3877
        %3879 = vmatmul.bf16.gmra.mxu0 %v3602
        %v3880 = vpop.f32.mrf.mxu0
        %v3881 = vadd.f32 0.0, %v3880
        %v3882 = vpop.f32.mrf.mxu0
        %v3883 = vadd.f32 0.0, %v3882
        %3884 = vmatmul.bf16.gmra.mxu0 %v3603
        %v3885 = vpop.f32.mrf.mxu0
        %v3886 = vadd.f32 0.0, %v3885
        %v3887 = vpop.f32.mrf.mxu0
        %v3888 = vadd.f32 0.0, %v3887
        %3889 = vmatmul.bf16.gmra.mxu0 %v3604
        %v3890 = vpop.f32.mrf.mxu0
        %v3891 = vadd.f32 0.0, %v3890
        %v3892 = vpop.f32.mrf.mxu0
        %v3893 = vadd.f32 0.0, %v3892
        %3894 = vmatmul.bf16.gmra.mxu0 %v3605
        %v3895 = vpop.f32.mrf.mxu0
        %v3896 = vadd.f32 0.0, %v3895
        %v3897 = vpop.f32.mrf.mxu0
        %v3898 = vadd.f32 0.0, %v3897
        %3899 = vmatmul.bf16.gmra.mxu0 %v3606
        %v3900 = vpop.f32.mrf.mxu0
        %v3901 = vadd.f32 0.0, %v3900
        %v3902 = vpop.f32.mrf.mxu0
        %v3903 = vadd.f32 0.0, %v3902
        %3904 = vmatmul.bf16.gmra.mxu0 %v3607
        %v3905 = vpop.f32.mrf.mxu0
        %v3906 = vadd.f32 0.0, %v3905
        %v3907 = vpop.f32.mrf.mxu0
        %v3908 = vadd.f32 0.0, %v3907
        %3909 = vmatmul.bf16.gmra.mxu0 %v3608
        %v3910 = vpop.f32.mrf.mxu0
        %v3911 = vadd.f32 0.0, %v3910
        %v3912 = vpop.f32.mrf.mxu0
        %v3913 = vadd.f32 0.0, %v3912
        %3914 = vmatmul.bf16.gmra.mxu0 %v3609
        %v3915 = vpop.f32.mrf.mxu0
        %v3916 = vadd.f32 0.0, %v3915
        %v3917 = vpop.f32.mrf.mxu0
        %v3918 = vadd.f32 0.0, %v3917
        %3919 = vdwg.mxu0
        %3920 = vmatpush.bf16.msra.mxu0 %v3798
        %3921 = vmatpush.bf16.msra.mxu0 %v3797
        %3922 = vmatpush.bf16.msra.mxu0 %v3796
        %3923 = vmatpush.bf16.msra.mxu0 %v3795
        %3924 = vmatpush.bf16.msra.mxu0 %v3794
        %3925 = vmatpush.bf16.msra.mxu0 %v3793
        %3926 = vmatpush.bf16.msra.mxu0 %v3792
        %3927 = vmatpush.bf16.msra.mxu0 %v3791
        %3928 = vmatmul.bf16.gmra.mxu0 %v3595
        %v3929 = vpop.f32.mrf.mxu0
        %v3930 = vadd.f32 %v3841, %v3929
        %v3931 = vpop.f32.mrf.mxu0
        %v3932 = vadd.f32 %v3843, %v3931
        %3933 = vmatmul.bf16.gmra.mxu0 %v3596
        %v3934 = vpop.f32.mrf.mxu0
        %v3935 = vadd.f32 %v3846, %v3934
        %v3936 = vpop.f32.mrf.mxu0
        %v3937 = vadd.f32 %v3848, %v3936
        %3938 = vmatmul.bf16.gmra.mxu0 %v3597
        %v3939 = vpop.f32.mrf.mxu0
        %v3940 = vadd.f32 %v3851, %v3939
        %v3941 = vpop.f32.mrf.mxu0
        %v3942 = vadd.f32 %v3853, %v3941
        %3943 = vmatmul.bf16.gmra.mxu0 %v3598
        %v3944 = vpop.f32.mrf.mxu0
        %v3945 = vadd.f32 %v3856, %v3944
        %v3946 = vpop.f32.mrf.mxu0
        %v3947 = vadd.f32 %v3858, %v3946
        %3948 = vmatmul.bf16.gmra.mxu0 %v3599
        %v3949 = vpop.f32.mrf.mxu0
        %v3950 = vadd.f32 %v3861, %v3949
        %v3951 = vpop.f32.mrf.mxu0
        %v3952 = vadd.f32 %v3863, %v3951
        %3953 = vmatmul.bf16.gmra.mxu0 %v3600
        %v3954 = vpop.f32.mrf.mxu0
        %v3955 = vadd.f32 %v3866, %v3954
        %v3956 = vpop.f32.mrf.mxu0
        %v3957 = vadd.f32 %v3868, %v3956
        %3958 = vmatmul.bf16.gmra.mxu0 %v3601
        %v3959 = vpop.f32.mrf.mxu0
        %v3960 = vadd.f32 %v3871, %v3959
        %v3961 = vpop.f32.mrf.mxu0
        %v3962 = vadd.f32 %v3873, %v3961
        %3963 = vmatmul.bf16.gmra.mxu0 %v3602
        %v3964 = vpop.f32.mrf.mxu0
        %v3965 = vadd.f32 %v3876, %v3964
        %v3966 = vpop.f32.mrf.mxu0
        %v3967 = vadd.f32 %v3878, %v3966
        %3968 = vmatmul.bf16.gmra.mxu0 %v3603
        %v3969 = vpop.f32.mrf.mxu0
        %v3970 = vadd.f32 %v3881, %v3969
        %v3971 = vpop.f32.mrf.mxu0
        %v3972 = vadd.f32 %v3883, %v3971
        %3973 = vmatmul.bf16.gmra.mxu0 %v3604
        %v3974 = vpop.f32.mrf.mxu0
        %v3975 = vadd.f32 %v3886, %v3974
        %v3976 = vpop.f32.mrf.mxu0
        %v3977 = vadd.f32 %v3888, %v3976
        %3978 = vmatmul.bf16.gmra.mxu0 %v3605
        %v3979 = vpop.f32.mrf.mxu0
        %v3980 = vadd.f32 %v3891, %v3979
        %v3981 = vpop.f32.mrf.mxu0
        %v3982 = vadd.f32 %v3893, %v3981
        %3983 = vmatmul.bf16.gmra.mxu0 %v3606
        %v3984 = vpop.f32.mrf.mxu0
        %v3985 = vadd.f32 %v3896, %v3984
        %v3986 = vpop.f32.mrf.mxu0
        %v3987 = vadd.f32 %v3898, %v3986
        %3988 = vmatmul.bf16.gmra.mxu0 %v3607
        %v3989 = vpop.f32.mrf.mxu0
        %v3990 = vadd.f32 %v3901, %v3989
        %v3991 = vpop.f32.mrf.mxu0
        %v3992 = vadd.f32 %v3903, %v3991
        %3993 = vmatmul.bf16.gmra.mxu0 %v3608
        %v3994 = vpop.f32.mrf.mxu0
        %v3995 = vadd.f32 %v3906, %v3994
        %v3996 = vpop.f32.mrf.mxu0
        %v3997 = vadd.f32 %v3908, %v3996
        %3998 = vmatmul.bf16.gmra.mxu0 %v3609
        %v3999 = vpop.f32.mrf.mxu0
        %v4000 = vadd.f32 %v3911, %v3999
        %v4001 = vpop.f32.mrf.mxu0
        %v4002 = vadd.f32 %v3913, %v4001
        %4003 = vmatmul.bf16.gmra.mxu0 %v3630
        %v4004 = vpop.f32.mrf.mxu0
        %v4005 = vadd.f32 %v3916, %v4004
        %v4006 = vpop.f32.mrf.mxu0
        %v4007 = vadd.f32 %v3918, %v4006
        %4008 = vdwg.mxu0
        %4009 = vmatpush.bf16.msra.mxu0 %v3806
        %4010 = vmatpush.bf16.msra.mxu0 %v3805
        %4011 = vmatpush.bf16.msra.mxu0 %v3804
        %4012 = vmatpush.bf16.msra.mxu0 %v3803
        %4013 = vmatpush.bf16.msra.mxu0 %v3802
        %4014 = vmatpush.bf16.msra.mxu0 %v3801
        %4015 = vmatpush.bf16.msra.mxu0 %v3800
        %4016 = vmatpush.bf16.msra.mxu0 %v3799
        %4017 = vmatmul.bf16.gmra.mxu0 %v3596
        %v4018 = vpop.f32.mrf.mxu0
        %v4019 = vadd.f32 %v3930, %v4018
        %v4020 = vpop.f32.mrf.mxu0
        %v4021 = vadd.f32 %v3932, %v4020
        %4022 = vmatmul.bf16.gmra.mxu0 %v3597
        %v4023 = vpop.f32.mrf.mxu0
        %v4024 = vadd.f32 %v3935, %v4023
        %v4025 = vpop.f32.mrf.mxu0
        %v4026 = vadd.f32 %v3937, %v4025
        %4027 = vmatmul.bf16.gmra.mxu0 %v3598
        %v4028 = vpop.f32.mrf.mxu0
        %v4029 = vadd.f32 %v3940, %v4028
        %v4030 = vpop.f32.mrf.mxu0
        %v4031 = vadd.f32 %v3942, %v4030
        %4032 = vmatmul.bf16.gmra.mxu0 %v3599
        %v4033 = vpop.f32.mrf.mxu0
        %v4034 = vadd.f32 %v3945, %v4033
        %v4035 = vpop.f32.mrf.mxu0
        %v4036 = vadd.f32 %v3947, %v4035
        %4037 = vmatmul.bf16.gmra.mxu0 %v3600
        %v4038 = vpop.f32.mrf.mxu0
        %v4039 = vadd.f32 %v3950, %v4038
        %v4040 = vpop.f32.mrf.mxu0
        %v4041 = vadd.f32 %v3952, %v4040
        %4042 = vmatmul.bf16.gmra.mxu0 %v3601
        %v4043 = vpop.f32.mrf.mxu0
        %v4044 = vadd.f32 %v3955, %v4043
        %v4045 = vpop.f32.mrf.mxu0
        %v4046 = vadd.f32 %v3957, %v4045
        %4047 = vmatmul.bf16.gmra.mxu0 %v3602
        %v4048 = vpop.f32.mrf.mxu0
        %v4049 = vadd.f32 %v3960, %v4048
        %v4050 = vpop.f32.mrf.mxu0
        %v4051 = vadd.f32 %v3962, %v4050
        %4052 = vmatmul.bf16.gmra.mxu0 %v3603
        %v4053 = vpop.f32.mrf.mxu0
        %v4054 = vadd.f32 %v3965, %v4053
        %v4055 = vpop.f32.mrf.mxu0
        %v4056 = vadd.f32 %v3967, %v4055
        %4057 = vmatmul.bf16.gmra.mxu0 %v3604
        %v4058 = vpop.f32.mrf.mxu0
        %v4059 = vadd.f32 %v3970, %v4058
        %v4060 = vpop.f32.mrf.mxu0
        %v4061 = vadd.f32 %v3972, %v4060
        %4062 = vmatmul.bf16.gmra.mxu0 %v3605
        %v4063 = vpop.f32.mrf.mxu0
        %v4064 = vadd.f32 %v3975, %v4063
        %v4065 = vpop.f32.mrf.mxu0
        %v4066 = vadd.f32 %v3977, %v4065
        %4067 = vmatmul.bf16.gmra.mxu0 %v3606
        %v4068 = vpop.f32.mrf.mxu0
        %v4069 = vadd.f32 %v3980, %v4068
        %v4070 = vpop.f32.mrf.mxu0
        %v4071 = vadd.f32 %v3982, %v4070
        %4072 = vmatmul.bf16.gmra.mxu0 %v3607
        %v4073 = vpop.f32.mrf.mxu0
        %v4074 = vadd.f32 %v3985, %v4073
        %v4075 = vpop.f32.mrf.mxu0
        %v4076 = vadd.f32 %v3987, %v4075
        %4077 = vmatmul.bf16.gmra.mxu0 %v3608
        %v4078 = vpop.f32.mrf.mxu0
        %v4079 = vadd.f32 %v3990, %v4078
        %v4080 = vpop.f32.mrf.mxu0
        %v4081 = vadd.f32 %v3992, %v4080
        %4082 = vmatmul.bf16.gmra.mxu0 %v3609
        %v4083 = vpop.f32.mrf.mxu0
        %v4084 = vadd.f32 %v3995, %v4083
        %v4085 = vpop.f32.mrf.mxu0
        %v4086 = vadd.f32 %v3997, %v4085
        %4087 = vmatmul.bf16.gmra.mxu0 %v3630
        %v4088 = vpop.f32.mrf.mxu0
        %v4089 = vadd.f32 %v4000, %v4088
        %v4090 = vpop.f32.mrf.mxu0
        %v4091 = vadd.f32 %v4002, %v4090
        %4092 = vmatmul.bf16.gmra.mxu0 %v3636
        %v4093 = vpop.f32.mrf.mxu0
        %v4094 = vadd.f32 %v4005, %v4093
        %v4095 = vpop.f32.mrf.mxu0
        %v4096 = vadd.f32 %v4007, %v4095
        %4097 = vdwg.mxu0
        %v4146 = vunpack.c.l.b16 %v3482
        %v4147 = vunpack.c.l.b16 %v3483
        %v4148 = vunpack.c.l.b16 %v3484
        %v4149 = vunpack.c.l.b16 %v3485
        %v4150 = vunpack.c.l.b16 %v3486
        %v4151 = vunpack.c.l.b16 %v3487
        %v4152 = vunpack.c.l.b16 %v3488
        %v4153 = vunpack.c.l.b16 %v3489
        %v4154 = vunpack.c.l.b16 %v3490
        %v4155 = vunpack.c.l.b16 %v3491
        %v4156 = vunpack.c.l.b16 %v3492
        %v4157 = vunpack.c.l.b16 %v3493
        %v4158 = vunpack.c.l.b16 %v3494
        %v4159 = vunpack.c.l.b16 %v3495
        %v4160 = vunpack.c.l.b16 %v3496
        %v4161 = vunpack.c.l.b16 %v3497
        %v4162 = vunpack.c.l.b16 %v3498
        %v4163 = vunpack.c.l.b16 %v3499
        %v4164 = vunpack.c.l.b16 %v3500
        %v4165 = vunpack.c.l.b16 %v3501
        %v4166 = vunpack.c.l.b16 %v3502
        %v4167 = vunpack.c.l.b16 %v3503
        %v4168 = vunpack.c.l.b16 %v3504
        %v4169 = vunpack.c.l.b16 %v3505
        %v4170 = vunpack.c.l.b16 %v3506
        %v4171 = vunpack.c.l.b16 %v3507
        %v4172 = vunpack.c.l.b16 %v3508
        %v4173 = vunpack.c.l.b16 %v3509
        %v4174 = vunpack.c.l.b16 %v3510
        %v4175 = vunpack.c.l.b16 %v3511
        %v4176 = vunpack.c.l.b16 %v3512
        %v4177 = vunpack.c.l.b16 %v3513
        %v4178 = vunpack.c.l.b16 %v3514
        %v4179 = vunpack.c.l.b16 %v3515
        %v4180 = vunpack.c.l.b16 %v3516
        %v4181 = vunpack.c.l.b16 %v3517
        %v4182 = vunpack.c.l.b16 %v3518
        %v4183 = vunpack.c.l.b16 %v3519
        %v4184 = vunpack.c.l.b16 %v3520
        %v4185 = vunpack.c.l.b16 %v3521
        %v4186 = vunpack.c.l.b16 %v3522
        %v4187 = vunpack.c.l.b16 %v3523
        %v4188 = vunpack.c.l.b16 %v3524
        %v4189 = vunpack.c.l.b16 %v3525
        %v4190 = vunpack.c.l.b16 %v3526
        %v4191 = vunpack.c.l.b16 %v3527
        %v4192 = vunpack.c.l.b16 %v3528
        %v4193 = vunpack.c.l.b16 %v3529
        %v4194 = vpack.c.b16 %v4147, %v4146
        %v4195 = vpack.c.b16 %v4149, %v4148
        %v4196 = vpack.c.b16 %v4151, %v4150
        %v4197 = vpack.c.b16 %v4153, %v4152
        %v4198 = vpack.c.b16 %v4155, %v4154
        %v4199 = vpack.c.b16 %v4157, %v4156
        %v4200 = vpack.c.b16 %v4159, %v4158
        %v4201 = vpack.c.b16 %v4161, %v4160
        %v4202 = vpack.c.b16 %v4163, %v4162
        %v4203 = vpack.c.b16 %v4165, %v4164
        %v4204 = vpack.c.b16 %v4167, %v4166
        %v4205 = vpack.c.b16 %v4169, %v4168
        %v4206 = vpack.c.b16 %v4171, %v4170
        %v4207 = vpack.c.b16 %v4173, %v4172
        %v4208 = vpack.c.b16 %v4175, %v4174
        %v4209 = vpack.c.b16 %v4177, %v4176
        %v4210 = vpack.c.b16 %v4179, %v4178
        %v4211 = vpack.c.b16 %v4181, %v4180
        %v4212 = vpack.c.b16 %v4183, %v4182
        %v4213 = vpack.c.b16 %v4185, %v4184
        %v4214 = vpack.c.b16 %v4187, %v4186
        %v4215 = vpack.c.b16 %v4189, %v4188
        %v4216 = vpack.c.b16 %v4191, %v4190
        %v4217 = vpack.c.b16 %v4193, %v4192
        %4242 = vmatpush.bf16.msra.mxu0 %v4201
        %4243 = vmatpush.bf16.msra.mxu0 %v4200
        %4244 = vmatpush.bf16.msra.mxu0 %v4199
        %4245 = vmatpush.bf16.msra.mxu0 %v4198
        %4246 = vmatpush.bf16.msra.mxu0 %v4197
        %4247 = vmatpush.bf16.msra.mxu0 %v4196
        %4248 = vmatpush.bf16.msra.mxu0 %v4195
        %4249 = vmatpush.bf16.msra.mxu0 %v4194
        %4250 = vmatmul.bf16.gmra.mxu0 %v3442
        %v4251 = vpop.f32.mrf.mxu0
        %v4252 = vadd.f32 %v4019, %v4251
        %v4253 = vpop.f32.mrf.mxu0
        %v4254 = vadd.f32 %v4021, %v4253
        %4255 = vmatmul.bf16.gmra.mxu0 %v3443
        %v4256 = vpop.f32.mrf.mxu0
        %v4257 = vadd.f32 %v4024, %v4256
        %v4258 = vpop.f32.mrf.mxu0
        %v4259 = vadd.f32 %v4026, %v4258
        %4260 = vmatmul.bf16.gmra.mxu0 %v3444
        %v4261 = vpop.f32.mrf.mxu0
        %v4262 = vadd.f32 %v4029, %v4261
        %v4263 = vpop.f32.mrf.mxu0
        %v4264 = vadd.f32 %v4031, %v4263
        %4265 = vmatmul.bf16.gmra.mxu0 %v3445
        %v4266 = vpop.f32.mrf.mxu0
        %v4267 = vadd.f32 %v4034, %v4266
        %v4268 = vpop.f32.mrf.mxu0
        %v4269 = vadd.f32 %v4036, %v4268
        %4270 = vmatmul.bf16.gmra.mxu0 %v3446
        %v4271 = vpop.f32.mrf.mxu0
        %v4272 = vadd.f32 %v4039, %v4271
        %v4273 = vpop.f32.mrf.mxu0
        %v4274 = vadd.f32 %v4041, %v4273
        %4275 = vmatmul.bf16.gmra.mxu0 %v3447
        %v4276 = vpop.f32.mrf.mxu0
        %v4277 = vadd.f32 %v4044, %v4276
        %v4278 = vpop.f32.mrf.mxu0
        %v4279 = vadd.f32 %v4046, %v4278
        %4280 = vmatmul.bf16.gmra.mxu0 %v3448
        %v4281 = vpop.f32.mrf.mxu0
        %v4282 = vadd.f32 %v4049, %v4281
        %v4283 = vpop.f32.mrf.mxu0
        %v4284 = vadd.f32 %v4051, %v4283
        %4285 = vmatmul.bf16.gmra.mxu0 %v3449
        %v4286 = vpop.f32.mrf.mxu0
        %v4287 = vadd.f32 %v4054, %v4286
        %v4288 = vpop.f32.mrf.mxu0
        %v4289 = vadd.f32 %v4056, %v4288
        %4290 = vmatmul.bf16.gmra.mxu0 %v3450
        %v4291 = vpop.f32.mrf.mxu0
        %v4292 = vadd.f32 %v4059, %v4291
        %v4293 = vpop.f32.mrf.mxu0
        %v4294 = vadd.f32 %v4061, %v4293
        %4295 = vmatmul.bf16.gmra.mxu0 %v3451
        %v4296 = vpop.f32.mrf.mxu0
        %v4297 = vadd.f32 %v4064, %v4296
        %v4298 = vpop.f32.mrf.mxu0
        %v4299 = vadd.f32 %v4066, %v4298
        %4300 = vmatmul.bf16.gmra.mxu0 %v3452
        %v4301 = vpop.f32.mrf.mxu0
        %v4302 = vadd.f32 %v4069, %v4301
        %v4303 = vpop.f32.mrf.mxu0
        %v4304 = vadd.f32 %v4071, %v4303
        %4305 = vmatmul.bf16.gmra.mxu0 %v3453
        %v4306 = vpop.f32.mrf.mxu0
        %v4307 = vadd.f32 %v4074, %v4306
        %v4308 = vpop.f32.mrf.mxu0
        %v4309 = vadd.f32 %v4076, %v4308
        %4310 = vmatmul.bf16.gmra.mxu0 %v3454
        %v4311 = vpop.f32.mrf.mxu0
        %v4312 = vadd.f32 %v4079, %v4311
        %v4313 = vpop.f32.mrf.mxu0
        %v4314 = vadd.f32 %v4081, %v4313
        %4315 = vmatmul.bf16.gmra.mxu0 %v3455
        %v4316 = vpop.f32.mrf.mxu0
        %v4317 = vadd.f32 %v4084, %v4316
        %v4318 = vpop.f32.mrf.mxu0
        %v4319 = vadd.f32 %v4086, %v4318
        %4320 = vmatmul.bf16.gmra.mxu0 %v3456
        %v4321 = vpop.f32.mrf.mxu0
        %v4322 = vadd.f32 %v4089, %v4321
        %v4323 = vpop.f32.mrf.mxu0
        %v4324 = vadd.f32 %v4091, %v4323
        %4325 = vmatmul.bf16.gmra.mxu0 %v3457
        %v4326 = vpop.f32.mrf.mxu0
        %v4327 = vadd.f32 %v4094, %v4326
        %v4328 = vpop.f32.mrf.mxu0
        %v4329 = vadd.f32 %v4096, %v4328
        %4330 = vdwg.mxu0
        %4331 = vmatpush.bf16.msra.mxu0 %v4209
        %4332 = vmatpush.bf16.msra.mxu0 %v4208
        %4333 = vmatpush.bf16.msra.mxu0 %v4207
        %4334 = vmatpush.bf16.msra.mxu0 %v4206
        %4335 = vmatpush.bf16.msra.mxu0 %v4205
        %4336 = vmatpush.bf16.msra.mxu0 %v4204
        %4337 = vmatpush.bf16.msra.mxu0 %v4203
        %4338 = vmatpush.bf16.msra.mxu0 %v4202
        %4339 = vmatmul.bf16.gmra.mxu0 %v3443
        %v4340 = vpop.f32.mrf.mxu0
        %v4341 = vadd.f32 %v4252, %v4340
        %v4342 = vpop.f32.mrf.mxu0
        %v4343 = vadd.f32 %v4254, %v4342
        %4344 = vmatmul.bf16.gmra.mxu0 %v3444
        %v4345 = vpop.f32.mrf.mxu0
        %v4346 = vadd.f32 %v4257, %v4345
        %v4347 = vpop.f32.mrf.mxu0
        %v4348 = vadd.f32 %v4259, %v4347
        %4349 = vmatmul.bf16.gmra.mxu0 %v3445
        %v4350 = vpop.f32.mrf.mxu0
        %v4351 = vadd.f32 %v4262, %v4350
        %v4352 = vpop.f32.mrf.mxu0
        %v4353 = vadd.f32 %v4264, %v4352
        %4354 = vmatmul.bf16.gmra.mxu0 %v3446
        %v4355 = vpop.f32.mrf.mxu0
        %v4356 = vadd.f32 %v4267, %v4355
        %v4357 = vpop.f32.mrf.mxu0
        %v4358 = vadd.f32 %v4269, %v4357
        %4359 = vmatmul.bf16.gmra.mxu0 %v3447
        %v4360 = vpop.f32.mrf.mxu0
        %v4361 = vadd.f32 %v4272, %v4360
        %v4362 = vpop.f32.mrf.mxu0
        %v4363 = vadd.f32 %v4274, %v4362
        %4364 = vmatmul.bf16.gmra.mxu0 %v3448
        %v4365 = vpop.f32.mrf.mxu0
        %v4366 = vadd.f32 %v4277, %v4365
        %v4367 = vpop.f32.mrf.mxu0
        %v4368 = vadd.f32 %v4279, %v4367
        %4369 = vmatmul.bf16.gmra.mxu0 %v3449
        %v4370 = vpop.f32.mrf.mxu0
        %v4371 = vadd.f32 %v4282, %v4370
        %v4372 = vpop.f32.mrf.mxu0
        %v4373 = vadd.f32 %v4284, %v4372
        %4374 = vmatmul.bf16.gmra.mxu0 %v3450
        %v4375 = vpop.f32.mrf.mxu0
        %v4376 = vadd.f32 %v4287, %v4375
        %v4377 = vpop.f32.mrf.mxu0
        %v4378 = vadd.f32 %v4289, %v4377
        %4379 = vmatmul.bf16.gmra.mxu0 %v3451
        %v4380 = vpop.f32.mrf.mxu0
        %v4381 = vadd.f32 %v4292, %v4380
        %v4382 = vpop.f32.mrf.mxu0
        %v4383 = vadd.f32 %v4294, %v4382
        %4384 = vmatmul.bf16.gmra.mxu0 %v3452
        %v4385 = vpop.f32.mrf.mxu0
        %v4386 = vadd.f32 %v4297, %v4385
        %v4387 = vpop.f32.mrf.mxu0
        %v4388 = vadd.f32 %v4299, %v4387
        %4389 = vmatmul.bf16.gmra.mxu0 %v3453
        %v4390 = vpop.f32.mrf.mxu0
        %v4391 = vadd.f32 %v4302, %v4390
        %v4392 = vpop.f32.mrf.mxu0
        %v4393 = vadd.f32 %v4304, %v4392
        %4394 = vmatmul.bf16.gmra.mxu0 %v3454
        %v4395 = vpop.f32.mrf.mxu0
        %v4396 = vadd.f32 %v4307, %v4395
        %v4397 = vpop.f32.mrf.mxu0
        %v4398 = vadd.f32 %v4309, %v4397
        %4399 = vmatmul.bf16.gmra.mxu0 %v3455
        %v4400 = vpop.f32.mrf.mxu0
        %v4401 = vadd.f32 %v4312, %v4400
        %v4402 = vpop.f32.mrf.mxu0
        %v4403 = vadd.f32 %v4314, %v4402
        %4404 = vmatmul.bf16.gmra.mxu0 %v3456
        %v4405 = vpop.f32.mrf.mxu0
        %v4406 = vadd.f32 %v4317, %v4405
        %v4407 = vpop.f32.mrf.mxu0
        %v4408 = vadd.f32 %v4319, %v4407
        %4409 = vmatmul.bf16.gmra.mxu0 %v3457
        %v4410 = vpop.f32.mrf.mxu0
        %v4411 = vadd.f32 %v4322, %v4410
        %v4412 = vpop.f32.mrf.mxu0
        %v4413 = vadd.f32 %v4324, %v4412
        %4414 = vmatmul.bf16.gmra.mxu0 %v3476
        %v4415 = vpop.f32.mrf.mxu0
        %v4416 = vadd.f32 %v4327, %v4415
        %v4417 = vpop.f32.mrf.mxu0
        %v4418 = vadd.f32 %v4329, %v4417
        %4419 = vdwg.mxu0
        %4420 = vmatpush.bf16.msra.mxu0 %v4217
        %4421 = vmatpush.bf16.msra.mxu0 %v4216
        %4422 = vmatpush.bf16.msra.mxu0 %v4215
        %4423 = vmatpush.bf16.msra.mxu0 %v4214
        %4424 = vmatpush.bf16.msra.mxu0 %v4213
        %4425 = vmatpush.bf16.msra.mxu0 %v4212
        %4426 = vmatpush.bf16.msra.mxu0 %v4211
        %4427 = vmatpush.bf16.msra.mxu0 %v4210
        %4428 = vmatmul.bf16.gmra.mxu0 %v3444
        %v4429 = vpop.f32.mrf.mxu0
        %v4430 = vadd.f32 %v4341, %v4429
        %v4431 = vpop.f32.mrf.mxu0
        %v4432 = vadd.f32 %v4343, %v4431
        %4433 = vmatmul.bf16.gmra.mxu0 %v3445
        %v4434 = vpop.f32.mrf.mxu0
        %v4435 = vadd.f32 %v4346, %v4434
        %v4436 = vpop.f32.mrf.mxu0
        %v4437 = vadd.f32 %v4348, %v4436
        %4438 = vmatmul.bf16.gmra.mxu0 %v3446
        %v4439 = vpop.f32.mrf.mxu0
        %v4440 = vadd.f32 %v4351, %v4439
        %v4441 = vpop.f32.mrf.mxu0
        %v4442 = vadd.f32 %v4353, %v4441
        %4443 = vmatmul.bf16.gmra.mxu0 %v3447
        %v4444 = vpop.f32.mrf.mxu0
        %v4445 = vadd.f32 %v4356, %v4444
        %v4446 = vpop.f32.mrf.mxu0
        %v4447 = vadd.f32 %v4358, %v4446
        %4448 = vmatmul.bf16.gmra.mxu0 %v3448
        %v4449 = vpop.f32.mrf.mxu0
        %v4450 = vadd.f32 %v4361, %v4449
        %v4451 = vpop.f32.mrf.mxu0
        %v4452 = vadd.f32 %v4363, %v4451
        %4453 = vmatmul.bf16.gmra.mxu0 %v3449
        %v4454 = vpop.f32.mrf.mxu0
        %v4455 = vadd.f32 %v4366, %v4454
        %v4456 = vpop.f32.mrf.mxu0
        %v4457 = vadd.f32 %v4368, %v4456
        %4458 = vmatmul.bf16.gmra.mxu0 %v3450
        %v4459 = vpop.f32.mrf.mxu0
        %v4460 = vadd.f32 %v4371, %v4459
        %v4461 = vpop.f32.mrf.mxu0
        %v4462 = vadd.f32 %v4373, %v4461
        %4463 = vmatmul.bf16.gmra.mxu0 %v3451
        %v4464 = vpop.f32.mrf.mxu0
        %v4465 = vadd.f32 %v4376, %v4464
        %v4466 = vpop.f32.mrf.mxu0
        %v4467 = vadd.f32 %v4378, %v4466
        %4468 = vmatmul.bf16.gmra.mxu0 %v3452
        %v4469 = vpop.f32.mrf.mxu0
        %v4470 = vadd.f32 %v4381, %v4469
        %v4471 = vpop.f32.mrf.mxu0
        %v4472 = vadd.f32 %v4383, %v4471
        %4473 = vmatmul.bf16.gmra.mxu0 %v3453
        %v4474 = vpop.f32.mrf.mxu0
        %v4475 = vadd.f32 %v4386, %v4474
        %v4476 = vpop.f32.mrf.mxu0
        %v4477 = vadd.f32 %v4388, %v4476
        %4478 = vmatmul.bf16.gmra.mxu0 %v3454
        %v4479 = vpop.f32.mrf.mxu0
        %v4480 = vadd.f32 %v4391, %v4479
        %v4481 = vpop.f32.mrf.mxu0
        %v4482 = vadd.f32 %v4393, %v4481
        %4483 = vmatmul.bf16.gmra.mxu0 %v3455
        %v4484 = vpop.f32.mrf.mxu0
        %v4485 = vadd.f32 %v4396, %v4484
        %v4486 = vpop.f32.mrf.mxu0
        %v4487 = vadd.f32 %v4398, %v4486
        %4488 = vmatmul.bf16.gmra.mxu0 %v3456
        %v4489 = vpop.f32.mrf.mxu0
        %v4490 = vadd.f32 %v4401, %v4489
        %v4491 = vpop.f32.mrf.mxu0
        %v4492 = vadd.f32 %v4403, %v4491
        %4493 = vmatmul.bf16.gmra.mxu0 %v3457
        %v4494 = vpop.f32.mrf.mxu0
        %v4495 = vadd.f32 %v4406, %v4494
        %v4496 = vpop.f32.mrf.mxu0
        %v4497 = vadd.f32 %v4408, %v4496
        %4498 = vmatmul.bf16.gmra.mxu0 %v3476
        %v4499 = vpop.f32.mrf.mxu0
        %v4500 = vadd.f32 %v4411, %v4499
        %v4501 = vpop.f32.mrf.mxu0
        %v4502 = vadd.f32 %v4413, %v4501
        %4503 = vmatmul.bf16.gmra.mxu0 %v3480
        %v4504 = vpop.f32.mrf.mxu0
        %v4505 = vadd.f32 %v4416, %v4504
        %v4506 = vpop.f32.mrf.mxu0
        %v4507 = vadd.f32 %v4418, %v4506
        %4508 = vdwg.mxu0
        %v4509 = vld [vmem:[#allocation2 + $0x8] sm:$0xf]
        %v4510 = vld [vmem:[#allocation2 + $0xc] sm:$0xf]
        %v4511 = vld [vmem:[#allocation2 + $0x10] sm:$0x1]
        %v4512 = vld [vmem:[#allocation2 + $0x20] sm:$0xf]
        %v4513 = vld [vmem:[#allocation2 + $0x24] sm:$0xf]
        %v4514 = vld [vmem:[#allocation2 + $0x28] sm:$0x1]
        %v4515 = vld [vmem:[#allocation2 + $0x38] sm:$0xf]
        %v4516 = vld [vmem:[#allocation2 + $0x3c] sm:$0xf]
        %v4517 = vld [vmem:[#allocation2 + $0x40] sm:$0x1]
        %v4518 = vld [vmem:[#allocation2 + $0x50] sm:$0xf]
        %v4519 = vld [vmem:[#allocation2 + $0x54] sm:$0xf]
        %v4520 = vld [vmem:[#allocation2 + $0x58] sm:$0x1]
        %v4521 = vld [vmem:[#allocation2 + $0x68] sm:$0xf]
        %v4522 = vld [vmem:[#allocation2 + $0x6c] sm:$0xf]
        %v4523 = vld [vmem:[#allocation2 + $0x70] sm:$0x1]
        %v4524 = vld [vmem:[#allocation2 + $0x80] sm:$0xf]
        %v4525 = vld [vmem:[#allocation2 + $0x84] sm:$0xf]
        %v4526 = vld [vmem:[#allocation2 + $0x88] sm:$0x1]
        %v4527 = vld [vmem:[#allocation2 + $0x98] sm:$0xf]
        %v4528 = vld [vmem:[#allocation2 + $0x9c] sm:$0xf]
        %v4529 = vld [vmem:[#allocation2 + $0xa0] sm:$0x1]
        %v4530 = vld [vmem:[#allocation2 + $0xb0] sm:$0xf]
        %v4531 = vld [vmem:[#allocation2 + $0xb4] sm:$0xf]
        %v4532 = vld [vmem:[#allocation2 + $0xb8] sm:$0x1]
        %v4533 = vld [vmem:[#allocation2 + $0xc8] sm:$0xf]
        %v4534 = vld [vmem:[#allocation2 + $0xcc] sm:$0xf]
        %v4535 = vld [vmem:[#allocation2 + $0xd0] sm:$0x1]
        %v4536 = vld [vmem:[#allocation2 + $0xe0] sm:$0xf]
        %v4537 = vld [vmem:[#allocation2 + $0xe4] sm:$0xf]
        %v4538 = vld [vmem:[#allocation2 + $0xe8] sm:$0x1]
        %v4539 = vld [vmem:[#allocation2 + $0xf8] sm:$0xf]
        %v4540 = vld [vmem:[#allocation2 + $0xfc] sm:$0xf]
        %v4541 = vld [vmem:[#allocation2 + $0x100] sm:$0x1]
        %v4542 = vld [vmem:[#allocation2 + $0x110] sm:$0xf]
        %v4543 = vld [vmem:[#allocation2 + $0x114] sm:$0xf]
        %v4544 = vld [vmem:[#allocation2 + $0x118] sm:$0x1]
        %v4545 = vld [vmem:[#allocation2 + $0x128] sm:$0xf]
        %v4546 = vld [vmem:[#allocation2 + $0x12c] sm:$0xf]
        %v4547 = vld [vmem:[#allocation2 + $0x130] sm:$0x1]
        %v4548 = vld [vmem:[#allocation2 + $0x140] sm:$0xf]
        %v4549 = vld [vmem:[#allocation2 + $0x144] sm:$0xf]
        %v4550 = vld [vmem:[#allocation2 + $0x148] sm:$0x1]
        %v4551 = vld [vmem:[#allocation2 + $0x158] sm:$0xf]
        %v4552 = vld [vmem:[#allocation2 + $0x15c] sm:$0xf]
        %v4553 = vld [vmem:[#allocation2 + $0x160] sm:$0x1]
        %v4554 = vld [vmem:[#allocation2 + $0x170] sm:$0xf]
        %v4555 = vld [vmem:[#allocation2 + $0x174] sm:$0xf]
        %v4556 = vld [vmem:[#allocation2 + $0x178] sm:$0x1]
        %v4557 = vld [vmem:[#allocation2 + $0x188] sm:$0xf]
        %v4558 = vld [vmem:[#allocation2 + $0x18c] sm:$0xf]
        %v4559 = vld [vmem:[#allocation2 + $0x190] sm:$0x1]
        %v4560 = vld [vmem:[#allocation2 + $0x1a0] sm:$0xf]
        %v4561 = vld [vmem:[#allocation2 + $0x1a4] sm:$0xf]
        %v4562 = vld [vmem:[#allocation2 + $0x1a8] sm:$0x1]
        %v4564 = vshrl.u32 %v4509, 16
        %v4566 = vrot.slane %v4564, 4
        %v4567 = vshll.u32 %v4509, 16
        %v4569 = vrot.slane %v4567, 5
        %v4570 = vor.u32 %v4566, %v4569
        %v4571 = vrot.slane %v4570, 4
        %v4573 = vshll.u32 %v4510, 16
        %v4575 = vrot.slane %v4573, 5
        %v4576 = vsel %vm507, %v4571, %v4575
        %v4577 = vshrl.u32 %v4510, 16
        %v4579 = vrot.slane %v4577, 4
        %v4580 = vor.u32 %v4579, %v4575
        %v4581 = vrot.slane %v4580, 4
        %v4583 = vshll.u32 %v4511, 16
        %v4585 = vrot.slane %v4583, 5
        %v4586 = vsel %vm507, %v4581, %v4585
        %v4588 = vshrl.u32 %v4512, 16
        %v4590 = vrot.slane %v4588, 4
        %v4591 = vshll.u32 %v4512, 16
        %v4593 = vrot.slane %v4591, 5
        %v4594 = vor.u32 %v4590, %v4593
        %v4595 = vrot.slane %v4594, 4
        %v4597 = vshll.u32 %v4513, 16
        %v4599 = vrot.slane %v4597, 5
        %v4600 = vsel %vm507, %v4595, %v4599
        %v4601 = vshrl.u32 %v4513, 16
        %v4603 = vrot.slane %v4601, 4
        %v4604 = vor.u32 %v4603, %v4599
        %v4605 = vrot.slane %v4604, 4
        %v4607 = vshll.u32 %v4514, 16
        %v4609 = vrot.slane %v4607, 5
        %v4610 = vsel %vm507, %v4605, %v4609
        %v4612 = vshrl.u32 %v4515, 16
        %v4614 = vrot.slane %v4612, 4
        %v4615 = vshll.u32 %v4515, 16
        %v4617 = vrot.slane %v4615, 5
        %v4618 = vor.u32 %v4614, %v4617
        %v4619 = vrot.slane %v4618, 4
        %v4621 = vshll.u32 %v4516, 16
        %v4623 = vrot.slane %v4621, 5
        %v4624 = vsel %vm507, %v4619, %v4623
        %v4625 = vshrl.u32 %v4516, 16
        %v4627 = vrot.slane %v4625, 4
        %v4628 = vor.u32 %v4627, %v4623
        %v4629 = vrot.slane %v4628, 4
        %v4631 = vshll.u32 %v4517, 16
        %v4633 = vrot.slane %v4631, 5
        %v4634 = vsel %vm507, %v4629, %v4633
        %v4636 = vshrl.u32 %v4518, 16
        %v4638 = vrot.slane %v4636, 4
        %v4639 = vshll.u32 %v4518, 16
        %v4641 = vrot.slane %v4639, 5
        %v4642 = vor.u32 %v4638, %v4641
        %v4643 = vrot.slane %v4642, 4
        %v4645 = vshll.u32 %v4519, 16
        %v4647 = vrot.slane %v4645, 5
        %v4648 = vsel %vm507, %v4643, %v4647
        %v4649 = vshrl.u32 %v4519, 16
        %v4651 = vrot.slane %v4649, 4
        %v4652 = vor.u32 %v4651, %v4647
        %v4653 = vrot.slane %v4652, 4
        %v4655 = vshll.u32 %v4520, 16
        %v4657 = vrot.slane %v4655, 5
        %v4658 = vsel %vm507, %v4653, %v4657
        %v4660 = vshrl.u32 %v4521, 16
        %v4662 = vrot.slane %v4660, 4
        %v4663 = vshll.u32 %v4521, 16
        %v4665 = vrot.slane %v4663, 5
        %v4666 = vor.u32 %v4662, %v4665
        %v4667 = vrot.slane %v4666, 4
        %v4669 = vshll.u32 %v4522, 16
        %v4671 = vrot.slane %v4669, 5
        %v4672 = vsel %vm507, %v4667, %v4671
        %v4673 = vshrl.u32 %v4522, 16
        %v4675 = vrot.slane %v4673, 4
        %v4676 = vor.u32 %v4675, %v4671
        %v4677 = vrot.slane %v4676, 4
        %v4679 = vshll.u32 %v4523, 16
        %v4681 = vrot.slane %v4679, 5
        %v4682 = vsel %vm507, %v4677, %v4681
        %v4684 = vshrl.u32 %v4524, 16
        %v4686 = vrot.slane %v4684, 4
        %v4687 = vshll.u32 %v4524, 16
        %v4689 = vrot.slane %v4687, 5
        %v4690 = vor.u32 %v4686, %v4689
        %v4691 = vrot.slane %v4690, 4
        %v4693 = vshll.u32 %v4525, 16
        %v4695 = vrot.slane %v4693, 5
        %v4696 = vsel %vm507, %v4691, %v4695
        %v4697 = vshrl.u32 %v4525, 16
        %v4699 = vrot.slane %v4697, 4
        %v4700 = vor.u32 %v4699, %v4695
        %v4701 = vrot.slane %v4700, 4
        %v4703 = vshll.u32 %v4526, 16
        %v4705 = vrot.slane %v4703, 5
        %v4706 = vsel %vm507, %v4701, %v4705
        %v4708 = vshrl.u32 %v4527, 16
        %v4710 = vrot.slane %v4708, 4
        %v4711 = vshll.u32 %v4527, 16
        %v4713 = vrot.slane %v4711, 5
        %v4714 = vor.u32 %v4710, %v4713
        %v4715 = vrot.slane %v4714, 4
        %v4717 = vshll.u32 %v4528, 16
        %v4719 = vrot.slane %v4717, 5
        %v4720 = vsel %vm507, %v4715, %v4719
        %v4721 = vshrl.u32 %v4528, 16
        %v4723 = vrot.slane %v4721, 4
        %v4724 = vor.u32 %v4723, %v4719
        %v4725 = vrot.slane %v4724, 4
        %v4727 = vshll.u32 %v4529, 16
        %v4729 = vrot.slane %v4727, 5
        %v4730 = vsel %vm507, %v4725, %v4729
        %v4732 = vshrl.u32 %v4530, 16
        %v4734 = vrot.slane %v4732, 4
        %v4735 = vshll.u32 %v4530, 16
        %v4737 = vrot.slane %v4735, 5
        %v4738 = vor.u32 %v4734, %v4737
        %v4739 = vrot.slane %v4738, 4
        %v4741 = vshll.u32 %v4531, 16
        %v4743 = vrot.slane %v4741, 5
        %v4744 = vsel %vm507, %v4739, %v4743
        %v4745 = vshrl.u32 %v4531, 16
        %v4747 = vrot.slane %v4745, 4
        %v4748 = vor.u32 %v4747, %v4743
        %v4749 = vrot.slane %v4748, 4
        %v4751 = vshll.u32 %v4532, 16
        %v4753 = vrot.slane %v4751, 5
        %v4754 = vsel %vm507, %v4749, %v4753
        %v4756 = vshrl.u32 %v4533, 16
        %v4758 = vrot.slane %v4756, 4
        %v4759 = vshll.u32 %v4533, 16
        %v4761 = vrot.slane %v4759, 5
        %v4762 = vor.u32 %v4758, %v4761
        %v4763 = vrot.slane %v4762, 4
        %v4765 = vshll.u32 %v4534, 16
        %v4767 = vrot.slane %v4765, 5
        %v4768 = vsel %vm507, %v4763, %v4767
        %v4769 = vshrl.u32 %v4534, 16
        %v4771 = vrot.slane %v4769, 4
        %v4772 = vor.u32 %v4771, %v4767
        %v4773 = vrot.slane %v4772, 4
        %v4775 = vshll.u32 %v4535, 16
        %v4777 = vrot.slane %v4775, 5
        %v4778 = vsel %vm507, %v4773, %v4777
        %v4780 = vshrl.u32 %v4536, 16
        %v4782 = vrot.slane %v4780, 4
        %v4783 = vshll.u32 %v4536, 16
        %v4785 = vrot.slane %v4783, 5
        %v4786 = vor.u32 %v4782, %v4785
        %v4787 = vrot.slane %v4786, 4
        %v4789 = vshll.u32 %v4537, 16
        %v4791 = vrot.slane %v4789, 5
        %v4792 = vsel %vm507, %v4787, %v4791
        %v4793 = vshrl.u32 %v4537, 16
        %v4795 = vrot.slane %v4793, 4
        %v4796 = vor.u32 %v4795, %v4791
        %v4797 = vrot.slane %v4796, 4
        %v4799 = vshll.u32 %v4538, 16
        %v4801 = vrot.slane %v4799, 5
        %v4802 = vsel %vm507, %v4797, %v4801
        %v4804 = vshrl.u32 %v4539, 16
        %v4806 = vrot.slane %v4804, 4
        %v4807 = vshll.u32 %v4539, 16
        %v4809 = vrot.slane %v4807, 5
        %v4810 = vor.u32 %v4806, %v4809
        %v4811 = vrot.slane %v4810, 4
        %v4813 = vshll.u32 %v4540, 16
        %v4815 = vrot.slane %v4813, 5
        %v4816 = vsel %vm507, %v4811, %v4815
        %v4817 = vshrl.u32 %v4540, 16
        %v4819 = vrot.slane %v4817, 4
        %v4820 = vor.u32 %v4819, %v4815
        %v4821 = vrot.slane %v4820, 4
        %v4823 = vshll.u32 %v4541, 16
        %v4825 = vrot.slane %v4823, 5
        %v4826 = vsel %vm507, %v4821, %v4825
        %v4828 = vshrl.u32 %v4542, 16
        %v4830 = vrot.slane %v4828, 4
        %v4831 = vshll.u32 %v4542, 16
        %v4833 = vrot.slane %v4831, 5
        %v4834 = vor.u32 %v4830, %v4833
        %v4835 = vrot.slane %v4834, 4
        %v4837 = vshll.u32 %v4543, 16
        %v4839 = vrot.slane %v4837, 5
        %v4840 = vsel %vm507, %v4835, %v4839
        %v4841 = vshrl.u32 %v4543, 16
        %v4843 = vrot.slane %v4841, 4
        %v4844 = vor.u32 %v4843, %v4839
        %v4845 = vrot.slane %v4844, 4
        %v4847 = vshll.u32 %v4544, 16
        %v4849 = vrot.slane %v4847, 5
        %v4850 = vsel %vm507, %v4845, %v4849
        %v4852 = vshrl.u32 %v4545, 16
        %v4854 = vrot.slane %v4852, 4
        %v4855 = vshll.u32 %v4545, 16
        %v4857 = vrot.slane %v4855, 5
        %v4858 = vor.u32 %v4854, %v4857
        %v4859 = vrot.slane %v4858, 4
        %v4861 = vshll.u32 %v4546, 16
        %v4863 = vrot.slane %v4861, 5
        %v4864 = vsel %vm507, %v4859, %v4863
        %v4865 = vshrl.u32 %v4546, 16
        %v4867 = vrot.slane %v4865, 4
        %v4868 = vor.u32 %v4867, %v4863
        %v4869 = vrot.slane %v4868, 4
        %v4871 = vshll.u32 %v4547, 16
        %v4873 = vrot.slane %v4871, 5
        %v4874 = vsel %vm507, %v4869, %v4873
        %v4876 = vshrl.u32 %v4548, 16
        %v4878 = vrot.slane %v4876, 4
        %v4879 = vshll.u32 %v4548, 16
        %v4881 = vrot.slane %v4879, 5
        %v4882 = vor.u32 %v4878, %v4881
        %v4883 = vrot.slane %v4882, 4
        %v4885 = vshll.u32 %v4549, 16
        %v4887 = vrot.slane %v4885, 5
        %v4888 = vsel %vm507, %v4883, %v4887
        %v4889 = vshrl.u32 %v4549, 16
        %v4891 = vrot.slane %v4889, 4
        %v4892 = vor.u32 %v4891, %v4887
        %v4893 = vrot.slane %v4892, 4
        %v4895 = vshll.u32 %v4550, 16
        %v4897 = vrot.slane %v4895, 5
        %v4898 = vsel %vm507, %v4893, %v4897
        %v4900 = vshrl.u32 %v4551, 16
        %v4902 = vrot.slane %v4900, 4
        %v4903 = vshll.u32 %v4551, 16
        %v4905 = vrot.slane %v4903, 5
        %v4906 = vor.u32 %v4902, %v4905
        %v4907 = vrot.slane %v4906, 4
        %v4909 = vshll.u32 %v4552, 16
        %v4911 = vrot.slane %v4909, 5
        %v4912 = vsel %vm507, %v4907, %v4911
        %v4913 = vshrl.u32 %v4552, 16
        %v4915 = vrot.slane %v4913, 4
        %v4916 = vor.u32 %v4915, %v4911
        %v4917 = vrot.slane %v4916, 4
        %v4919 = vshll.u32 %v4553, 16
        %v4921 = vrot.slane %v4919, 5
        %v4922 = vsel %vm507, %v4917, %v4921
        %v4924 = vshrl.u32 %v4554, 16
        %v4926 = vrot.slane %v4924, 4
        %v4927 = vshll.u32 %v4554, 16
        %v4929 = vrot.slane %v4927, 5
        %v4930 = vor.u32 %v4926, %v4929
        %v4931 = vrot.slane %v4930, 4
        %v4933 = vshll.u32 %v4555, 16
        %v4935 = vrot.slane %v4933, 5
        %v4936 = vsel %vm507, %v4931, %v4935
        %v4937 = vshrl.u32 %v4555, 16
        %v4939 = vrot.slane %v4937, 4
        %v4940 = vor.u32 %v4939, %v4935
        %v4941 = vrot.slane %v4940, 4
        %v4943 = vshll.u32 %v4556, 16
        %v4945 = vrot.slane %v4943, 5
        %v4946 = vsel %vm507, %v4941, %v4945
        %v4948 = vshrl.u32 %v4557, 16
        %v4950 = vrot.slane %v4948, 4
        %v4951 = vshll.u32 %v4557, 16
        %v4953 = vrot.slane %v4951, 5
        %v4954 = vor.u32 %v4950, %v4953
        %v4955 = vrot.slane %v4954, 4
        %v4957 = vshll.u32 %v4558, 16
        %v4959 = vrot.slane %v4957, 5
        %v4960 = vsel %vm507, %v4955, %v4959
        %v4961 = vshrl.u32 %v4558, 16
        %v4963 = vrot.slane %v4961, 4
        %v4964 = vor.u32 %v4963, %v4959
        %v4965 = vrot.slane %v4964, 4
        %v4967 = vshll.u32 %v4559, 16
        %v4969 = vrot.slane %v4967, 5
        %v4970 = vsel %vm507, %v4965, %v4969
        %v4972 = vshrl.u32 %v4560, 16
        %v4974 = vrot.slane %v4972, 4
        %v4975 = vshll.u32 %v4560, 16
        %v4977 = vrot.slane %v4975, 5
        %v4978 = vor.u32 %v4974, %v4977
        %v4979 = vrot.slane %v4978, 4
        %v4981 = vshll.u32 %v4561, 16
        %v4983 = vrot.slane %v4981, 5
        %v4984 = vsel %vm507, %v4979, %v4983
        %v4985 = vshrl.u32 %v4561, 16
        %v4987 = vrot.slane %v4985, 4
        %v4988 = vor.u32 %v4987, %v4983
        %v4989 = vrot.slane %v4988, 4
        %v4991 = vshll.u32 %v4562, 16
        %v4993 = vrot.slane %v4991, 5
        %v4994 = vsel %vm507, %v4989, %v4993
        %v4995 = vunpack.c.l.b16 %v4576
        %v4996 = vunpack.c.l.b16 %v4586
        %v4997 = vunpack.c.l.b16 %v4600
        %v4998 = vunpack.c.l.b16 %v4610
        %v4999 = vunpack.c.l.b16 %v4624
        %v5000 = vunpack.c.l.b16 %v4634
        %v5001 = vunpack.c.l.b16 %v4648
        %v5002 = vunpack.c.l.b16 %v4658
        %v5003 = vunpack.c.l.b16 %v4672
        %v5004 = vunpack.c.l.b16 %v4682
        %v5005 = vunpack.c.l.b16 %v4696
        %v5006 = vunpack.c.l.b16 %v4706
        %v5007 = vunpack.c.l.b16 %v4720
        %v5008 = vunpack.c.l.b16 %v4730
        %v5009 = vunpack.c.l.b16 %v4744
        %v5010 = vunpack.c.l.b16 %v4754
        %v5011 = vunpack.c.l.b16 %v4768
        %v5012 = vunpack.c.l.b16 %v4778
        %v5013 = vunpack.c.l.b16 %v4792
        %v5014 = vunpack.c.l.b16 %v4802
        %v5015 = vunpack.c.l.b16 %v4816
        %v5016 = vunpack.c.l.b16 %v4826
        %v5017 = vunpack.c.l.b16 %v4840
        %v5018 = vunpack.c.l.b16 %v4850
        %v5019 = vunpack.c.l.b16 %v4864
        %v5020 = vunpack.c.l.b16 %v4874
        %v5021 = vunpack.c.l.b16 %v4888
        %v5022 = vunpack.c.l.b16 %v4898
        %v5023 = vunpack.c.l.b16 %v4912
        %v5024 = vunpack.c.l.b16 %v4922
        %v5025 = vunpack.c.l.b16 %v4936
        %v5026 = vunpack.c.l.b16 %v4946
        %v5027 = vpack.c.b16 %v4996, %v4995
        %v5028 = vpack.c.b16 %v4998, %v4997
        %v5029 = vpack.c.b16 %v5000, %v4999
        %v5030 = vpack.c.b16 %v5002, %v5001
        %v5031 = vpack.c.b16 %v5004, %v5003
        %v5032 = vpack.c.b16 %v5006, %v5005
        %v5033 = vpack.c.b16 %v5008, %v5007
        %v5034 = vpack.c.b16 %v5010, %v5009
        %v5035 = vpack.c.b16 %v5012, %v5011
        %v5036 = vpack.c.b16 %v5014, %v5013
        %v5037 = vpack.c.b16 %v5016, %v5015
        %v5038 = vpack.c.b16 %v5018, %v5017
        %v5039 = vpack.c.b16 %v5020, %v5019
        %v5040 = vpack.c.b16 %v5022, %v5021
        %v5041 = vpack.c.b16 %v5024, %v5023
        %v5042 = vpack.c.b16 %v5026, %v5025
        %v5059 = vunpack.c.l.b16 %v4960
        %v5060 = vunpack.c.l.b16 %v4970
        %v5061 = vpack.c.b16 %v5060, %v5059
        %v5063 = vunpack.c.l.b16 %v4984
        %v5064 = vunpack.c.l.b16 %v4994
        %v5065 = vpack.c.b16 %v5064, %v5063
        %s5067 = scalar_lea.vmem [#allocation3], 384
        %v5068 = vld [vmem:[%s5067] sm:$0xf]
        %v5069 = vld [vmem:[%s5067 + $0x4] sm:$0xf]
        %v5070 = vld [vmem:[%s5067 + $0x8] sm:$0xf]
        %v5071 = vld [vmem:[%s5067 + $0xc] sm:$0xf]
        %v5072 = vld [vmem:[%s5067 + $0x10] sm:$0xf]
        %v5073 = vld [vmem:[%s5067 + $0x14] sm:$0xf]
        %v5074 = vld [vmem:[%s5067 + $0x18] sm:$0xf]
        %v5075 = vld [vmem:[%s5067 + $0x1c] sm:$0xf]
        %v5076 = vld [vmem:[%s5067 + $0x20] sm:$0xf]
        %v5077 = vld [vmem:[%s5067 + $0x24] sm:$0xf]
        %v5078 = vld [vmem:[%s5067 + $0x28] sm:$0xf]
        %v5079 = vld [vmem:[%s5067 + $0x2c] sm:$0xf]
        %v5080 = vld [vmem:[%s5067 + $0x30] sm:$0xf]
        %v5081 = vld [vmem:[%s5067 + $0x34] sm:$0xf]
        %v5082 = vld [vmem:[%s5067 + $0x38] sm:$0xf]
        %v5083 = vld [vmem:[%s5067 + $0x3c] sm:$0xf]
        %v5084 = vld [vmem:[%s5067 + $0x40] sm:$0xf]
        %v5085 = vld [vmem:[%s5067 + $0x44] sm:$0xf]
        %v5086 = vld [vmem:[%s5067 + $0x48] sm:$0xf]
        %v5087 = vld [vmem:[%s5067 + $0x4c] sm:$0xf]
        %v5088 = vld [vmem:[%s5067 + $0x50] sm:$0xf]
        %v5089 = vld [vmem:[%s5067 + $0x54] sm:$0xf]
        %v5090 = vld [vmem:[%s5067 + $0x58] sm:$0xf]
        %v5091 = vld [vmem:[%s5067 + $0x5c] sm:$0xf]
        %v5092 = vld [vmem:[%s5067 + $0x60] sm:$0xf]
        %v5093 = vld [vmem:[%s5067 + $0x64] sm:$0xf]
        %v5094 = vld [vmem:[%s5067 + $0x68] sm:$0xf]
        %v5095 = vld [vmem:[%s5067 + $0x6c] sm:$0xf]
        %v5096 = vld [vmem:[%s5067 + $0x70] sm:$0xf]
        %v5097 = vld [vmem:[%s5067 + $0x74] sm:$0xf]
        %v5098 = vld [vmem:[%s5067 + $0x78] sm:$0xf]
        %v5099 = vld [vmem:[%s5067 + $0x7c] sm:$0xf]
        %v5100 = vld [vmem:[%s5067 + $0x80] sm:$0xf]
        %v5101 = vld [vmem:[%s5067 + $0x84] sm:$0xf]
        %v5102 = vld [vmem:[%s5067 + $0x88] sm:$0xf]
        %v5103 = vld [vmem:[%s5067 + $0x8c] sm:$0xf]
        %v5104 = vld [vmem:[%s5067 + $0x90] sm:$0xf]
        %v5105 = vld [vmem:[%s5067 + $0x94] sm:$0xf]
        %v5106 = vld [vmem:[%s5067 + $0x98] sm:$0xf]
        %v5107 = vld [vmem:[%s5067 + $0x9c] sm:$0xf]
        %v5108 = vld [vmem:[%s5067 + $0xa0] sm:$0xf]
        %v5109 = vld [vmem:[%s5067 + $0xa4] sm:$0xf]
        %v5110 = vld [vmem:[%s5067 + $0xa8] sm:$0xf]
        %v5111 = vld [vmem:[%s5067 + $0xac] sm:$0xf]
        %v5112 = vld [vmem:[%s5067 + $0xb0] sm:$0xf]
        %v5113 = vld [vmem:[%s5067 + $0xb4] sm:$0xf]
        %v5114 = vld [vmem:[%s5067 + $0xb8] sm:$0xf]
        %v5115 = vld [vmem:[%s5067 + $0xbc] sm:$0xf]
        %v5164 = vunpack.c.l.b16 %v5068
        %v5165 = vunpack.c.l.b16 %v5069
        %v5166 = vunpack.c.l.b16 %v5070
        %v5167 = vunpack.c.l.b16 %v5071
        %v5168 = vunpack.c.l.b16 %v5072
        %v5169 = vunpack.c.l.b16 %v5073
        %v5170 = vunpack.c.l.b16 %v5074
        %v5171 = vunpack.c.l.b16 %v5075
        %v5172 = vunpack.c.l.b16 %v5076
        %v5173 = vunpack.c.l.b16 %v5077
        %v5174 = vunpack.c.l.b16 %v5078
        %v5175 = vunpack.c.l.b16 %v5079
        %v5176 = vunpack.c.l.b16 %v5080
        %v5177 = vunpack.c.l.b16 %v5081
        %v5178 = vunpack.c.l.b16 %v5082
        %v5179 = vunpack.c.l.b16 %v5083
        %v5180 = vunpack.c.l.b16 %v5084
        %v5181 = vunpack.c.l.b16 %v5085
        %v5182 = vunpack.c.l.b16 %v5086
        %v5183 = vunpack.c.l.b16 %v5087
        %v5184 = vunpack.c.l.b16 %v5088
        %v5185 = vunpack.c.l.b16 %v5089
        %v5186 = vunpack.c.l.b16 %v5090
        %v5187 = vunpack.c.l.b16 %v5091
        %v5188 = vunpack.c.l.b16 %v5092
        %v5189 = vunpack.c.l.b16 %v5093
        %v5190 = vunpack.c.l.b16 %v5094
        %v5191 = vunpack.c.l.b16 %v5095
        %v5192 = vunpack.c.l.b16 %v5096
        %v5193 = vunpack.c.l.b16 %v5097
        %v5194 = vunpack.c.l.b16 %v5098
        %v5195 = vunpack.c.l.b16 %v5099
        %v5196 = vunpack.c.l.b16 %v5100
        %v5197 = vunpack.c.l.b16 %v5101
        %v5198 = vunpack.c.l.b16 %v5102
        %v5199 = vunpack.c.l.b16 %v5103
        %v5200 = vunpack.c.l.b16 %v5104
        %v5201 = vunpack.c.l.b16 %v5105
        %v5202 = vunpack.c.l.b16 %v5106
        %v5203 = vunpack.c.l.b16 %v5107
        %v5204 = vunpack.c.l.b16 %v5108
        %v5205 = vunpack.c.l.b16 %v5109
        %v5206 = vunpack.c.l.b16 %v5110
        %v5207 = vunpack.c.l.b16 %v5111
        %v5208 = vunpack.c.l.b16 %v5112
        %v5209 = vunpack.c.l.b16 %v5113
        %v5210 = vunpack.c.l.b16 %v5114
        %v5211 = vunpack.c.l.b16 %v5115
        %v5212 = vpack.c.b16 %v5165, %v5164
        %v5213 = vpack.c.b16 %v5167, %v5166
        %v5214 = vpack.c.b16 %v5169, %v5168
        %v5215 = vpack.c.b16 %v5171, %v5170
        %v5216 = vpack.c.b16 %v5173, %v5172
        %v5217 = vpack.c.b16 %v5175, %v5174
        %v5218 = vpack.c.b16 %v5177, %v5176
        %v5219 = vpack.c.b16 %v5179, %v5178
        %v5220 = vpack.c.b16 %v5181, %v5180
        %v5221 = vpack.c.b16 %v5183, %v5182
        %v5222 = vpack.c.b16 %v5185, %v5184
        %v5223 = vpack.c.b16 %v5187, %v5186
        %v5224 = vpack.c.b16 %v5189, %v5188
        %v5225 = vpack.c.b16 %v5191, %v5190
        %v5226 = vpack.c.b16 %v5193, %v5192
        %v5227 = vpack.c.b16 %v5195, %v5194
        %v5228 = vpack.c.b16 %v5197, %v5196
        %v5229 = vpack.c.b16 %v5199, %v5198
        %v5230 = vpack.c.b16 %v5201, %v5200
        %v5231 = vpack.c.b16 %v5203, %v5202
        %v5232 = vpack.c.b16 %v5205, %v5204
        %v5233 = vpack.c.b16 %v5207, %v5206
        %v5234 = vpack.c.b16 %v5209, %v5208
        %v5235 = vpack.c.b16 %v5211, %v5210
        %5260 = vmatpush.bf16.msra.mxu0 %v5219
        %5261 = vmatpush.bf16.msra.mxu0 %v5218
        %5262 = vmatpush.bf16.msra.mxu0 %v5217
        %5263 = vmatpush.bf16.msra.mxu0 %v5216
        %5264 = vmatpush.bf16.msra.mxu0 %v5215
        %5265 = vmatpush.bf16.msra.mxu0 %v5214
        %5266 = vmatpush.bf16.msra.mxu0 %v5213
        %5267 = vmatpush.bf16.msra.mxu0 %v5212
        %5268 = vmatmul.bf16.gmra.mxu0 %v5027
        %v5269 = vpop.f32.mrf.mxu0
        %v5270 = vadd.f32 0.0, %v5269
        %v5271 = vpop.f32.mrf.mxu0
        %v5272 = vadd.f32 0.0, %v5271
        %5273 = vmatmul.bf16.gmra.mxu0 %v5028
        %v5274 = vpop.f32.mrf.mxu0
        %v5275 = vadd.f32 0.0, %v5274
        %v5276 = vpop.f32.mrf.mxu0
        %v5277 = vadd.f32 0.0, %v5276
        %5278 = vmatmul.bf16.gmra.mxu0 %v5029
        %v5279 = vpop.f32.mrf.mxu0
        %v5280 = vadd.f32 0.0, %v5279
        %v5281 = vpop.f32.mrf.mxu0
        %v5282 = vadd.f32 0.0, %v5281
        %5283 = vmatmul.bf16.gmra.mxu0 %v5030
        %v5284 = vpop.f32.mrf.mxu0
        %v5285 = vadd.f32 0.0, %v5284
        %v5286 = vpop.f32.mrf.mxu0
        %v5287 = vadd.f32 0.0, %v5286
        %5288 = vmatmul.bf16.gmra.mxu0 %v5031
        %v5289 = vpop.f32.mrf.mxu0
        %v5290 = vadd.f32 0.0, %v5289
        %v5291 = vpop.f32.mrf.mxu0
        %v5292 = vadd.f32 0.0, %v5291
        %5293 = vmatmul.bf16.gmra.mxu0 %v5032
        %v5294 = vpop.f32.mrf.mxu0
        %v5295 = vadd.f32 0.0, %v5294
        %v5296 = vpop.f32.mrf.mxu0
        %v5297 = vadd.f32 0.0, %v5296
        %5298 = vmatmul.bf16.gmra.mxu0 %v5033
        %v5299 = vpop.f32.mrf.mxu0
        %v5300 = vadd.f32 0.0, %v5299
        %v5301 = vpop.f32.mrf.mxu0
        %v5302 = vadd.f32 0.0, %v5301
        %5303 = vmatmul.bf16.gmra.mxu0 %v5034
        %v5304 = vpop.f32.mrf.mxu0
        %v5305 = vadd.f32 0.0, %v5304
        %v5306 = vpop.f32.mrf.mxu0
        %v5307 = vadd.f32 0.0, %v5306
        %5308 = vmatmul.bf16.gmra.mxu0 %v5035
        %v5309 = vpop.f32.mrf.mxu0
        %v5310 = vadd.f32 0.0, %v5309
        %v5311 = vpop.f32.mrf.mxu0
        %v5312 = vadd.f32 0.0, %v5311
        %5313 = vmatmul.bf16.gmra.mxu0 %v5036
        %v5314 = vpop.f32.mrf.mxu0
        %v5315 = vadd.f32 0.0, %v5314
        %v5316 = vpop.f32.mrf.mxu0
        %v5317 = vadd.f32 0.0, %v5316
        %5318 = vmatmul.bf16.gmra.mxu0 %v5037
        %v5319 = vpop.f32.mrf.mxu0
        %v5320 = vadd.f32 0.0, %v5319
        %v5321 = vpop.f32.mrf.mxu0
        %v5322 = vadd.f32 0.0, %v5321
        %5323 = vmatmul.bf16.gmra.mxu0 %v5038
        %v5324 = vpop.f32.mrf.mxu0
        %v5325 = vadd.f32 0.0, %v5324
        %v5326 = vpop.f32.mrf.mxu0
        %v5327 = vadd.f32 0.0, %v5326
        %5328 = vmatmul.bf16.gmra.mxu0 %v5039
        %v5329 = vpop.f32.mrf.mxu0
        %v5330 = vadd.f32 0.0, %v5329
        %v5331 = vpop.f32.mrf.mxu0
        %v5332 = vadd.f32 0.0, %v5331
        %5333 = vmatmul.bf16.gmra.mxu0 %v5040
        %v5334 = vpop.f32.mrf.mxu0
        %v5335 = vadd.f32 0.0, %v5334
        %v5336 = vpop.f32.mrf.mxu0
        %v5337 = vadd.f32 0.0, %v5336
        %5338 = vmatmul.bf16.gmra.mxu0 %v5041
        %v5339 = vpop.f32.mrf.mxu0
        %v5340 = vadd.f32 0.0, %v5339
        %v5341 = vpop.f32.mrf.mxu0
        %v5342 = vadd.f32 0.0, %v5341
        %5343 = vmatmul.bf16.gmra.mxu0 %v5042
        %v5344 = vpop.f32.mrf.mxu0
        %v5345 = vadd.f32 0.0, %v5344
        %v5346 = vpop.f32.mrf.mxu0
        %v5347 = vadd.f32 0.0, %v5346
        %5348 = vdwg.mxu0
        %5349 = vmatpush.bf16.msra.mxu0 %v5227
        %5350 = vmatpush.bf16.msra.mxu0 %v5226
        %5351 = vmatpush.bf16.msra.mxu0 %v5225
        %5352 = vmatpush.bf16.msra.mxu0 %v5224
        %5353 = vmatpush.bf16.msra.mxu0 %v5223
        %5354 = vmatpush.bf16.msra.mxu0 %v5222
        %5355 = vmatpush.bf16.msra.mxu0 %v5221
        %5356 = vmatpush.bf16.msra.mxu0 %v5220
        %5357 = vmatmul.bf16.gmra.mxu0 %v5028
        %v5358 = vpop.f32.mrf.mxu0
        %v5359 = vadd.f32 %v5270, %v5358
        %v5360 = vpop.f32.mrf.mxu0
        %v5361 = vadd.f32 %v5272, %v5360
        %5362 = vmatmul.bf16.gmra.mxu0 %v5029
        %v5363 = vpop.f32.mrf.mxu0
        %v5364 = vadd.f32 %v5275, %v5363
        %v5365 = vpop.f32.mrf.mxu0
        %v5366 = vadd.f32 %v5277, %v5365
        %5367 = vmatmul.bf16.gmra.mxu0 %v5030
        %v5368 = vpop.f32.mrf.mxu0
        %v5369 = vadd.f32 %v5280, %v5368
        %v5370 = vpop.f32.mrf.mxu0
        %v5371 = vadd.f32 %v5282, %v5370
        %5372 = vmatmul.bf16.gmra.mxu0 %v5031
        %v5373 = vpop.f32.mrf.mxu0
        %v5374 = vadd.f32 %v5285, %v5373
        %v5375 = vpop.f32.mrf.mxu0
        %v5376 = vadd.f32 %v5287, %v5375
        %5377 = vmatmul.bf16.gmra.mxu0 %v5032
        %v5378 = vpop.f32.mrf.mxu0
        %v5379 = vadd.f32 %v5290, %v5378
        %v5380 = vpop.f32.mrf.mxu0
        %v5381 = vadd.f32 %v5292, %v5380
        %5382 = vmatmul.bf16.gmra.mxu0 %v5033
        %v5383 = vpop.f32.mrf.mxu0
        %v5384 = vadd.f32 %v5295, %v5383
        %v5385 = vpop.f32.mrf.mxu0
        %v5386 = vadd.f32 %v5297, %v5385
        %5387 = vmatmul.bf16.gmra.mxu0 %v5034
        %v5388 = vpop.f32.mrf.mxu0
        %v5389 = vadd.f32 %v5300, %v5388
        %v5390 = vpop.f32.mrf.mxu0
        %v5391 = vadd.f32 %v5302, %v5390
        %5392 = vmatmul.bf16.gmra.mxu0 %v5035
        %v5393 = vpop.f32.mrf.mxu0
        %v5394 = vadd.f32 %v5305, %v5393
        %v5395 = vpop.f32.mrf.mxu0
        %v5396 = vadd.f32 %v5307, %v5395
        %5397 = vmatmul.bf16.gmra.mxu0 %v5036
        %v5398 = vpop.f32.mrf.mxu0
        %v5399 = vadd.f32 %v5310, %v5398
        %v5400 = vpop.f32.mrf.mxu0
        %v5401 = vadd.f32 %v5312, %v5400
        %5402 = vmatmul.bf16.gmra.mxu0 %v5037
        %v5403 = vpop.f32.mrf.mxu0
        %v5404 = vadd.f32 %v5315, %v5403
        %v5405 = vpop.f32.mrf.mxu0
        %v5406 = vadd.f32 %v5317, %v5405
        %5407 = vmatmul.bf16.gmra.mxu0 %v5038
        %v5408 = vpop.f32.mrf.mxu0
        %v5409 = vadd.f32 %v5320, %v5408
        %v5410 = vpop.f32.mrf.mxu0
        %v5411 = vadd.f32 %v5322, %v5410
        %5412 = vmatmul.bf16.gmra.mxu0 %v5039
        %v5413 = vpop.f32.mrf.mxu0
        %v5414 = vadd.f32 %v5325, %v5413
        %v5415 = vpop.f32.mrf.mxu0
        %v5416 = vadd.f32 %v5327, %v5415
        %5417 = vmatmul.bf16.gmra.mxu0 %v5040
        %v5418 = vpop.f32.mrf.mxu0
        %v5419 = vadd.f32 %v5330, %v5418
        %v5420 = vpop.f32.mrf.mxu0
        %v5421 = vadd.f32 %v5332, %v5420
        %5422 = vmatmul.bf16.gmra.mxu0 %v5041
        %v5423 = vpop.f32.mrf.mxu0
        %v5424 = vadd.f32 %v5335, %v5423
        %v5425 = vpop.f32.mrf.mxu0
        %v5426 = vadd.f32 %v5337, %v5425
        %5427 = vmatmul.bf16.gmra.mxu0 %v5042
        %v5428 = vpop.f32.mrf.mxu0
        %v5429 = vadd.f32 %v5340, %v5428
        %v5430 = vpop.f32.mrf.mxu0
        %v5431 = vadd.f32 %v5342, %v5430
        %5432 = vmatmul.bf16.gmra.mxu0 %v5061
        %v5433 = vpop.f32.mrf.mxu0
        %v5434 = vadd.f32 %v5345, %v5433
        %v5435 = vpop.f32.mrf.mxu0
        %v5436 = vadd.f32 %v5347, %v5435
        %5437 = vdwg.mxu0
        %5438 = vmatpush.bf16.msra.mxu0 %v5235
        %5439 = vmatpush.bf16.msra.mxu0 %v5234
        %5440 = vmatpush.bf16.msra.mxu0 %v5233
        %5441 = vmatpush.bf16.msra.mxu0 %v5232
        %5442 = vmatpush.bf16.msra.mxu0 %v5231
        %5443 = vmatpush.bf16.msra.mxu0 %v5230
        %5444 = vmatpush.bf16.msra.mxu0 %v5229
        %5445 = vmatpush.bf16.msra.mxu0 %v5228
        %5446 = vmatmul.bf16.gmra.mxu0 %v5029
        %v5447 = vpop.f32.mrf.mxu0
        %v5448 = vadd.f32 %v5359, %v5447
        %v5449 = vpop.f32.mrf.mxu0
        %v5450 = vadd.f32 %v5361, %v5449
        %5451 = vmatmul.bf16.gmra.mxu0 %v5030
        %v5452 = vpop.f32.mrf.mxu0
        %v5453 = vadd.f32 %v5364, %v5452
        %v5454 = vpop.f32.mrf.mxu0
        %v5455 = vadd.f32 %v5366, %v5454
        %5456 = vmatmul.bf16.gmra.mxu0 %v5031
        %v5457 = vpop.f32.mrf.mxu0
        %v5458 = vadd.f32 %v5369, %v5457
        %v5459 = vpop.f32.mrf.mxu0
        %v5460 = vadd.f32 %v5371, %v5459
        %5461 = vmatmul.bf16.gmra.mxu0 %v5032
        %v5462 = vpop.f32.mrf.mxu0
        %v5463 = vadd.f32 %v5374, %v5462
        %v5464 = vpop.f32.mrf.mxu0
        %v5465 = vadd.f32 %v5376, %v5464
        %5466 = vmatmul.bf16.gmra.mxu0 %v5033
        %v5467 = vpop.f32.mrf.mxu0
        %v5468 = vadd.f32 %v5379, %v5467
        %v5469 = vpop.f32.mrf.mxu0
        %v5470 = vadd.f32 %v5381, %v5469
        %5471 = vmatmul.bf16.gmra.mxu0 %v5034
        %v5472 = vpop.f32.mrf.mxu0
        %v5473 = vadd.f32 %v5384, %v5472
        %v5474 = vpop.f32.mrf.mxu0
        %v5475 = vadd.f32 %v5386, %v5474
        %5476 = vmatmul.bf16.gmra.mxu0 %v5035
        %v5477 = vpop.f32.mrf.mxu0
        %v5478 = vadd.f32 %v5389, %v5477
        %v5479 = vpop.f32.mrf.mxu0
        %v5480 = vadd.f32 %v5391, %v5479
        %5481 = vmatmul.bf16.gmra.mxu0 %v5036
        %v5482 = vpop.f32.mrf.mxu0
        %v5483 = vadd.f32 %v5394, %v5482
        %v5484 = vpop.f32.mrf.mxu0
        %v5485 = vadd.f32 %v5396, %v5484
        %5486 = vmatmul.bf16.gmra.mxu0 %v5037
        %v5487 = vpop.f32.mrf.mxu0
        %v5488 = vadd.f32 %v5399, %v5487
        %v5489 = vpop.f32.mrf.mxu0
        %v5490 = vadd.f32 %v5401, %v5489
        %5491 = vmatmul.bf16.gmra.mxu0 %v5038
        %v5492 = vpop.f32.mrf.mxu0
        %v5493 = vadd.f32 %v5404, %v5492
        %v5494 = vpop.f32.mrf.mxu0
        %v5495 = vadd.f32 %v5406, %v5494
        %5496 = vmatmul.bf16.gmra.mxu0 %v5039
        %v5497 = vpop.f32.mrf.mxu0
        %v5498 = vadd.f32 %v5409, %v5497
        %v5499 = vpop.f32.mrf.mxu0
        %v5500 = vadd.f32 %v5411, %v5499
        %5501 = vmatmul.bf16.gmra.mxu0 %v5040
        %v5502 = vpop.f32.mrf.mxu0
        %v5503 = vadd.f32 %v5414, %v5502
        %v5504 = vpop.f32.mrf.mxu0
        %v5505 = vadd.f32 %v5416, %v5504
        %5506 = vmatmul.bf16.gmra.mxu0 %v5041
        %v5507 = vpop.f32.mrf.mxu0
        %v5508 = vadd.f32 %v5419, %v5507
        %v5509 = vpop.f32.mrf.mxu0
        %v5510 = vadd.f32 %v5421, %v5509
        %5511 = vmatmul.bf16.gmra.mxu0 %v5042
        %v5512 = vpop.f32.mrf.mxu0
        %v5513 = vadd.f32 %v5424, %v5512
        %v5514 = vpop.f32.mrf.mxu0
        %v5515 = vadd.f32 %v5426, %v5514
        %5516 = vmatmul.bf16.gmra.mxu0 %v5061
        %v5517 = vpop.f32.mrf.mxu0
        %v5518 = vadd.f32 %v5429, %v5517
        %v5519 = vpop.f32.mrf.mxu0
        %v5520 = vadd.f32 %v5431, %v5519
        %5521 = vmatmul.bf16.gmra.mxu0 %v5065
        %v5522 = vpop.f32.mrf.mxu0
        %v5523 = vadd.f32 %v5434, %v5522
        %v5524 = vpop.f32.mrf.mxu0
        %v5525 = vadd.f32 %v5436, %v5524
        %5526 = vdwg.mxu0
        %v5527 = vadd.f32 %v4430, %v5448
        %v5528 = vadd.f32 %v4432, %v5450
        %v5529 = vadd.f32 %v4435, %v5453
        %v5530 = vadd.f32 %v4437, %v5455
        %v5531 = vadd.f32 %v4440, %v5458
        %v5532 = vadd.f32 %v4442, %v5460
        %v5533 = vadd.f32 %v4445, %v5463
        %v5534 = vadd.f32 %v4447, %v5465
        %v5535 = vadd.f32 %v4450, %v5468
        %v5536 = vadd.f32 %v4452, %v5470
        %v5537 = vadd.f32 %v4455, %v5473
        %v5538 = vadd.f32 %v4457, %v5475
        %v5539 = vadd.f32 %v4460, %v5478
        %v5540 = vadd.f32 %v4462, %v5480
        %v5541 = vadd.f32 %v4465, %v5483
        %v5542 = vadd.f32 %v4467, %v5485
        %v5543 = vadd.f32 %v4470, %v5488
        %v5544 = vadd.f32 %v4472, %v5490
        %v5545 = vadd.f32 %v4475, %v5493
        %v5546 = vadd.f32 %v4477, %v5495
        %v5547 = vadd.f32 %v4480, %v5498
        %v5548 = vadd.f32 %v4482, %v5500
        %v5549 = vadd.f32 %v4485, %v5503
        %v5550 = vadd.f32 %v4487, %v5505
        %v5551 = vadd.f32 %v4490, %v5508
        %v5552 = vadd.f32 %v4492, %v5510
        %v5553 = vadd.f32 %v4495, %v5513
        %v5554 = vadd.f32 %v4497, %v5515
        %v5555 = vadd.f32 %v4500, %v5518
        %v5556 = vadd.f32 %v4502, %v5520
        %v5557 = vadd.f32 %v4505, %v5523
        %v5558 = vadd.f32 %v4507, %v5525
        %v5559 = vunpack.c.l.bf16 %v545
        %v5560 = vunpack.c.l.bf16 %v555
        %v5561 = vunpack.c.l.bf16 %v569
        %v5562 = vunpack.c.l.bf16 %v579
        %v5563 = vunpack.c.l.bf16 %v593
        %v5564 = vunpack.c.l.bf16 %v603
        %v5565 = vunpack.c.l.bf16 %v617
        %v5566 = vunpack.c.l.bf16 %v627
        %v5567 = vunpack.c.l.bf16 %v641
        %v5568 = vunpack.c.l.bf16 %v651
        %v5569 = vunpack.c.l.bf16 %v665
        %v5570 = vunpack.c.l.bf16 %v675
        %v5571 = vunpack.c.l.bf16 %v689
        %v5572 = vunpack.c.l.bf16 %v699
        %v5573 = vunpack.c.l.bf16 %v713
        %v5574 = vunpack.c.l.bf16 %v723
        %v5575 = vunpack.c.l.bf16 %v737
        %v5576 = vunpack.c.l.bf16 %v747
        %v5577 = vunpack.c.l.bf16 %v761
        %v5578 = vunpack.c.l.bf16 %v771
        %v5579 = vunpack.c.l.bf16 %v785
        %v5580 = vunpack.c.l.bf16 %v795
        %v5581 = vunpack.c.l.bf16 %v809
        %v5582 = vunpack.c.l.bf16 %v819
        %v5583 = vunpack.c.l.bf16 %v833
        %v5584 = vunpack.c.l.bf16 %v843
        %v5585 = vunpack.c.l.bf16 %v857
        %v5586 = vunpack.c.l.bf16 %v867
        %v5587 = vunpack.c.l.bf16 %v881
        %v5588 = vunpack.c.l.bf16 %v891
        %v5589 = vunpack.c.l.bf16 %v905
        %v5590 = vunpack.c.l.bf16 %v915
        %v5591 = vld [vmem:[%s5] sm:$0x1]
        %v5593 = vperm.slane %v5591, 0
        %v5595 = vmul.f32 %v5527, %v5593
        %v5596 = vmul.f32 %v5528, %v5593
        %v5597 = vmul.f32 %v5529, %v5593
        %v5598 = vmul.f32 %v5530, %v5593
        %v5599 = vmul.f32 %v5531, %v5593
        %v5600 = vmul.f32 %v5532, %v5593
        %v5601 = vmul.f32 %v5533, %v5593
        %v5602 = vmul.f32 %v5534, %v5593
        %v5603 = vmul.f32 %v5535, %v5593
        %v5604 = vmul.f32 %v5536, %v5593
        %v5605 = vmul.f32 %v5537, %v5593
        %v5606 = vmul.f32 %v5538, %v5593
        %v5607 = vmul.f32 %v5539, %v5593
        %v5608 = vmul.f32 %v5540, %v5593
        %v5609 = vmul.f32 %v5541, %v5593
        %v5610 = vmul.f32 %v5542, %v5593
        %v5611 = vmul.f32 %v5543, %v5593
        %v5612 = vmul.f32 %v5544, %v5593
        %v5613 = vmul.f32 %v5545, %v5593
        %v5614 = vmul.f32 %v5546, %v5593
        %v5615 = vmul.f32 %v5547, %v5593
        %v5616 = vmul.f32 %v5548, %v5593
        %v5617 = vmul.f32 %v5549, %v5593
        %v5618 = vmul.f32 %v5550, %v5593
        %v5619 = vmul.f32 %v5551, %v5593
        %v5620 = vmul.f32 %v5552, %v5593
        %v5621 = vmul.f32 %v5553, %v5593
        %v5622 = vmul.f32 %v5554, %v5593
        %v5623 = vmul.f32 %v5555, %v5593
        %v5624 = vmul.f32 %v5556, %v5593
        %v5625 = vmul.f32 %v5557, %v5593
        %v5626 = vmul.f32 %v5558, %v5593
        %v5627 = vld [vmem:[%s6] sm:$0x1]
        %v5629 = vperm.slane %v5627, 0
        %v5631 = vadd.f32 %v5595, %v5629
        %v5632 = vadd.f32 %v5596, %v5629
        %v5633 = vadd.f32 %v5597, %v5629
        %v5634 = vadd.f32 %v5598, %v5629
        %v5635 = vadd.f32 %v5599, %v5629
        %v5636 = vadd.f32 %v5600, %v5629
        %v5637 = vadd.f32 %v5601, %v5629
        %v5638 = vadd.f32 %v5602, %v5629
        %v5639 = vadd.f32 %v5603, %v5629
        %v5640 = vadd.f32 %v5604, %v5629
        %v5641 = vadd.f32 %v5605, %v5629
        %v5642 = vadd.f32 %v5606, %v5629
        %v5643 = vadd.f32 %v5607, %v5629
        %v5644 = vadd.f32 %v5608, %v5629
        %v5645 = vadd.f32 %v5609, %v5629
        %v5646 = vadd.f32 %v5610, %v5629
        %v5647 = vadd.f32 %v5611, %v5629
        %v5648 = vadd.f32 %v5612, %v5629
        %v5649 = vadd.f32 %v5613, %v5629
        %v5650 = vadd.f32 %v5614, %v5629
        %v5651 = vadd.f32 %v5615, %v5629
        %v5652 = vadd.f32 %v5616, %v5629
        %v5653 = vadd.f32 %v5617, %v5629
        %v5654 = vadd.f32 %v5618, %v5629
        %v5655 = vadd.f32 %v5619, %v5629
        %v5656 = vadd.f32 %v5620, %v5629
        %v5657 = vadd.f32 %v5621, %v5629
        %v5658 = vadd.f32 %v5622, %v5629
        %v5659 = vadd.f32 %v5623, %v5629
        %v5660 = vadd.f32 %v5624, %v5629
        %v5661 = vadd.f32 %v5625, %v5629
        %v5662 = vadd.f32 %v5626, %v5629
        %v5663 = vadd.f32 %v5631, %v5559
        %v5664 = vadd.f32 %v5632, %v5560
        %v5665 = vadd.f32 %v5633, %v5561
        %v5666 = vadd.f32 %v5634, %v5562
        %v5667 = vadd.f32 %v5635, %v5563
        %v5668 = vadd.f32 %v5636, %v5564
        %v5669 = vadd.f32 %v5637, %v5565
        %v5670 = vadd.f32 %v5638, %v5566
        %v5671 = vadd.f32 %v5639, %v5567
        %v5672 = vadd.f32 %v5640, %v5568
        %v5673 = vadd.f32 %v5641, %v5569
        %v5674 = vadd.f32 %v5642, %v5570
        %v5675 = vadd.f32 %v5643, %v5571
        %v5676 = vadd.f32 %v5644, %v5572
        %v5677 = vadd.f32 %v5645, %v5573
        %v5678 = vadd.f32 %v5646, %v5574
        %v5679 = vadd.f32 %v5647, %v5575
        %v5680 = vadd.f32 %v5648, %v5576
        %v5681 = vadd.f32 %v5649, %v5577
        %v5682 = vadd.f32 %v5650, %v5578
        %v5683 = vadd.f32 %v5651, %v5579
        %v5684 = vadd.f32 %v5652, %v5580
        %v5685 = vadd.f32 %v5653, %v5581
        %v5686 = vadd.f32 %v5654, %v5582
        %v5687 = vadd.f32 %v5655, %v5583
        %v5688 = vadd.f32 %v5656, %v5584
        %v5689 = vadd.f32 %v5657, %v5585
        %v5690 = vadd.f32 %v5658, %v5586
        %v5691 = vadd.f32 %v5659, %v5587
        %v5692 = vadd.f32 %v5660, %v5588
        %v5693 = vadd.f32 %v5661, %v5589
        %v5694 = vadd.f32 %v5662, %v5590
        %v5695 = vmax.f32 %v5663, 0.0
        %v5696 = vmax.f32 %v5664, 0.0
        %v5697 = vmax.f32 %v5665, 0.0
        %v5698 = vmax.f32 %v5666, 0.0
        %v5699 = vmax.f32 %v5667, 0.0
        %v5700 = vmax.f32 %v5668, 0.0
        %v5701 = vmax.f32 %v5669, 0.0
        %v5702 = vmax.f32 %v5670, 0.0
        %v5703 = vmax.f32 %v5671, 0.0
        %v5704 = vmax.f32 %v5672, 0.0
        %v5705 = vmax.f32 %v5673, 0.0
        %v5706 = vmax.f32 %v5674, 0.0
        %v5707 = vmax.f32 %v5675, 0.0
        %v5708 = vmax.f32 %v5676, 0.0
        %v5709 = vmax.f32 %v5677, 0.0
        %v5710 = vmax.f32 %v5678, 0.0
        %v5711 = vmax.f32 %v5679, 0.0
        %v5712 = vmax.f32 %v5680, 0.0
        %v5713 = vmax.f32 %v5681, 0.0
        %v5714 = vmax.f32 %v5682, 0.0
        %v5715 = vmax.f32 %v5683, 0.0
        %v5716 = vmax.f32 %v5684, 0.0
        %v5717 = vmax.f32 %v5685, 0.0
        %v5718 = vmax.f32 %v5686, 0.0
        %v5719 = vmax.f32 %v5687, 0.0
        %v5720 = vmax.f32 %v5688, 0.0
        %v5721 = vmax.f32 %v5689, 0.0
        %v5722 = vmax.f32 %v5690, 0.0
        %v5723 = vmax.f32 %v5691, 0.0
        %v5724 = vmax.f32 %v5692, 0.0
        %v5725 = vmax.f32 %v5693, 0.0
        %v5726 = vmax.f32 %v5694, 0.0
        %v5727 = vpack.c.bf16 %v5695, %v5695
        %v5728 = vpack.c.bf16 %v5696, %v5696
        %v5729 = vpack.c.bf16 %v5697, %v5697
        %v5730 = vpack.c.bf16 %v5698, %v5698
        %v5731 = vpack.c.bf16 %v5699, %v5699
        %v5732 = vpack.c.bf16 %v5700, %v5700
        %v5733 = vpack.c.bf16 %v5701, %v5701
        %v5734 = vpack.c.bf16 %v5702, %v5702
        %v5735 = vpack.c.bf16 %v5703, %v5703
        %v5736 = vpack.c.bf16 %v5704, %v5704
        %v5737 = vpack.c.bf16 %v5705, %v5705
        %v5738 = vpack.c.bf16 %v5706, %v5706
        %v5739 = vpack.c.bf16 %v5707, %v5707
        %v5740 = vpack.c.bf16 %v5708, %v5708
        %v5741 = vpack.c.bf16 %v5709, %v5709
        %v5742 = vpack.c.bf16 %v5710, %v5710
        %v5743 = vpack.c.bf16 %v5711, %v5711
        %v5744 = vpack.c.bf16 %v5712, %v5712
        %v5745 = vpack.c.bf16 %v5713, %v5713
        %v5746 = vpack.c.bf16 %v5714, %v5714
        %v5747 = vpack.c.bf16 %v5715, %v5715
        %v5748 = vpack.c.bf16 %v5716, %v5716
        %v5749 = vpack.c.bf16 %v5717, %v5717
        %v5750 = vpack.c.bf16 %v5718, %v5718
        %v5751 = vpack.c.bf16 %v5719, %v5719
        %v5752 = vpack.c.bf16 %v5720, %v5720
        %v5753 = vpack.c.bf16 %v5721, %v5721
        %v5754 = vpack.c.bf16 %v5722, %v5722
        %v5755 = vpack.c.bf16 %v5723, %v5723
        %v5756 = vpack.c.bf16 %v5724, %v5724
        %v5757 = vpack.c.bf16 %v5725, %v5725
        %v5758 = vpack.c.bf16 %v5726, %v5726
        %5759 = vst [vmem:[%s288] sm:$0xf] %v5727
        %5760 = vst [vmem:[%s288 + $0x4] sm:$0xf] %v5728
        %5761 = vst [vmem:[%s288 + $0x8] sm:$0xf] %v5729
        %5762 = vst [vmem:[%s288 + $0xc] sm:$0xf] %v5730
        %5763 = vst [vmem:[%s288 + $0x10] sm:$0xf] %v5731
        %5764 = vst [vmem:[%s288 + $0x14] sm:$0xf] %v5732
        %5765 = vst [vmem:[%s288 + $0x18] sm:$0xf] %v5733
        %5766 = vst [vmem:[%s288 + $0x1c] sm:$0xf] %v5734
        %5767 = vst [vmem:[%s288 + $0x20] sm:$0xf] %v5735
        %5768 = vst [vmem:[%s288 + $0x24] sm:$0xf] %v5736
        %5769 = vst [vmem:[%s288 + $0x28] sm:$0xf] %v5737
        %5770 = vst [vmem:[%s288 + $0x2c] sm:$0xf] %v5738
        %5771 = vst [vmem:[%s288 + $0x30] sm:$0xf] %v5739
        %5772 = vst [vmem:[%s288 + $0x34] sm:$0xf] %v5740
        %5773 = vst [vmem:[%s288 + $0x38] sm:$0xf] %v5741
        %5774 = vst [vmem:[%s288 + $0x3c] sm:$0xf] %v5742
        %5775 = vst [vmem:[%s288 + $0x40] sm:$0xf] %v5743
        %5776 = vst [vmem:[%s288 + $0x44] sm:$0xf] %v5744
        %5777 = vst [vmem:[%s288 + $0x48] sm:$0xf] %v5745
        %5778 = vst [vmem:[%s288 + $0x4c] sm:$0xf] %v5746
        %5779 = vst [vmem:[%s288 + $0x50] sm:$0xf] %v5747
        %5780 = vst [vmem:[%s288 + $0x54] sm:$0xf] %v5748
        %5781 = vst [vmem:[%s288 + $0x58] sm:$0xf] %v5749
        %5782 = vst [vmem:[%s288 + $0x5c] sm:$0xf] %v5750
        %5783 = vst [vmem:[%s288 + $0x60] sm:$0xf] %v5751
        %5784 = vst [vmem:[%s288 + $0x64] sm:$0xf] %v5752
        %5785 = vst [vmem:[%s288 + $0x68] sm:$0xf] %v5753
        %5786 = vst [vmem:[%s288 + $0x6c] sm:$0xf] %v5754
        %5787 = vst [vmem:[%s288 + $0x70] sm:$0xf] %v5755
        %5788 = vst [vmem:[%s288 + $0x74] sm:$0xf] %v5756
        %5789 = vst [vmem:[%s288 + $0x78] sm:$0xf] %v5757
        %5790 = vst [vmem:[%s288 + $0x7c] sm:$0xf] %v5758
        %s5791 = sand.u32 %s182, 1
        %s5792 = scalar_lea.sflag [#allocation5], %s5791
        %s5793 = sand.u32 %s182, 1
        %s5794 = smul.addr %s5793, 128
        %s5795 = scalar_lea.vmem [#allocation6], %s5794
        // Predicated region
        $region53: #{tpu_custom_call.1} parent=47 // pred_check
          %p5796 = pneg %p192
        $region54: #{tpu_custom_call.1} parent=47 // pred_check_branch
          %5798 = sbr.rel (%p5796) target = $region56
        $region55: #{tpu_custom_call.1} parent=47 // pred_region
          %5800 = vsyncadd %s5792, 0
          %s5801 = smul.addr %s22, 32
          %s5802 = smul.addr %s5801, 4
          %s5803 = scalar_lea.hbm %s7, %s5802
          %s5804 = sshll.u32 %s5795, 4
          %s5805 = int_to_ptr.vmem [resolvable:$true] %s5804
          %s5806 = sshll.u32 %s5803, 4
          %s5807 = int_to_ptr.hbm [resolvable:$true] %s5806
          %5812 = dma.vmem_to_hbm [thread:$0]  %s5805, 2048, %s5807, %s5792, 64, 64, 4
        $region56: #{tpu_custom_call.1} parent=47 // pred_fallthru
          _
      $region48: #{tpu_custom_call.1} parent=5 // pred_fallthru
        _
      %p5813 = scmp.le.s32.totalorder 2, %s17
      // Predicated region
      $region57: #{tpu_custom_call.1} parent=5 // pred_check
        %p5814 = pneg %p5813
      $region58: #{tpu_custom_call.1} parent=5 // pred_check_branch
        %5816 = sbr.rel (%p5814) target = $region60
      $region59: #{tpu_custom_call.1} parent=5 // pred_region
        %s5817 = ssub.s32 %s17, 2
        // Predicated region
        $region61: #{tpu_custom_call.1} parent=59 // pred_check
          %p5818 = pneg %p198
        $region62: #{tpu_custom_call.1} parent=59 // pred_check_branch
          %5820 = sbr.rel (%p5818) target = $region64
        $region63: #{tpu_custom_call.1} parent=59 // pred_region
          %s5821 = sand.u32 %s183, 1
          %s5822 = scalar_lea.sflag [#allocation5], %s5821
          %s5823 = sand.u32 %s183, 1
          %s5824 = smul.addr %s5823, 128
          %s5825 = scalar_lea.vmem [#allocation6], %s5824
          %5827 = dma.done %s5822, 2048
        $region64: #{tpu_custom_call.1} parent=59 // pred_fallthru
          _
      $region60: #{tpu_custom_call.1} parent=5 // pred_fallthru
        _
    $region6: #{tpu_custom_call.1} parent=1 // loop_footer
      %s21 = sadd.s32 1, %s17
    $region7: #{tpu_custom_call.1} parent=1 // loop_footer_branch
      %16 = sbr.rel target = $region3
    $region8: #{tpu_custom_call.1} parent=1 // loop_exit
      _
    %5828 = vsyncpa [#allocation4], 1
    %s5829 = scalar_lea.sflag [#allocation4], 1
    %5830 = vsyncpa %s5829, 1
    %5831 = vsyncpa [#allocation5], 1
    %s5832 = scalar_lea.sflag [#allocation5], 1
    %5833 = vsyncpa %s5832, 1

</llo_original>
